<compile_context>
chip_gen: v6e
topology: v6e:2x2x1
jax: 0.10.0
libtpu: 0.0.40
codegen_flags: <defaults>
</compile_context>

<pallas_src>
import functools
import math

import jax
import jax.numpy as jnp
from jax.experimental import pallas as pl
from jax.experimental.pallas import tpu as pltpu


# ---------------------------------------------------------------------------
# Pallas kernels
# ---------------------------------------------------------------------------

def _conv_gemm_kernel(w_ref, b_ref, p_ref, o_ref, *, mode, eps):
    """Per-image conv as W(Cout,K) @ patchesT(K,M) + bias, fused epilogue.

    mode: "none" | "lrelu" | "in_lrelu"
    Output tile (Cout, M) is lane-dense (M on lanes) and C-major.
    """
    acc = jnp.dot(w_ref[...], p_ref[...],
                  preferred_element_type=jnp.float32)       # (Cout, M) f32
    acc = acc + b_ref[...]                                   # (Cout, 1) bcast
    if mode == "in_lrelu":
        # InstanceNorm2d (no affine, biased var) per row = per (image, channel)
        mean = jnp.mean(acc, axis=-1, keepdims=True)
        xc = acc - mean
        var = jnp.mean(xc * xc, axis=-1, keepdims=True)
        acc = xc * jax.lax.rsqrt(var + eps)
        acc = jnp.where(acc >= 0.0, acc, 0.2 * acc)
    elif mode == "lrelu":
        acc = jnp.where(acc >= 0.0, acc, 0.2 * acc)
    o_ref[...] = acc.astype(o_ref.dtype)


def _conv_in_final_kernel(w_ref, b_ref, wf_ref, bf_ref, p_ref,
                          o_ref, of_ref, *, eps):
    """Last middle layer (conv + IN + LeakyReLU) with the final 4x4/stride-1
    conv (covering the whole remaining map) folded in as a full reduction."""
    acc = jnp.dot(w_ref[...], p_ref[...],
                  preferred_element_type=jnp.float32)        # (Cout, M)
    acc = acc + b_ref[...]
    mean = jnp.mean(acc, axis=-1, keepdims=True)
    xc = acc - mean
    var = jnp.mean(xc * xc, axis=-1, keepdims=True)
    y = xc * jax.lax.rsqrt(var + eps)
    y = jnp.where(y >= 0.0, y, 0.2 * y)
    o_ref[...] = y.astype(o_ref.dtype)

    # final conv: <y, w_final> over all (channel, spatial) + bias -> scalar
    prod = y * wf_ref[...]                                   # (Cout, M)
    part = jnp.sum(prod, axis=1, keepdims=True)              # lane reduce
    final = jnp.sum(part, axis=0, keepdims=True)             # sublane reduce
    of_ref[...] = (final + bf_ref[...]).astype(of_ref.dtype)


# ---------------------------------------------------------------------------
# Glue: im2col (K-major, no relayout needed), layer wrappers
# ---------------------------------------------------------------------------

def im2col(x, k, stride):
    """x: (N, C, H, W) -> patchesT (N, K=C*k*k, M=OH*OW), K ordered (c, kh, kw)."""
    N, C, H, W = x.shape
    OH = (H - k) // stride + 1
    OW = (W - k) // stride + 1
    cols = []
    for i in range(k):
        for j in range(k):
            cols.append(
                x[:, :,
                  i:i + stride * (OH - 1) + 1:stride,
                  j:j + stride * (OW - 1) + 1:stride])        # (N, C, OH, OW)
    col = jnp.stack(cols, axis=2)                             # (N, C, k*k, OH, OW)
    col = col.reshape(N, C * k * k, OH * OW)                  # (N, K, M)
    return col, OH, OW


def conv_layer(x, w, b, *, stride, mode):
    """Conv2d(k, stride, no padding) + fused epilogue via one Pallas call.

    Grid over images (parallel); per image the full (Cout, M) output tile is
    produced lane-dense and already C-major -> reshape straight to NCHW.
    """
    N, Cin, H, W = x.shape
    Cout, _, k, _ = w.shape
    patches, OH, OW = im2col(x, k, stride)                    # (N, K, M) f32
    K = Cin * k * k
    M = OH * OW

    p_bf = patches.astype(jnp.bfloat16)                       # bf16 GEMM inputs
    w_bf = w.reshape(Cout, K).astype(jnp.bfloat16)
    b2 = b.reshape(Cout, 1).astype(jnp.float32)

    out = pl.pallas_call(
        functools.partial(_conv_gemm_kernel, mode=mode, eps=1e-5),
        out_shape=jax.ShapeDtypeStruct((N, Cout, M), jnp.float32),
        grid=(N,),
        in_specs=[
            pl.BlockSpec((Cout, K), lambda n: (0, 0)),
            pl.BlockSpec((Cout, 1), lambda n: (0, 0)),
            pl.BlockSpec((None, K, M), lambda n: (n, 0, 0)),
        ],
        out_specs=pl.BlockSpec((None, Cout, M), lambda n: (n, 0, 0)),
        compiler_params=pltpu.CompilerParams(
            dimension_semantics=("parallel",)),
    )(w_bf, b2, p_bf)
    return out.reshape(N, Cout, OH, OW)


def conv_in_lrelu_plus_final(x, w, b, wf, bf):
    """Last middle layer (conv/IN/LReLU) fused with the final conv (whole-map
    4x4 stride-1 conv -> 1x1). Returns (feature NCHW, final (N,1,1,1))."""
    N, Cin, H, W = x.shape
    Cout, _, k, _ = w.shape
    kf = wf.shape[-1]
    patches, OH, OW = im2col(x, k, 2)
    assert OH == kf and OW == kf, "final conv must cover the whole map to fuse"
    K = Cin * k * k
    M = OH * OW

    p_bf = patches.astype(jnp.bfloat16)
    w_bf = w.reshape(Cout, K).astype(jnp.bfloat16)
    b2 = b.reshape(Cout, 1).astype(jnp.float32)
    wf2 = wf.reshape(Cout, kf * kf).astype(jnp.float32)       # f32 epilogue
    bf2 = bf.reshape(1, 1).astype(jnp.float32)

    feat, final = pl.pallas_call(
        functools.partial(_conv_in_final_kernel, eps=1e-5),
        out_shape=(jax.ShapeDtypeStruct((N, Cout, M), jnp.float32),
                   jax.ShapeDtypeStruct((N, 1, 1), jnp.float32)),
        grid=(N,),
        in_specs=[
            pl.BlockSpec((Cout, K), lambda n: (0, 0)),
            pl.BlockSpec((Cout, 1), lambda n: (0, 0)),
            pl.BlockSpec((Cout, kf * kf), lambda n: (0, 0)),
            pl.BlockSpec((1, 1), lambda n: (0, 0)),
            pl.BlockSpec((None, K, M), lambda n: (n, 0, 0)),
        ],
        out_specs=(pl.BlockSpec((None, Cout, M), lambda n: (n, 0, 0)),
                   pl.BlockSpec((None, 1, 1), lambda n: (n, 0, 0))),
        compiler_params=pltpu.CompilerParams(
            dimension_semantics=("parallel",)),
    )(w_bf, b2, wf2, bf2, p_bf)
    return feat.reshape(N, Cout, OH, OW), final.reshape(N, 1, 1, 1)


# ---------------------------------------------------------------------------
# Parameters (deterministic init + spectral norm transform)
# ---------------------------------------------------------------------------

def spectral_normalize(w, key, n_iter=1, eps=1e-12):
    """Power iteration (deterministic u) as nn.utils.spectral_norm does."""
    cout = w.shape[0]
    w_mat = w.reshape(cout, -1)
    u = jax.random.normal(key, (cout,), jnp.float32)
    u = u / (jnp.linalg.norm(u) + eps)
    v = None
    for _ in range(max(n_iter, 1)):
        v = w_mat.T @ u
        v = v / (jnp.linalg.norm(v) + eps)
        u = w_mat @ v
        u = u / (jnp.linalg.norm(u) + eps)
    sigma = u @ (w_mat @ v)
    return w / sigma


def make_conv_params(key, cin, cout, k):
    kw, kb, ku = jax.random.split(key, 3)
    fan_in = cin * k * k
    w = jax.random.normal(kw, (cout, cin, k, k), jnp.float32) / math.sqrt(fan_in)
    b = jax.random.normal(kb, (cout,), jnp.float32) * 0.01
    w = spectral_normalize(w, ku)        # sn=True: normalize weight (not bias)
    return w, b


def init_discriminator_params(key, in_channels, channels=8, num_layers=3):
    params = []
    keys = jax.random.split(key, num_layers + 2)
    params.append(make_conv_params(keys[0], in_channels, channels, 4))
    c = channels
    for i in range(num_layers):
        params.append(make_conv_params(keys[1 + i], c, 2 * c, 4))
        c *= 2
    params.append(make_conv_params(keys[-1], c, 1, 4))
    return params


# ---------------------------------------------------------------------------
# Forward (mirrors Discriminator.forward: returns (out[-1], out[:-1]))
# ---------------------------------------------------------------------------

def discriminator_forward(params, x):
    outs = []
    # layer 0: Conv(4, s=2) + LeakyReLU(0.2), fused
    w0, b0 = params[0]
    x = conv_layer(x, w0, b0, stride=2, mode="lrelu")
    outs.append(x)

    # middle layers except the last one: Conv(4, s=2) + IN + LReLU, fused
    for w, b in params[1:-2]:
        x = conv_layer(x, w, b, stride=2, mode="in_lrelu")
        outs.append(x)

    # last middle layer + final conv
    wm, bm = params[-2]
    wf, bf = params[-1]
    k = wm.shape[-1]
    kf = wf.shape[-1]
    oh_last = (x.shape[2] - k) // 2 + 1
    if oh_last == kf:
        # final 4x4 conv covers the whole remaining map: fold it in
        feat, final = conv_in_lrelu_plus_final(x, wm, bm, wf, bf)
        outs.append(feat)
        outs.append(final)
    else:
        x = conv_layer(x, wm, bm, stride=2, mode="in_lrelu")
        outs.append(x)
        x = conv_layer(x, wf, bf, stride=1, mode="none")
        outs.append(x)

    return outs[-1], outs[:-1]


# ---------------------------------------------------------------------------
# main
# ---------------------------------------------------------------------------

if __name__ == "__main__":
    key = jax.random.PRNGKey(0)
    k_x, k_p = jax.random.split(key)

    # image_size must allow 4 stride-2 k=4 convs + a final k=4 conv:
    # 94 -> 46 -> 22 -> 10 -> 4 -> 1.  Small width (channels=8) keeps it tiny.
    batch, in_channels, image_size = 2, 3, 94
    x = jax.random.normal(k_x, (batch, in_channels, image_size, image_size),
                          jnp.float32)

    params = init_discriminator_params(k_p, in_channels, channels=8,
                                       num_layers=3)

    fwd = jax.jit(discriminator_forward)
    final, feats = fwd(params, x)
    jax.block_until_ready((final, feats))

    # sanity checks on shapes implied by the PyTorch module
    assert final.shape == (batch, 1, 1, 1)
    expected = [(batch, 8, 46, 46), (batch, 16, 22, 22),
                (batch, 32, 10, 10), (batch, 64, 4, 4)]
    assert [tuple(f.shape) for f in feats] == expected
    assert bool(jnp.all(jnp.isfinite(final)))
    for f in feats:
        assert bool(jnp.all(jnp.isfinite(f)))

    print("KERNEL_OK")
</pallas_src>

<mosaic_0001>
module attributes {stable_mosaic.version = 11 : i64} {
  func.func @_conv_gemm_kernel(%arg0: i32, %arg1: memref<8x48xbf16, #tpu.memory_space<vmem>>, %arg2: memref<8x1xf32, #tpu.memory_space<vmem>>, %arg3: memref<1x48x2116xbf16, #tpu.memory_space<vmem>>, %arg4: memref<1x8x2116xf32, #tpu.memory_space<vmem>>) attributes {dimension_semantics = [#tpu.dimension_semantics<parallel>], iteration_bounds = array<i64: 2>, scalar_prefetch = 0 : i64, scratch_operands = 0 : i64, tpu.core_type = #tpu.core_type<tc>, window_params = [{pipeline_mode = #tpu.pipeline_mode<synchronous>, transform_indices = @transform_0, window_bounds = array<i64: 8, 48>}, {pipeline_mode = #tpu.pipeline_mode<synchronous>, transform_indices = @transform_1, window_bounds = array<i64: 8, 1>}, {transform_indices = @transform_2, window_bounds = array<i64: 1, 48, 2116>}, {transform_indices = @transform_3, window_bounds = array<i64: 1, 8, 2116>}]} {
    %c0 = arith.constant 0 : index
    %c0_0 = arith.constant 0 : index
    %0 = vector.load %arg1[%c0, %c0_0] : memref<8x48xbf16, #tpu.memory_space<vmem>>, vector<8x48xbf16>
    %c0_1 = arith.constant 0 : index
    %c0_2 = arith.constant 0 : index
    %c0_3 = arith.constant 0 : index
    %1 = vector.load %arg3[%c0_1, %c0_2, %c0_3] : memref<1x48x2116xbf16, #tpu.memory_space<vmem>>, vector<1x48x2116xbf16>
    %2 = vector.shape_cast %1 : vector<1x48x2116xbf16> to vector<48x2116xbf16>
    %cst = arith.constant dense<0.000000e+00> : vector<8x2116xf32>
    %3 = tpu.matmul %0, %2, %cst {dimension_numbers = #tpu.dot_dimension_numbers<[1], [0], [0], [1], [0, 0, 1, 1], [], []>} : vector<8x48xbf16>, vector<48x2116xbf16>, vector<8x2116xf32> -> vector<8x2116xf32>
    %c0_4 = arith.constant 0 : index
    %c0_5 = arith.constant 0 : index
    %4 = vector.load %arg2[%c0_4, %c0_5] : memref<8x1xf32, #tpu.memory_space<vmem>>, vector<8x1xf32>
    %5 = vector.broadcast %4 : vector<8x1xf32> to vector<8x2116xf32>
    %6 = arith.addf %3, %5 : vector<8x2116xf32>
    %cst_6 = arith.constant 0.000000e+00 : f32
    %7 = vector.broadcast %cst_6 : f32 to vector<8x2116xf32>
    %8 = arith.cmpf oge, %6, %7 : vector<8x2116xf32>
    %cst_7 = arith.constant 2.000000e-01 : f32
    %9 = vector.broadcast %cst_7 : f32 to vector<8x2116xf32>
    %10 = arith.mulf %9, %6 : vector<8x2116xf32>
    %11 = arith.select %8, %6, %10 : vector<8x2116xi1>, vector<8x2116xf32>
    %c0_8 = arith.constant 0 : index
    %c0_9 = arith.constant 0 : index
    %c0_10 = arith.constant 0 : index
    %12 = vector.load %arg4[%c0_8, %c0_9, %c0_10] : memref<1x8x2116xf32, #tpu.memory_space<vmem>>, vector<1x8x2116xf32>
    %13 = vector.shape_cast %12 : vector<1x8x2116xf32> to vector<8x2116xf32>
    %14 = vector.shape_cast %11 : vector<8x2116xf32> to vector<1x8x2116xf32>
    tpu.vector_store %arg4[%c0_8, %c0_9, %c0_10], %14 {strides = array<i32>} : memref<1x8x2116xf32, #tpu.memory_space<vmem>>, vector<1x8x2116xf32>,
    return
  }
  func.func @transform_0(%arg0: i32) -> (i32, i32) {
    %c0_i32 = arith.constant 0 : i32
    %c0_i32_0 = arith.constant 0 : i32
    %c0_i32_1 = arith.constant 0 : i32
    return %c0_i32, %c0_i32_0 : i32, i32
  }
  func.func @transform_1(%arg0: i32) -> (i32, i32) {
    %c0_i32 = arith.constant 0 : i32
    %c0_i32_0 = arith.constant 0 : i32
    %c0_i32_1 = arith.constant 0 : i32
    return %c0_i32, %c0_i32_0 : i32, i32
  }
  func.func @transform_2(%arg0: i32) -> (i32, i32, i32) {
    %c0_i32 = arith.constant 0 : i32
    %c0_i32_0 = arith.constant 0 : i32
    %c0_i32_1 = arith.constant 0 : i32
    return %arg0, %c0_i32, %c0_i32_0 : i32, i32, i32
  }
  func.func @transform_3(%arg0: i32) -> (i32, i32, i32) {
    %c0_i32 = arith.constant 0 : i32
    %c0_i32_0 = arith.constant 0 : i32
    %c0_i32_1 = arith.constant 0 : i32
    return %arg0, %c0_i32, %c0_i32_0 : i32, i32, i32
  }
}

module attributes {stable_mosaic.version = 11 : i64} {
  func.func @_conv_gemm_kernel(%arg0: i32, %arg1: memref<16x128xbf16, #tpu.memory_space<vmem>>, %arg2: memref<16x1xf32, #tpu.memory_space<vmem>>, %arg3: memref<1x128x484xbf16, #tpu.memory_space<vmem>>, %arg4: memref<1x16x484xf32, #tpu.memory_space<vmem>>) attributes {dimension_semantics = [#tpu.dimension_semantics<parallel>], iteration_bounds = array<i64: 2>, scalar_prefetch = 0 : i64, scratch_operands = 0 : i64, tpu.core_type = #tpu.core_type<tc>, window_params = [{pipeline_mode = #tpu.pipeline_mode<synchronous>, transform_indices = @transform_0, window_bounds = array<i64: 16, 128>}, {pipeline_mode = #tpu.pipeline_mode<synchronous>, transform_indices = @transform_1, window_bounds = array<i64: 16, 1>}, {transform_indices = @transform_2, window_bounds = array<i64: 1, 128, 484>}, {transform_indices = @transform_3, window_bounds = array<i64: 1, 16, 484>}]} {
    %c0 = arith.constant 0 : index
    %c0_0 = arith.constant 0 : index
    %0 = vector.load %arg1[%c0, %c0_0] : memref<16x128xbf16, #tpu.memory_space<vmem>>, vector<16x128xbf16>
    %c0_1 = arith.constant 0 : index
    %c0_2 = arith.constant 0 : index
    %c0_3 = arith.constant 0 : index
    %1 = vector.load %arg3[%c0_1, %c0_2, %c0_3] : memref<1x128x484xbf16, #tpu.memory_space<vmem>>, vector<1x128x484xbf16>
    %2 = vector.shape_cast %1 : vector<1x128x484xbf16> to vector<128x484xbf16>
    %cst = arith.constant dense<0.000000e+00> : vector<16x484xf32>
    %3 = tpu.matmul %0, %2, %cst {dimension_numbers = #tpu.dot_dimension_numbers<[1], [0], [0], [1], [0, 0, 1, 1], [], []>} : vector<16x128xbf16>, vector<128x484xbf16>, vector<16x484xf32> -> vector<16x484xf32>
    %c0_4 = arith.constant 0 : index
    %c0_5 = arith.constant 0 : index
    %4 = vector.load %arg2[%c0_4, %c0_5] : memref<16x1xf32, #tpu.memory_space<vmem>>, vector<16x1xf32>
    %5 = vector.broadcast %4 : vector<16x1xf32> to vector<16x484xf32>
    %6 = arith.addf %3, %5 : vector<16x484xf32>
    %cst_6 = arith.constant dense<0.000000e+00> : vector<16xf32>
    %7 = vector.multi_reduction <add>, %6, %cst_6 [1] : vector<16x484xf32> to vector<16xf32>
    %8 = vector.shape_cast %7 : vector<16xf32> to vector<16x1xf32>
    %cst_7 = arith.constant 4.840000e+02 : f32
    %9 = vector.broadcast %cst_7 : f32 to vector<16x1xf32>
    %10 = arith.divf %8, %9 : vector<16x1xf32>
    %11 = vector.broadcast %10 : vector<16x1xf32> to vector<16x484xf32>
    %12 = arith.subf %6, %11 : vector<16x484xf32>
    %13 = arith.mulf %12, %12 : vector<16x484xf32>
    %cst_8 = arith.constant dense<0.000000e+00> : vector<16xf32>
    %14 = vector.multi_reduction <add>, %13, %cst_8 [1] : vector<16x484xf32> to vector<16xf32>
    %15 = vector.shape_cast %14 : vector<16xf32> to vector<16x1xf32>
    %cst_9 = arith.constant 4.840000e+02 : f32
    %16 = vector.broadcast %cst_9 : f32 to vector<16x1xf32>
    %17 = arith.divf %15, %16 : vector<16x1xf32>
    %cst_10 = arith.constant 9.99999974E-6 : f32
    %18 = vector.broadcast %cst_10 : f32 to vector<16x1xf32>
    %19 = arith.addf %17, %18 : vector<16x1xf32>
    %20 = math.rsqrt %19 : vector<16x1xf32>
    %21 = vector.broadcast %20 : vector<16x1xf32> to vector<16x484xf32>
    %22 = arith.mulf %12, %21 : vector<16x484xf32>
    %cst_11 = arith.constant 0.000000e+00 : f32
    %23 = vector.broadcast %cst_11 : f32 to vector<16x484xf32>
    %24 = arith.cmpf oge, %22, %23 : vector<16x484xf32>
    %cst_12 = arith.constant 2.000000e-01 : f32
    %25 = vector.broadcast %cst_12 : f32 to vector<16x484xf32>
    %26 = arith.mulf %25, %22 : vector<16x484xf32>
    %27 = arith.select %24, %22, %26 : vector<16x484xi1>, vector<16x484xf32>
    %c0_13 = arith.constant 0 : index
    %c0_14 = arith.constant 0 : index
    %c0_15 = arith.constant 0 : index
    %28 = vector.load %arg4[%c0_13, %c0_14, %c0_15] : memref<1x16x484xf32, #tpu.memory_space<vmem>>, vector<1x16x484xf32>
    %29 = vector.shape_cast %28 : vector<1x16x484xf32> to vector<16x484xf32>
    %30 = vector.shape_cast %27 : vector<16x484xf32> to vector<1x16x484xf32>
    tpu.vector_store %arg4[%c0_13, %c0_14, %c0_15], %30 {strides = array<i32>} : memref<1x16x484xf32, #tpu.memory_space<vmem>>, vector<1x16x484xf32>,
    return
  }
  func.func @transform_0(%arg0: i32) -> (i32, i32) {
    %c0_i32 = arith.constant 0 : i32
    %c0_i32_0 = arith.constant 0 : i32
    %c0_i32_1 = arith.constant 0 : i32
    return %c0_i32, %c0_i32_0 : i32, i32
  }
  func.func @transform_1(%arg0: i32) -> (i32, i32) {
    %c0_i32 = arith.constant 0 : i32
    %c0_i32_0 = arith.constant 0 : i32
    %c0_i32_1 = arith.constant 0 : i32
    return %c0_i32, %c0_i32_0 : i32, i32
  }
  func.func @transform_2(%arg0: i32) -> (i32, i32, i32) {
    %c0_i32 = arith.constant 0 : i32
    %c0_i32_0 = arith.constant 0 : i32
    %c0_i32_1 = arith.constant 0 : i32
    return %arg0, %c0_i32, %c0_i32_0 : i32, i32, i32
  }
  func.func @transform_3(%arg0: i32) -> (i32, i32, i32) {
    %c0_i32 = arith.constant 0 : i32
    %c0_i32_0 = arith.constant 0 : i32
    %c0_i32_1 = arith.constant 0 : i32
    return %arg0, %c0_i32, %c0_i32_0 : i32, i32, i32
  }
}

module attributes {stable_mosaic.version = 11 : i64} {
  func.func @_conv_gemm_kernel(%arg0: i32, %arg1: memref<32x256xbf16, #tpu.memory_space<vmem>>, %arg2: memref<32x1xf32, #tpu.memory_space<vmem>>, %arg3: memref<1x256x100xbf16, #tpu.memory_space<vmem>>, %arg4: memref<1x32x100xf32, #tpu.memory_space<vmem>>) attributes {dimension_semantics = [#tpu.dimension_semantics<parallel>], iteration_bounds = array<i64: 2>, scalar_prefetch = 0 : i64, scratch_operands = 0 : i64, tpu.core_type = #tpu.core_type<tc>, window_params = [{pipeline_mode = #tpu.pipeline_mode<synchronous>, transform_indices = @transform_0, window_bounds = array<i64: 32, 256>}, {pipeline_mode = #tpu.pipeline_mode<synchronous>, transform_indices = @transform_1, window_bounds = array<i64: 32, 1>}, {transform_indices = @transform_2, window_bounds = array<i64: 1, 256, 100>}, {transform_indices = @transform_3, window_bounds = array<i64: 1, 32, 100>}]} {
    %c0 = arith.constant 0 : index
    %c0_0 = arith.constant 0 : index
    %0 = vector.load %arg1[%c0, %c0_0] : memref<32x256xbf16, #tpu.memory_space<vmem>>, vector<32x256xbf16>
    %c0_1 = arith.constant 0 : index
    %c0_2 = arith.constant 0 : index
    %c0_3 = arith.constant 0 : index
    %1 = vector.load %arg3[%c0_1, %c0_2, %c0_3] : memref<1x256x100xbf16, #tpu.memory_space<vmem>>, vector<1x256x100xbf16>
    %2 = vector.shape_cast %1 : vector<1x256x100xbf16> to vector<256x100xbf16>
    %cst = arith.constant dense<0.000000e+00> : vector<32x100xf32>
    %3 = tpu.matmul %0, %2, %cst {dimension_numbers = #tpu.dot_dimension_numbers<[1], [0], [0], [1], [0, 0, 1, 1], [], []>} : vector<32x256xbf16>, vector<256x100xbf16>, vector<32x100xf32> -> vector<32x100xf32>
    %c0_4 = arith.constant 0 : index
    %c0_5 = arith.constant 0 : index
    %4 = vector.load %arg2[%c0_4, %c0_5] : memref<32x1xf32, #tpu.memory_space<vmem>>, vector<32x1xf32>
    %5 = vector.broadcast %4 : vector<32x1xf32> to vector<32x100xf32>
    %6 = arith.addf %3, %5 : vector<32x100xf32>
    %cst_6 = arith.constant dense<0.000000e+00> : vector<32xf32>
    %7 = vector.multi_reduction <add>, %6, %cst_6 [1] : vector<32x100xf32> to vector<32xf32>
    %8 = vector.shape_cast %7 : vector<32xf32> to vector<32x1xf32>
    %cst_7 = arith.constant 1.000000e+02 : f32
    %9 = vector.broadcast %cst_7 : f32 to vector<32x1xf32>
    %10 = arith.divf %8, %9 : vector<32x1xf32>
    %11 = vector.broadcast %10 : vector<32x1xf32> to vector<32x100xf32>
    %12 = arith.subf %6, %11 : vector<32x100xf32>
    %13 = arith.mulf %12, %12 : vector<32x100xf32>
    %cst_8 = arith.constant dense<0.000000e+00> : vector<32xf32>
    %14 = vector.multi_reduction <add>, %13, %cst_8 [1] : vector<32x100xf32> to vector<32xf32>
    %15 = vector.shape_cast %14 : vector<32xf32> to vector<32x1xf32>
    %cst_9 = arith.constant 1.000000e+02 : f32
    %16 = vector.broadcast %cst_9 : f32 to vector<32x1xf32>
    %17 = arith.divf %15, %16 : vector<32x1xf32>
    %cst_10 = arith.constant 9.99999974E-6 : f32
    %18 = vector.broadcast %cst_10 : f32 to vector<32x1xf32>
    %19 = arith.addf %17, %18 : vector<32x1xf32>
    %20 = math.rsqrt %19 : vector<32x1xf32>
    %21 = vector.broadcast %20 : vector<32x1xf32> to vector<32x100xf32>
    %22 = arith.mulf %12, %21 : vector<32x100xf32>
    %cst_11 = arith.constant 0.000000e+00 : f32
    %23 = vector.broadcast %cst_11 : f32 to vector<32x100xf32>
    %24 = arith.cmpf oge, %22, %23 : vector<32x100xf32>
    %cst_12 = arith.constant 2.000000e-01 : f32
    %25 = vector.broadcast %cst_12 : f32 to vector<32x100xf32>
    %26 = arith.mulf %25, %22 : vector<32x100xf32>
    %27 = arith.select %24, %22, %26 : vector<32x100xi1>, vector<32x100xf32>
    %c0_13 = arith.constant 0 : index
    %c0_14 = arith.constant 0 : index
    %c0_15 = arith.constant 0 : index
    %28 = vector.load %arg4[%c0_13, %c0_14, %c0_15] : memref<1x32x100xf32, #tpu.memory_space<vmem>>, vector<1x32x100xf32>
    %29 = vector.shape_cast %28 : vector<1x32x100xf32> to vector<32x100xf32>
    %30 = vector.shape_cast %27 : vector<32x100xf32> to vector<1x32x100xf32>
    tpu.vector_store %arg4[%c0_13, %c0_14, %c0_15], %30 {strides = array<i32>} : memref<1x32x100xf32, #tpu.memory_space<vmem>>, vector<1x32x100xf32>,
    return
  }
  func.func @transform_0(%arg0: i32) -> (i32, i32) {
    %c0_i32 = arith.constant 0 : i32
    %c0_i32_0 = arith.constant 0 : i32
    %c0_i32_1 = arith.constant 0 : i32
    return %c0_i32, %c0_i32_0 : i32, i32
  }
  func.func @transform_1(%arg0: i32) -> (i32, i32) {
    %c0_i32 = arith.constant 0 : i32
    %c0_i32_0 = arith.constant 0 : i32
    %c0_i32_1 = arith.constant 0 : i32
    return %c0_i32, %c0_i32_0 : i32, i32
  }
  func.func @transform_2(%arg0: i32) -> (i32, i32, i32) {
    %c0_i32 = arith.constant 0 : i32
    %c0_i32_0 = arith.constant 0 : i32
    %c0_i32_1 = arith.constant 0 : i32
    return %arg0, %c0_i32, %c0_i32_0 : i32, i32, i32
  }
  func.func @transform_3(%arg0: i32) -> (i32, i32, i32) {
    %c0_i32 = arith.constant 0 : i32
    %c0_i32_0 = arith.constant 0 : i32
    %c0_i32_1 = arith.constant 0 : i32
    return %arg0, %c0_i32, %c0_i32_0 : i32, i32, i32
  }
}

module attributes {stable_mosaic.version = 11 : i64} {
  func.func @_conv_in_final_kernel(%arg0: i32, %arg1: memref<64x512xbf16, #tpu.memory_space<vmem>>, %arg2: memref<64x1xf32, #tpu.memory_space<vmem>>, %arg3: memref<64x16xf32, #tpu.memory_space<vmem>>, %arg4: memref<1x1xf32, #tpu.memory_space<vmem>>, %arg5: memref<1x512x16xbf16, #tpu.memory_space<vmem>>, %arg6: memref<1x64x16xf32, #tpu.memory_space<vmem>>, %arg7: memref<1x1x1xf32, #tpu.memory_space<vmem>>) attributes {dimension_semantics = [#tpu.dimension_semantics<parallel>], iteration_bounds = array<i64: 2>, scalar_prefetch = 0 : i64, scratch_operands = 0 : i64, tpu.core_type = #tpu.core_type<tc>, window_params = [{pipeline_mode = #tpu.pipeline_mode<synchronous>, transform_indices = @transform_0, window_bounds = array<i64: 64, 512>}, {pipeline_mode = #tpu.pipeline_mode<synchronous>, transform_indices = @transform_1, window_bounds = array<i64: 64, 1>}, {pipeline_mode = #tpu.pipeline_mode<synchronous>, transform_indices = @transform_2, window_bounds = array<i64: 64, 16>}, {pipeline_mode = #tpu.pipeline_mode<synchronous>, transform_indices = @transform_3, window_bounds = array<i64: 1, 1>}, {transform_indices = @transform_4, window_bounds = array<i64: 1, 512, 16>}, {transform_indices = @transform_5, window_bounds = array<i64: 1, 64, 16>}, {transform_indices = @transform_6, window_bounds = array<i64: 1, 1, 1>}]} {
    %c0 = arith.constant 0 : index
    %c0_0 = arith.constant 0 : index
    %0 = vector.load %arg1[%c0, %c0_0] : memref<64x512xbf16, #tpu.memory_space<vmem>>, vector<64x512xbf16>
    %c0_1 = arith.constant 0 : index
    %c0_2 = arith.constant 0 : index
    %c0_3 = arith.constant 0 : index
    %1 = vector.load %arg5[%c0_1, %c0_2, %c0_3] : memref<1x512x16xbf16, #tpu.memory_space<vmem>>, vector<1x512x16xbf16>
    %2 = vector.shape_cast %1 : vector<1x512x16xbf16> to vector<512x16xbf16>
    %cst = arith.constant dense<0.000000e+00> : vector<64x16xf32>
    %3 = tpu.matmul %0, %2, %cst {dimension_numbers = #tpu.dot_dimension_numbers<[1], [0], [0], [1], [0, 0, 1, 1], [], []>} : vector<64x512xbf16>, vector<512x16xbf16>, vector<64x16xf32> -> vector<64x16xf32>
    %c0_4 = arith.constant 0 : index
    %c0_5 = arith.constant 0 : index
    %4 = vector.load %arg2[%c0_4, %c0_5] : memref<64x1xf32, #tpu.memory_space<vmem>>, vector<64x1xf32>
    %5 = vector.broadcast %4 : vector<64x1xf32> to vector<64x16xf32>
    %6 = arith.addf %3, %5 : vector<64x16xf32>
    %cst_6 = arith.constant dense<0.000000e+00> : vector<64xf32>
    %7 = vector.multi_reduction <add>, %6, %cst_6 [1] : vector<64x16xf32> to vector<64xf32>
    %8 = vector.shape_cast %7 : vector<64xf32> to vector<64x1xf32>
    %cst_7 = arith.constant 1.600000e+01 : f32
    %9 = vector.broadcast %cst_7 : f32 to vector<64x1xf32>
    %10 = arith.divf %8, %9 : vector<64x1xf32>
    %11 = vector.broadcast %10 : vector<64x1xf32> to vector<64x16xf32>
    %12 = arith.subf %6, %11 : vector<64x16xf32>
    %13 = arith.mulf %12, %12 : vector<64x16xf32>
    %cst_8 = arith.constant dense<0.000000e+00> : vector<64xf32>
    %14 = vector.multi_reduction <add>, %13, %cst_8 [1] : vector<64x16xf32> to vector<64xf32>
    %15 = vector.shape_cast %14 : vector<64xf32> to vector<64x1xf32>
    %cst_9 = arith.constant 1.600000e+01 : f32
    %16 = vector.broadcast %cst_9 : f32 to vector<64x1xf32>
    %17 = arith.divf %15, %16 : vector<64x1xf32>
    %cst_10 = arith.constant 9.99999974E-6 : f32
    %18 = vector.broadcast %cst_10 : f32 to vector<64x1xf32>
    %19 = arith.addf %17, %18 : vector<64x1xf32>
    %20 = math.rsqrt %19 : vector<64x1xf32>
    %21 = vector.broadcast %20 : vector<64x1xf32> to vector<64x16xf32>
    %22 = arith.mulf %12, %21 : vector<64x16xf32>
    %cst_11 = arith.constant 0.000000e+00 : f32
    %23 = vector.broadcast %cst_11 : f32 to vector<64x16xf32>
    %24 = arith.cmpf oge, %22, %23 : vector<64x16xf32>
    %cst_12 = arith.constant 2.000000e-01 : f32
    %25 = vector.broadcast %cst_12 : f32 to vector<64x16xf32>
    %26 = arith.mulf %25, %22 : vector<64x16xf32>
    %27 = arith.select %24, %22, %26 : vector<64x16xi1>, vector<64x16xf32>
    %c0_13 = arith.constant 0 : index
    %c0_14 = arith.constant 0 : index
    %c0_15 = arith.constant 0 : index
    %28 = vector.load %arg6[%c0_13, %c0_14, %c0_15] : memref<1x64x16xf32, #tpu.memory_space<vmem>>, vector<1x64x16xf32>
    %29 = vector.shape_cast %28 : vector<1x64x16xf32> to vector<64x16xf32>
    %30 = vector.shape_cast %27 : vector<64x16xf32> to vector<1x64x16xf32>
    tpu.vector_store %arg6[%c0_13, %c0_14, %c0_15], %30 {strides = array<i32>} : memref<1x64x16xf32, #tpu.memory_space<vmem>>, vector<1x64x16xf32>,
    %c0_16 = arith.constant 0 : index
    %c0_17 = arith.constant 0 : index
    %31 = vector.load %arg3[%c0_16, %c0_17] : memref<64x16xf32, #tpu.memory_space<vmem>>, vector<64x16xf32>
    %32 = arith.mulf %27, %31 : vector<64x16xf32>
    %cst_18 = arith.constant dense<0.000000e+00> : vector<64xf32>
    %33 = vector.multi_reduction <add>, %32, %cst_18 [1] : vector<64x16xf32> to vector<64xf32>
    %34 = vector.shape_cast %33 : vector<64xf32> to vector<64x1xf32>
    %cst_19 = arith.constant dense<0.000000e+00> : vector<1xf32>
    %35 = vector.multi_reduction <add>, %34, %cst_19 [0] : vector<64x1xf32> to vector<1xf32>
    %36 = vector.shape_cast %35 : vector<1xf32> to vector<1x1xf32>
    %c0_20 = arith.constant 0 : index
    %c0_21 = arith.constant 0 : index
    %37 = vector.load %arg4[%c0_20, %c0_21] : memref<1x1xf32, #tpu.memory_space<vmem>>, vector<1x1xf32>
    %38 = arith.addf %36, %37 : vector<1x1xf32>
    %c0_22 = arith.constant 0 : index
    %c0_23 = arith.constant 0 : index
    %c0_24 = arith.constant 0 : index
    %39 = vector.load %arg7[%c0_22, %c0_23, %c0_24] : memref<1x1x1xf32, #tpu.memory_space<vmem>>, vector<1x1x1xf32>
    %40 = vector.shape_cast %39 : vector<1x1x1xf32> to vector<1x1xf32>
    %41 = vector.shape_cast %38 : vector<1x1xf32> to vector<1x1x1xf32>
    tpu.vector_store %arg7[%c0_22, %c0_23, %c0_24], %41 {strides = array<i32>} : memref<1x1x1xf32, #tpu.memory_space<vmem>>, vector<1x1x1xf32>,
    return
  }
  func.func @transform_0(%arg0: i32) -> (i32, i32) {
    %c0_i32 = arith.constant 0 : i32
    %c0_i32_0 = arith.constant 0 : i32
    %c0_i32_1 = arith.constant 0 : i32
    return %c0_i32, %c0_i32_0 : i32, i32
  }
  func.func @transform_1(%arg0: i32) -> (i32, i32) {
    %c0_i32 = arith.constant 0 : i32
    %c0_i32_0 = arith.constant 0 : i32
    %c0_i32_1 = arith.constant 0 : i32
    return %c0_i32, %c0_i32_0 : i32, i32
  }
  func.func @transform_2(%arg0: i32) -> (i32, i32) {
    %c0_i32 = arith.constant 0 : i32
    %c0_i32_0 = arith.constant 0 : i32
    %c0_i32_1 = arith.constant 0 : i32
    return %c0_i32, %c0_i32_0 : i32, i32
  }
  func.func @transform_3(%arg0: i32) -> (i32, i32) {
    %c0_i32 = arith.constant 0 : i32
    %c0_i32_0 = arith.constant 0 : i32
    %c0_i32_1 = arith.constant 0 : i32
    return %c0_i32, %c0_i32_0 : i32, i32
  }
  func.func @transform_4(%arg0: i32) -> (i32, i32, i32) {
    %c0_i32 = arith.constant 0 : i32
    %c0_i32_0 = arith.constant 0 : i32
    %c0_i32_1 = arith.constant 0 : i32
    return %arg0, %c0_i32, %c0_i32_0 : i32, i32, i32
  }
  func.func @transform_5(%arg0: i32) -> (i32, i32, i32) {
    %c0_i32 = arith.constant 0 : i32
    %c0_i32_0 = arith.constant 0 : i32
    %c0_i32_1 = arith.constant 0 : i32
    return %arg0, %c0_i32, %c0_i32_0 : i32, i32, i32
  }
  func.func @transform_6(%arg0: i32) -> (i32, i32, i32) {
    %c0_i32 = arith.constant 0 : i32
    %c0_i32_0 = arith.constant 0 : i32
    %c0_i32_1 = arith.constant 0 : i32
    return %arg0, %c0_i32, %c0_i32_0 : i32, i32, i32
  }
}

</mosaic_0001>

<llo_original>
// kernel: discriminator_forward.4
$region0: #{discriminator_forward.4}
  #allocation0 [shape = 'u32[]', space=smem, size = 0x4, offset = 0x4, fixed_abs, tag = 'smem constant byte address 0x4 - core index']
  #allocation1 [shape = 'u32[144,128]{1,0:T(1,128)}', space=vmem, size = 0x12000, scoped, tag = 'internal scratch']
  %s0 = inlined_call_operand.vmem [shape: bf16[8,48], index: 0, kind: input, shape index: {}]
  %s1 = inlined_call_operand.vmem [shape: f32[8,1], index: 1, kind: input, shape index: {}]
  %s2 = inlined_call_operand.vmem [shape: bf16[2,48,2116], index: 2, kind: input, shape index: {}]
  %s3 = inlined_call_operand.vmem [shape: f32[2,8,2116], index: 3, kind: output, shape index: {}]
  %s4 = sld [smem:[#allocation0]]
  $region45: #{discriminator_forward.4} parent=0
    _
  %s6 = ssub.s32 1, %s4
  %s7 = scalar_select 0, %s6, %s4
  loop: start=0, step=1, limit=4
  $region2: #{discriminator_forward.4} parent=0 // loop_pre_header
    _
  $region3: #{discriminator_forward.4} parent=0 // loop_header
    %s9 = sphi 0, %s13
    %p10 = scmp.ge.s32.totalorder %s9, 4
    %s17 = sphi 0, %s17
    %s19 = sphi 0, %s17
    %s20 = sphi 0, %s19
    %s34 = sphi 0, %s20
    %s38 = sphi 0, %s38
    %s40 = sphi 0, %s38
    %s41 = sphi 0, %s40
    %s55 = sphi 0, %s41
    %s61 = sphi 0, %s63
    %s64 = sphi 0, %s61
    %s65 = sphi 0, %s64
    %s81 = sphi 0, %s65
    %s87 = sphi 0, %s89
    %s90 = sphi 0, %s87
    %s91 = sphi 0, %s90
    %s107 = sphi 0, %s91
  $region4: #{discriminator_forward.4} parent=0 // loop_header_branch
    %12 = sbr.rel (%p10) target = $region8
  $region5: #{discriminator_forward.4} parent=0 // loop_body
    %s14 = ssub.s32 %s9, 1
    %s15 = ssub.s32 %s9, 2
    %s16 = sadd.s32 %s9, 1
    %s18 = sadd.s32 %s17, 1
    %p21 = scmp.eq.s32.totalorder %s9, 1
    %p22 = scmp.ne.s32.totalorder %s17, %s19
    %p23 = scmp.eq.s32.totalorder %s9, 0
    %p24 = por %p22, %p23
    %p25 = scmp.ne.s32.totalorder %s17, %s19
    %p26 = scmp.eq.s32.totalorder %s14, 1
    %p27 = por %p25, %p26
    %p28 = scmp.ne.s32.totalorder %s19, %s20
    %p29 = scmp.eq.s32.totalorder %s14, 0
    %p30 = por %p28, %p29
    %p31 = scmp.ne.s32.totalorder %s19, %s20
    %p32 = scmp.eq.s32.totalorder %s15, 1
    %p33 = por %p31, %p32
    %p35 = scmp.ne.s32.totalorder %s20, %s34
    %p36 = scmp.eq.s32.totalorder %s15, 0
    %p37 = por %p35, %p36
    %s39 = sadd.s32 %s38, 1
    %p42 = scmp.eq.s32.totalorder %s9, 1
    %p43 = scmp.ne.s32.totalorder %s38, %s40
    %p44 = scmp.eq.s32.totalorder %s9, 0
    %p45 = por %p43, %p44
    %p46 = scmp.ne.s32.totalorder %s38, %s40
    %p47 = scmp.eq.s32.totalorder %s14, 1
    %p48 = por %p46, %p47
    %p49 = scmp.ne.s32.totalorder %s40, %s41
    %p50 = scmp.eq.s32.totalorder %s14, 0
    %p51 = por %p49, %p50
    %p52 = scmp.ne.s32.totalorder %s40, %s41
    %p53 = scmp.eq.s32.totalorder %s15, 1
    %p54 = por %p52, %p53
    %p56 = scmp.ne.s32.totalorder %s41, %s55
    %p57 = scmp.eq.s32.totalorder %s15, 0
    %p58 = por %p56, %p57
    %s59 = ssub.s32 %s9, %s16
    %p60 = scmp.eq.s32.totalorder %s59, 0
    %s62 = sadd.s32 %s61, 1
    %s63 = scalar_select %p60, %s61, %s62
    %p66 = pneg %p60
    %p67 = scmp.eq.s32.totalorder %s9, 1
    %p68 = por %p66, %p67
    %p69 = scmp.ne.s32.totalorder %s61, %s64
    %p70 = scmp.eq.s32.totalorder %s9, 0
    %p71 = por %p69, %p70
    %p72 = scmp.ne.s32.totalorder %s61, %s64
    %p73 = scmp.eq.s32.totalorder %s14, 1
    %p74 = por %p72, %p73
    %p75 = scmp.ne.s32.totalorder %s64, %s65
    %p76 = scmp.eq.s32.totalorder %s14, 0
    %p77 = por %p75, %p76
    %p78 = scmp.ne.s32.totalorder %s64, %s65
    %p79 = scmp.eq.s32.totalorder %s15, 1
    %p80 = por %p78, %p79
    %p82 = scmp.ne.s32.totalorder %s65, %s81
    %p83 = scmp.eq.s32.totalorder %s15, 0
    %p84 = por %p82, %p83
    %s85 = ssub.s32 %s9, %s16
    %p86 = scmp.eq.s32.totalorder %s85, 0
    %s88 = sadd.s32 %s87, 1
    %s89 = scalar_select %p86, %s87, %s88
    %p92 = pneg %p86
    %p93 = scmp.eq.s32.totalorder %s9, 1
    %p94 = por %p92, %p93
    %p95 = scmp.ne.s32.totalorder %s87, %s90
    %p96 = scmp.eq.s32.totalorder %s9, 0
    %p97 = por %p95, %p96
    %p98 = scmp.ne.s32.totalorder %s87, %s90
    %p99 = scmp.eq.s32.totalorder %s14, 1
    %p100 = por %p98, %p99
    %p101 = scmp.ne.s32.totalorder %s90, %s91
    %p102 = scmp.eq.s32.totalorder %s14, 0
    %p103 = por %p101, %p102
    %p104 = scmp.ne.s32.totalorder %s90, %s91
    %p105 = scmp.eq.s32.totalorder %s15, 1
    %p106 = por %p104, %p105
    %p108 = scmp.ne.s32.totalorder %s91, %s107
    %p109 = scmp.eq.s32.totalorder %s15, 0
    %p110 = por %p108, %p109
    %p111 = scmp.le.s32.totalorder 1, %s9
    %p112 = scmp.lt.s32.totalorder %s9, 3
    %p113 = pnand %p111, %p112
    %p114 = pneg %p113
    // Predicated region
    $region9: #{discriminator_forward.4} parent=5 // pred_check
      _
    $region10: #{discriminator_forward.4} parent=5 // pred_check_branch
      %116 = sbr.rel (%p113) target = $region12
    $region11: #{discriminator_forward.4} parent=5 // pred_region
      %s117 = ssub.s32 %s9, 1
      // Predicated region
      $region13: #{discriminator_forward.4} parent=11 // pred_check
        %p118 = pneg %p30
      $region14: #{discriminator_forward.4} parent=11 // pred_check_branch
        %120 = sbr.rel (%p118) target = $region16
      $region15: #{discriminator_forward.4} parent=11 // pred_region
        _
      $region16: #{discriminator_forward.4} parent=11 // pred_fallthru
        _
      // Predicated region
      $region17: #{discriminator_forward.4} parent=11 // pred_check
        %p121 = pneg %p51
      $region18: #{discriminator_forward.4} parent=11 // pred_check_branch
        %123 = sbr.rel (%p121) target = $region20
      $region19: #{discriminator_forward.4} parent=11 // pred_region
        _
      $region20: #{discriminator_forward.4} parent=11 // pred_fallthru
        _
    $region12: #{discriminator_forward.4} parent=5 // pred_fallthru
      _
    %p124 = scmp.lt.s32.totalorder %s9, 2
    // Predicated region
    $region21: #{discriminator_forward.4} parent=5 // pred_check
      %p125 = pneg %p124
    $region22: #{discriminator_forward.4} parent=5 // pred_check_branch
      %127 = sbr.rel (%p125) target = $region24
    $region23: #{discriminator_forward.4} parent=5 // pred_region
      // Predicated region
      $region25: #{discriminator_forward.4} parent=23 // pred_check
        %p128 = pneg %p71
      $region26: #{discriminator_forward.4} parent=23 // pred_check_branch
        %130 = sbr.rel (%p128) target = $region28
      $region27: #{discriminator_forward.4} parent=23 // pred_region
        %p131 = scmp.lt.s32.totalorder %s9, 1
        %s132 = scalar_select %p131, %s9, 1
        %s133 = smul.addr %s132, 102
        %s134 = smul.addr %s133, 4
        %s135 = scalar_lea.vmem %s2, %s134
      $region28: #{discriminator_forward.4} parent=23 // pred_fallthru
        _
    $region24: #{discriminator_forward.4} parent=5 // pred_fallthru
      _
    %p136 = scmp.le.s32.totalorder 1, %s9
    %p137 = scmp.lt.s32.totalorder %s9, 3
    %p138 = pnand %p136, %p137
    %p139 = pneg %p138
    // Predicated region
    $region29: #{discriminator_forward.4} parent=5 // pred_check
      _
    $region30: #{discriminator_forward.4} parent=5 // pred_check_branch
      %141 = sbr.rel (%p138) target = $region32
    $region31: #{discriminator_forward.4} parent=5 // pred_region
      %s142 = ssub.s32 %s9, 1
      %p143 = pneg %p30
      %p144 = pneg %p27
      %p145 = pneg %p51
      %p146 = pneg %p48
      %p147 = scmp.lt.s32.totalorder %s14, 1
      %s148 = scalar_select %p147, %s14, 1
      %s149 = smul.addr %s148, 102
      %s150 = smul.addr %s149, 4
      %s151 = scalar_lea.vmem %s2, %s150
      %p152 = pneg %p77
      %p153 = pneg %p74
      %p154 = pneg %p103
      %p155 = pneg %p100
      %p156 = scmp.lt.s32.totalorder %s14, 1
      %s157 = scalar_select %p156, %s14, 1
      %s158 = smul.addr %s157, 17
      %s159 = smul.addr %s158, 8
      %s160 = scalar_lea.vmem %s3, %s159
      %p161 = scmp.lt.s32.totalorder %s14, 1
      %s162 = scalar_select %p161, %s14, 1
      %s163 = smul.addr %s162, 102
      %s164 = smul.addr %s163, 4
      %s165 = scalar_lea.vmem %s2, %s164
      %p166 = scmp.lt.s32.totalorder %s14, 1
      %s167 = scalar_select %p166, %s14, 1
      %s168 = smul.addr %s167, 17
      %s169 = smul.addr %s168, 8
      %s170 = scalar_lea.vmem %s3, %s169
      %v172 = vld [vmem:[%s0] sm:$0xf]
      %v173 = vld [vmem:[%s165] sm:$0xff]
      %v174 = vld [vmem:[%s165 + $0x8] sm:$0xff]
      %v175 = vld [vmem:[%s165 + $0x10] sm:$0xff]
      %v176 = vld [vmem:[%s165 + $0x18] sm:$0xff]
      %v177 = vld [vmem:[%s165 + $0x20] sm:$0xff]
      %v178 = vld [vmem:[%s165 + $0x28] sm:$0xff]
      %v179 = vld [vmem:[%s165 + $0x30] sm:$0xff]
      %v180 = vld [vmem:[%s165 + $0x38] sm:$0xff]
      %v181 = vld [vmem:[%s165 + $0x40] sm:$0xf]
      %v182 = vld [vmem:[%s165 + $0x44] sm:$0xff]
      %v183 = vld [vmem:[%s165 + $0x4c] sm:$0xff]
      %v184 = vld [vmem:[%s165 + $0x54] sm:$0xff]
      %v185 = vld [vmem:[%s165 + $0x5c] sm:$0xff]
      %v186 = vld [vmem:[%s165 + $0x64] sm:$0xff]
      %v187 = vld [vmem:[%s165 + $0x6c] sm:$0xff]
      %v188 = vld [vmem:[%s165 + $0x74] sm:$0xff]
      %v189 = vld [vmem:[%s165 + $0x7c] sm:$0xff]
      %v190 = vld [vmem:[%s165 + $0x84] sm:$0xf]
      %v191 = vld [vmem:[%s165 + $0x88] sm:$0xff]
      %v192 = vld [vmem:[%s165 + $0x90] sm:$0xff]
      %v193 = vld [vmem:[%s165 + $0x98] sm:$0xff]
      %v194 = vld [vmem:[%s165 + $0xa0] sm:$0xff]
      %v195 = vld [vmem:[%s165 + $0xa8] sm:$0xff]
      %v196 = vld [vmem:[%s165 + $0xb0] sm:$0xff]
      %v197 = vld [vmem:[%s165 + $0xb8] sm:$0xff]
      %v198 = vld [vmem:[%s165 + $0xc0] sm:$0xff]
      %v199 = vld [vmem:[%s165 + $0xc8] sm:$0xf]
      %v200 = vld [vmem:[%s165 + $0xcc] sm:$0xff]
      %v201 = vld [vmem:[%s165 + $0xd4] sm:$0xff]
      %v202 = vld [vmem:[%s165 + $0xdc] sm:$0xff]
      %v203 = vld [vmem:[%s165 + $0xe4] sm:$0xff]
      %v204 = vld [vmem:[%s165 + $0xec] sm:$0xff]
      %v205 = vld [vmem:[%s165 + $0xf4] sm:$0xff]
      %v206 = vld [vmem:[%s165 + $0xfc] sm:$0xff]
      %v207 = vld [vmem:[%s165 + $0x104] sm:$0xff]
      %v208 = vld [vmem:[%s165 + $0x10c] sm:$0xf]
      %v209 = vld [vmem:[%s165 + $0x110] sm:$0xff]
      %v210 = vld [vmem:[%s165 + $0x118] sm:$0xff]
      %v211 = vld [vmem:[%s165 + $0x120] sm:$0xff]
      %v212 = vld [vmem:[%s165 + $0x128] sm:$0xff]
      %v213 = vld [vmem:[%s165 + $0x130] sm:$0xff]
      %v214 = vld [vmem:[%s165 + $0x138] sm:$0xff]
      %v215 = vld [vmem:[%s165 + $0x140] sm:$0xff]
      %v216 = vld [vmem:[%s165 + $0x148] sm:$0xff]
      %v217 = vld [vmem:[%s165 + $0x150] sm:$0xf]
      %v218 = vld [vmem:[%s165 + $0x154] sm:$0xff]
      %v219 = vld [vmem:[%s165 + $0x15c] sm:$0xff]
      %v220 = vld [vmem:[%s165 + $0x164] sm:$0xff]
      %v221 = vld [vmem:[%s165 + $0x16c] sm:$0xff]
      %v222 = vld [vmem:[%s165 + $0x174] sm:$0xff]
      %v223 = vld [vmem:[%s165 + $0x17c] sm:$0xff]
      %v224 = vld [vmem:[%s165 + $0x184] sm:$0xff]
      %v225 = vld [vmem:[%s165 + $0x18c] sm:$0xff]
      %v226 = vld [vmem:[%s165 + $0x194] sm:$0xf]
      %v227 = vld [vmem:[%s1] sm:$0xff]
      %229 = vset.pattern.permute.xlu0 0
      %230 = vperm.xlu0 %229, %v227
      %v231 = vpop.permute.xlu0 %230
      %v287 = vunpack.c.l.b16 %v173
      %v288 = vunpack.c.h.b16 %v173
      %v289 = vunpack.c.l.b16 %v174
      %v290 = vunpack.c.h.b16 %v174
      %v291 = vunpack.c.l.b16 %v175
      %v292 = vunpack.c.h.b16 %v175
      %v293 = vunpack.c.l.b16 %v176
      %v294 = vunpack.c.h.b16 %v176
      %v295 = vunpack.c.l.b16 %v177
      %v296 = vunpack.c.h.b16 %v177
      %v297 = vunpack.c.l.b16 %v178
      %v298 = vunpack.c.h.b16 %v178
      %v299 = vunpack.c.l.b16 %v179
      %v300 = vunpack.c.h.b16 %v179
      %v301 = vunpack.c.l.b16 %v180
      %v302 = vunpack.c.h.b16 %v180
      %v303 = vunpack.c.l.b16 %v181
      %v304 = vunpack.c.l.b16 %v182
      %v305 = vunpack.c.h.b16 %v182
      %v306 = vunpack.c.l.b16 %v183
      %v307 = vunpack.c.h.b16 %v183
      %v308 = vunpack.c.l.b16 %v184
      %v309 = vunpack.c.h.b16 %v184
      %v310 = vunpack.c.l.b16 %v185
      %v311 = vunpack.c.h.b16 %v185
      %v312 = vunpack.c.l.b16 %v186
      %v313 = vunpack.c.h.b16 %v186
      %v314 = vunpack.c.l.b16 %v187
      %v315 = vunpack.c.h.b16 %v187
      %v316 = vunpack.c.l.b16 %v188
      %v317 = vunpack.c.h.b16 %v188
      %v318 = vunpack.c.l.b16 %v189
      %v319 = vunpack.c.h.b16 %v189
      %v320 = vunpack.c.l.b16 %v190
      %v321 = vunpack.c.l.b16 %v191
      %v322 = vunpack.c.h.b16 %v191
      %v323 = vunpack.c.l.b16 %v192
      %v324 = vunpack.c.h.b16 %v192
      %v325 = vunpack.c.l.b16 %v193
      %v326 = vunpack.c.h.b16 %v193
      %v327 = vunpack.c.l.b16 %v194
      %v328 = vunpack.c.h.b16 %v194
      %v329 = vunpack.c.l.b16 %v195
      %v330 = vunpack.c.h.b16 %v195
      %v331 = vunpack.c.l.b16 %v196
      %v332 = vunpack.c.h.b16 %v196
      %v333 = vunpack.c.l.b16 %v197
      %v334 = vunpack.c.h.b16 %v197
      %v335 = vunpack.c.l.b16 %v198
      %v336 = vunpack.c.h.b16 %v198
      %v337 = vunpack.c.l.b16 %v199
      %v338 = vunpack.c.l.b16 %v200
      %v339 = vunpack.c.h.b16 %v200
      %v340 = vunpack.c.l.b16 %v201
      %v341 = vunpack.c.h.b16 %v201
      %v342 = vunpack.c.l.b16 %v202
      %v343 = vunpack.c.h.b16 %v202
      %v344 = vunpack.c.l.b16 %v203
      %v345 = vunpack.c.h.b16 %v203
      %v346 = vunpack.c.l.b16 %v204
      %v347 = vunpack.c.h.b16 %v204
      %v348 = vunpack.c.l.b16 %v205
      %v349 = vunpack.c.h.b16 %v205
      %v350 = vunpack.c.l.b16 %v206
      %v351 = vunpack.c.h.b16 %v206
      %v352 = vunpack.c.l.b16 %v207
      %v353 = vunpack.c.h.b16 %v207
      %v354 = vunpack.c.l.b16 %v208
      %v355 = vunpack.c.l.b16 %v209
      %v356 = vunpack.c.h.b16 %v209
      %v357 = vunpack.c.l.b16 %v210
      %v358 = vunpack.c.h.b16 %v210
      %v359 = vunpack.c.l.b16 %v211
      %v360 = vunpack.c.h.b16 %v211
      %v361 = vunpack.c.l.b16 %v212
      %v362 = vunpack.c.h.b16 %v212
      %v363 = vunpack.c.l.b16 %v213
      %v364 = vunpack.c.h.b16 %v213
      %v365 = vunpack.c.l.b16 %v214
      %v366 = vunpack.c.h.b16 %v214
      %v367 = vunpack.c.l.b16 %v215
      %v368 = vunpack.c.h.b16 %v215
      %v369 = vunpack.c.l.b16 %v216
      %v370 = vunpack.c.h.b16 %v216
      %v371 = vunpack.c.l.b16 %v217
      %v372 = vunpack.c.l.b16 %v218
      %v373 = vunpack.c.h.b16 %v218
      %v374 = vunpack.c.l.b16 %v219
      %v375 = vunpack.c.h.b16 %v219
      %v376 = vunpack.c.l.b16 %v220
      %v377 = vunpack.c.h.b16 %v220
      %v378 = vunpack.c.l.b16 %v221
      %v379 = vunpack.c.h.b16 %v221
      %v380 = vunpack.c.l.b16 %v222
      %v381 = vunpack.c.h.b16 %v222
      %v382 = vunpack.c.l.b16 %v223
      %v383 = vunpack.c.h.b16 %v223
      %v384 = vunpack.c.l.b16 %v224
      %v385 = vunpack.c.h.b16 %v224
      %v386 = vunpack.c.l.b16 %v225
      %v387 = vunpack.c.h.b16 %v225
      %v388 = vunpack.c.l.b16 %v226
      %v389 = vpack.c.b16 %v304, %v287
      %v390 = vpack.c.b16 %v305, %v288
      %v391 = vpack.c.b16 %v306, %v289
      %v392 = vpack.c.b16 %v307, %v290
      %v393 = vpack.c.b16 %v308, %v291
      %v394 = vpack.c.b16 %v309, %v292
      %v395 = vpack.c.b16 %v310, %v293
      %v396 = vpack.c.b16 %v311, %v294
      %v397 = vpack.c.b16 %v312, %v295
      %v398 = vpack.c.b16 %v313, %v296
      %v399 = vpack.c.b16 %v314, %v297
      %v400 = vpack.c.b16 %v315, %v298
      %v401 = vpack.c.b16 %v316, %v299
      %v402 = vpack.c.b16 %v317, %v300
      %v403 = vpack.c.b16 %v318, %v301
      %v404 = vpack.c.b16 %v319, %v302
      %v405 = vpack.c.b16 %v320, %v303
      %v406 = vpack.c.b16 %v338, %v321
      %v407 = vpack.c.b16 %v339, %v322
      %v408 = vpack.c.b16 %v340, %v323
      %v409 = vpack.c.b16 %v341, %v324
      %v410 = vpack.c.b16 %v342, %v325
      %v411 = vpack.c.b16 %v343, %v326
      %v412 = vpack.c.b16 %v344, %v327
      %v413 = vpack.c.b16 %v345, %v328
      %v414 = vpack.c.b16 %v346, %v329
      %v415 = vpack.c.b16 %v347, %v330
      %v416 = vpack.c.b16 %v348, %v331
      %v417 = vpack.c.b16 %v349, %v332
      %v418 = vpack.c.b16 %v350, %v333
      %v419 = vpack.c.b16 %v351, %v334
      %v420 = vpack.c.b16 %v352, %v335
      %v421 = vpack.c.b16 %v353, %v336
      %v422 = vpack.c.b16 %v354, %v337
      %v423 = vpack.c.b16 %v372, %v355
      %v424 = vpack.c.b16 %v373, %v356
      %v425 = vpack.c.b16 %v374, %v357
      %v426 = vpack.c.b16 %v375, %v358
      %v427 = vpack.c.b16 %v376, %v359
      %v428 = vpack.c.b16 %v377, %v360
      %v429 = vpack.c.b16 %v378, %v361
      %v430 = vpack.c.b16 %v379, %v362
      %v431 = vpack.c.b16 %v380, %v363
      %v432 = vpack.c.b16 %v381, %v364
      %v433 = vpack.c.b16 %v382, %v365
      %v434 = vpack.c.b16 %v383, %v366
      %v435 = vpack.c.b16 %v384, %v367
      %v436 = vpack.c.b16 %v385, %v368
      %v437 = vpack.c.b16 %v386, %v369
      %v438 = vpack.c.b16 %v387, %v370
      %v439 = vpack.c.b16 %v388, %v371
      %vm491 = vcmask 392192
      %v493 = vsel %vm491, %v172, 0
      %495 = vmatprep.subr.bf16.mxu0 0
      %496 = vmatpush1.bf16.msra.mxu0 0
      %497 = vmatprep.subr.bf16.mxu0 0
      %498 = vmatpush1.bf16.msra.mxu0 0
      %499 = vmatprep.subr.bf16.mxu0 0
      %500 = vmatpush1.bf16.msra.mxu0 0
      %501 = vmatprep.subr.bf16.mxu0 0
      %502 = vmatpush1.bf16.msra.mxu0 0
      %503 = vmatprep.subr.bf16.mxu0 0
      %504 = vmatpush1.bf16.msra.mxu0 0
      %505 = vmatprep.subr.bf16.mxu0 %v424
      %506 = vmatpush1.bf16.msra.mxu0 %v423
      %507 = vmatprep.subr.bf16.mxu0 %v407
      %508 = vmatpush1.bf16.msra.mxu0 %v406
      %509 = vmatprep.subr.bf16.mxu0 %v390
      %510 = vmatpush1.bf16.msra.mxu0 %v389
      %511 = vmatprep.subr.bf16.mxu0 0
      %512 = vmatpush2.bf16.msra.mxu0 0
      %513 = vmatprep.subr.bf16.mxu0 0
      %514 = vmatpush2.bf16.msra.mxu0 0
      %515 = vmatprep.subr.bf16.mxu0 0
      %516 = vmatpush2.bf16.msra.mxu0 0
      %517 = vmatprep.subr.bf16.mxu0 0
      %518 = vmatpush2.bf16.msra.mxu0 0
      %519 = vmatprep.subr.bf16.mxu0 0
      %520 = vmatpush2.bf16.msra.mxu0 0
      %521 = vmatprep.subr.bf16.mxu0 0
      %522 = vmatpush2.bf16.msra.mxu0 0
      %523 = vmatprep.subr.bf16.mxu0 0
      %524 = vmatpush2.bf16.msra.mxu0 0
      %525 = vmatprep.subr.bf16.mxu0 0
      %526 = vmatpush2.bf16.msra.mxu0 0
      %527 = vmatprep.mubr.bf16.mxu0 0
      %528 = vmatmul.mubr.bf16.gmra.mxu0 %v493
      %v529 = vpop.f32.mrf.mxu0
      %v530 = vadd.f32 %v231, %v529
      %v531 = vpop.f32.mrf.mxu0
      %v532 = vadd.f32 %v231, %v531
      %v533 = vpop.f32.mrf.mxu0
      %v534 = vpop.f32.mrf.mxu0
      %535 = vdwg.mxu0
      %536 = vmatprep.subr.bf16.mxu0 0
      %537 = vmatpush1.bf16.msra.mxu0 0
      %538 = vmatprep.subr.bf16.mxu0 0
      %539 = vmatpush1.bf16.msra.mxu0 0
      %540 = vmatprep.subr.bf16.mxu0 0
      %541 = vmatpush1.bf16.msra.mxu0 0
      %542 = vmatprep.subr.bf16.mxu0 0
      %543 = vmatpush1.bf16.msra.mxu0 0
      %544 = vmatprep.subr.bf16.mxu0 0
      %545 = vmatpush1.bf16.msra.mxu0 0
      %546 = vmatprep.subr.bf16.mxu0 %v426
      %547 = vmatpush1.bf16.msra.mxu0 %v425
      %548 = vmatprep.subr.bf16.mxu0 %v409
      %549 = vmatpush1.bf16.msra.mxu0 %v408
      %550 = vmatprep.subr.bf16.mxu0 %v392
      %551 = vmatpush1.bf16.msra.mxu0 %v391
      %552 = vmatprep.subr.bf16.mxu0 0
      %553 = vmatpush2.bf16.msra.mxu0 0
      %554 = vmatprep.subr.bf16.mxu0 0
      %555 = vmatpush2.bf16.msra.mxu0 0
      %556 = vmatprep.subr.bf16.mxu0 0
      %557 = vmatpush2.bf16.msra.mxu0 0
      %558 = vmatprep.subr.bf16.mxu0 0
      %559 = vmatpush2.bf16.msra.mxu0 0
      %560 = vmatprep.subr.bf16.mxu0 0
      %561 = vmatpush2.bf16.msra.mxu0 0
      %562 = vmatprep.subr.bf16.mxu0 0
      %563 = vmatpush2.bf16.msra.mxu0 0
      %564 = vmatprep.subr.bf16.mxu0 0
      %565 = vmatpush2.bf16.msra.mxu0 0
      %566 = vmatprep.subr.bf16.mxu0 0
      %567 = vmatpush2.bf16.msra.mxu0 0
      %568 = vmatprep.mubr.bf16.mxu0 0
      %569 = vmatmul.mubr.bf16.gmra.mxu0 %v493
      %v570 = vpop.f32.mrf.mxu0
      %v571 = vadd.f32 %v231, %v570
      %v572 = vpop.f32.mrf.mxu0
      %v573 = vadd.f32 %v231, %v572
      %v574 = vpop.f32.mrf.mxu0
      %v575 = vpop.f32.mrf.mxu0
      %576 = vdwg.mxu0
      %577 = vmatprep.subr.bf16.mxu0 0
      %578 = vmatpush1.bf16.msra.mxu0 0
      %579 = vmatprep.subr.bf16.mxu0 0
      %580 = vmatpush1.bf16.msra.mxu0 0
      %581 = vmatprep.subr.bf16.mxu0 0
      %582 = vmatpush1.bf16.msra.mxu0 0
      %583 = vmatprep.subr.bf16.mxu0 0
      %584 = vmatpush1.bf16.msra.mxu0 0
      %585 = vmatprep.subr.bf16.mxu0 0
      %586 = vmatpush1.bf16.msra.mxu0 0
      %587 = vmatprep.subr.bf16.mxu0 %v428
      %588 = vmatpush1.bf16.msra.mxu0 %v427
      %589 = vmatprep.subr.bf16.mxu0 %v411
      %590 = vmatpush1.bf16.msra.mxu0 %v410
      %591 = vmatprep.subr.bf16.mxu0 %v394
      %592 = vmatpush1.bf16.msra.mxu0 %v393
      %593 = vmatprep.subr.bf16.mxu0 0
      %594 = vmatpush2.bf16.msra.mxu0 0
      %595 = vmatprep.subr.bf16.mxu0 0
      %596 = vmatpush2.bf16.msra.mxu0 0
      %597 = vmatprep.subr.bf16.mxu0 0
      %598 = vmatpush2.bf16.msra.mxu0 0
      %599 = vmatprep.subr.bf16.mxu0 0
      %600 = vmatpush2.bf16.msra.mxu0 0
      %601 = vmatprep.subr.bf16.mxu0 0
      %602 = vmatpush2.bf16.msra.mxu0 0
      %603 = vmatprep.subr.bf16.mxu0 0
      %604 = vmatpush2.bf16.msra.mxu0 0
      %605 = vmatprep.subr.bf16.mxu0 0
      %606 = vmatpush2.bf16.msra.mxu0 0
      %607 = vmatprep.subr.bf16.mxu0 0
      %608 = vmatpush2.bf16.msra.mxu0 0
      %609 = vmatprep.mubr.bf16.mxu0 0
      %610 = vmatmul.mubr.bf16.gmra.mxu0 %v493
      %v611 = vpop.f32.mrf.mxu0
      %v612 = vadd.f32 %v231, %v611
      %v613 = vpop.f32.mrf.mxu0
      %v614 = vadd.f32 %v231, %v613
      %v615 = vpop.f32.mrf.mxu0
      %v616 = vpop.f32.mrf.mxu0
      %617 = vdwg.mxu0
      %618 = vmatprep.subr.bf16.mxu0 0
      %619 = vmatpush1.bf16.msra.mxu0 0
      %620 = vmatprep.subr.bf16.mxu0 0
      %621 = vmatpush1.bf16.msra.mxu0 0
      %622 = vmatprep.subr.bf16.mxu0 0
      %623 = vmatpush1.bf16.msra.mxu0 0
      %624 = vmatprep.subr.bf16.mxu0 0
      %625 = vmatpush1.bf16.msra.mxu0 0
      %626 = vmatprep.subr.bf16.mxu0 0
      %627 = vmatpush1.bf16.msra.mxu0 0
      %628 = vmatprep.subr.bf16.mxu0 %v430
      %629 = vmatpush1.bf16.msra.mxu0 %v429
      %630 = vmatprep.subr.bf16.mxu0 %v413
      %631 = vmatpush1.bf16.msra.mxu0 %v412
      %632 = vmatprep.subr.bf16.mxu0 %v396
      %633 = vmatpush1.bf16.msra.mxu0 %v395
      %634 = vmatprep.subr.bf16.mxu0 0
      %635 = vmatpush2.bf16.msra.mxu0 0
      %636 = vmatprep.subr.bf16.mxu0 0
      %637 = vmatpush2.bf16.msra.mxu0 0
      %638 = vmatprep.subr.bf16.mxu0 0
      %639 = vmatpush2.bf16.msra.mxu0 0
      %640 = vmatprep.subr.bf16.mxu0 0
      %641 = vmatpush2.bf16.msra.mxu0 0
      %642 = vmatprep.subr.bf16.mxu0 0
      %643 = vmatpush2.bf16.msra.mxu0 0
      %644 = vmatprep.subr.bf16.mxu0 0
      %645 = vmatpush2.bf16.msra.mxu0 0
      %646 = vmatprep.subr.bf16.mxu0 0
      %647 = vmatpush2.bf16.msra.mxu0 0
      %648 = vmatprep.subr.bf16.mxu0 0
      %649 = vmatpush2.bf16.msra.mxu0 0
      %650 = vmatprep.mubr.bf16.mxu0 0
      %651 = vmatmul.mubr.bf16.gmra.mxu0 %v493
      %v652 = vpop.f32.mrf.mxu0
      %v653 = vadd.f32 %v231, %v652
      %v654 = vpop.f32.mrf.mxu0
      %v655 = vadd.f32 %v231, %v654
      %v656 = vpop.f32.mrf.mxu0
      %v657 = vpop.f32.mrf.mxu0
      %658 = vdwg.mxu0
      %659 = vmatprep.subr.bf16.mxu0 0
      %660 = vmatpush1.bf16.msra.mxu0 0
      %661 = vmatprep.subr.bf16.mxu0 0
      %662 = vmatpush1.bf16.msra.mxu0 0
      %663 = vmatprep.subr.bf16.mxu0 0
      %664 = vmatpush1.bf16.msra.mxu0 0
      %665 = vmatprep.subr.bf16.mxu0 0
      %666 = vmatpush1.bf16.msra.mxu0 0
      %667 = vmatprep.subr.bf16.mxu0 0
      %668 = vmatpush1.bf16.msra.mxu0 0
      %669 = vmatprep.subr.bf16.mxu0 %v432
      %670 = vmatpush1.bf16.msra.mxu0 %v431
      %671 = vmatprep.subr.bf16.mxu0 %v415
      %672 = vmatpush1.bf16.msra.mxu0 %v414
      %673 = vmatprep.subr.bf16.mxu0 %v398
      %674 = vmatpush1.bf16.msra.mxu0 %v397
      %675 = vmatprep.subr.bf16.mxu0 0
      %676 = vmatpush2.bf16.msra.mxu0 0
      %677 = vmatprep.subr.bf16.mxu0 0
      %678 = vmatpush2.bf16.msra.mxu0 0
      %679 = vmatprep.subr.bf16.mxu0 0
      %680 = vmatpush2.bf16.msra.mxu0 0
      %681 = vmatprep.subr.bf16.mxu0 0
      %682 = vmatpush2.bf16.msra.mxu0 0
      %683 = vmatprep.subr.bf16.mxu0 0
      %684 = vmatpush2.bf16.msra.mxu0 0
      %685 = vmatprep.subr.bf16.mxu0 0
      %686 = vmatpush2.bf16.msra.mxu0 0
      %687 = vmatprep.subr.bf16.mxu0 0
      %688 = vmatpush2.bf16.msra.mxu0 0
      %689 = vmatprep.subr.bf16.mxu0 0
      %690 = vmatpush2.bf16.msra.mxu0 0
      %691 = vmatprep.mubr.bf16.mxu0 0
      %692 = vmatmul.mubr.bf16.gmra.mxu0 %v493
      %v693 = vpop.f32.mrf.mxu0
      %v694 = vadd.f32 %v231, %v693
      %v695 = vpop.f32.mrf.mxu0
      %v696 = vadd.f32 %v231, %v695
      %v697 = vpop.f32.mrf.mxu0
      %v698 = vpop.f32.mrf.mxu0
      %699 = vdwg.mxu0
      %700 = vmatprep.subr.bf16.mxu0 0
      %701 = vmatpush1.bf16.msra.mxu0 0
      %702 = vmatprep.subr.bf16.mxu0 0
      %703 = vmatpush1.bf16.msra.mxu0 0
      %704 = vmatprep.subr.bf16.mxu0 0
      %705 = vmatpush1.bf16.msra.mxu0 0
      %706 = vmatprep.subr.bf16.mxu0 0
      %707 = vmatpush1.bf16.msra.mxu0 0
      %708 = vmatprep.subr.bf16.mxu0 0
      %709 = vmatpush1.bf16.msra.mxu0 0
      %710 = vmatprep.subr.bf16.mxu0 %v434
      %711 = vmatpush1.bf16.msra.mxu0 %v433
      %712 = vmatprep.subr.bf16.mxu0 %v417
      %713 = vmatpush1.bf16.msra.mxu0 %v416
      %714 = vmatprep.subr.bf16.mxu0 %v400
      %715 = vmatpush1.bf16.msra.mxu0 %v399
      %716 = vmatprep.subr.bf16.mxu0 0
      %717 = vmatpush2.bf16.msra.mxu0 0
      %718 = vmatprep.subr.bf16.mxu0 0
      %719 = vmatpush2.bf16.msra.mxu0 0
      %720 = vmatprep.subr.bf16.mxu0 0
      %721 = vmatpush2.bf16.msra.mxu0 0
      %722 = vmatprep.subr.bf16.mxu0 0
      %723 = vmatpush2.bf16.msra.mxu0 0
      %724 = vmatprep.subr.bf16.mxu0 0
      %725 = vmatpush2.bf16.msra.mxu0 0
      %726 = vmatprep.subr.bf16.mxu0 0
      %727 = vmatpush2.bf16.msra.mxu0 0
      %728 = vmatprep.subr.bf16.mxu0 0
      %729 = vmatpush2.bf16.msra.mxu0 0
      %730 = vmatprep.subr.bf16.mxu0 0
      %731 = vmatpush2.bf16.msra.mxu0 0
      %732 = vmatprep.mubr.bf16.mxu0 0
      %733 = vmatmul.mubr.bf16.gmra.mxu0 %v493
      %v734 = vpop.f32.mrf.mxu0
      %v735 = vadd.f32 %v231, %v734
      %v736 = vpop.f32.mrf.mxu0
      %v737 = vadd.f32 %v231, %v736
      %v738 = vpop.f32.mrf.mxu0
      %v739 = vpop.f32.mrf.mxu0
      %740 = vdwg.mxu0
      %741 = vmatprep.subr.bf16.mxu0 0
      %742 = vmatpush1.bf16.msra.mxu0 0
      %743 = vmatprep.subr.bf16.mxu0 0
      %744 = vmatpush1.bf16.msra.mxu0 0
      %745 = vmatprep.subr.bf16.mxu0 0
      %746 = vmatpush1.bf16.msra.mxu0 0
      %747 = vmatprep.subr.bf16.mxu0 0
      %748 = vmatpush1.bf16.msra.mxu0 0
      %749 = vmatprep.subr.bf16.mxu0 0
      %750 = vmatpush1.bf16.msra.mxu0 0
      %751 = vmatprep.subr.bf16.mxu0 %v436
      %752 = vmatpush1.bf16.msra.mxu0 %v435
      %753 = vmatprep.subr.bf16.mxu0 %v419
      %754 = vmatpush1.bf16.msra.mxu0 %v418
      %755 = vmatprep.subr.bf16.mxu0 %v402
      %756 = vmatpush1.bf16.msra.mxu0 %v401
      %757 = vmatprep.subr.bf16.mxu0 0
      %758 = vmatpush2.bf16.msra.mxu0 0
      %759 = vmatprep.subr.bf16.mxu0 0
      %760 = vmatpush2.bf16.msra.mxu0 0
      %761 = vmatprep.subr.bf16.mxu0 0
      %762 = vmatpush2.bf16.msra.mxu0 0
      %763 = vmatprep.subr.bf16.mxu0 0
      %764 = vmatpush2.bf16.msra.mxu0 0
      %765 = vmatprep.subr.bf16.mxu0 0
      %766 = vmatpush2.bf16.msra.mxu0 0
      %767 = vmatprep.subr.bf16.mxu0 0
      %768 = vmatpush2.bf16.msra.mxu0 0
      %769 = vmatprep.subr.bf16.mxu0 0
      %770 = vmatpush2.bf16.msra.mxu0 0
      %771 = vmatprep.subr.bf16.mxu0 0
      %772 = vmatpush2.bf16.msra.mxu0 0
      %773 = vmatprep.mubr.bf16.mxu0 0
      %774 = vmatmul.mubr.bf16.gmra.mxu0 %v493
      %v775 = vpop.f32.mrf.mxu0
      %v776 = vadd.f32 %v231, %v775
      %v777 = vpop.f32.mrf.mxu0
      %v778 = vadd.f32 %v231, %v777
      %v779 = vpop.f32.mrf.mxu0
      %v780 = vpop.f32.mrf.mxu0
      %781 = vdwg.mxu0
      %782 = vmatprep.subr.bf16.mxu0 0
      %783 = vmatpush1.bf16.msra.mxu0 0
      %784 = vmatprep.subr.bf16.mxu0 0
      %785 = vmatpush1.bf16.msra.mxu0 0
      %786 = vmatprep.subr.bf16.mxu0 0
      %787 = vmatpush1.bf16.msra.mxu0 0
      %788 = vmatprep.subr.bf16.mxu0 0
      %789 = vmatpush1.bf16.msra.mxu0 0
      %790 = vmatprep.subr.bf16.mxu0 0
      %791 = vmatpush1.bf16.msra.mxu0 0
      %792 = vmatprep.subr.bf16.mxu0 %v438
      %793 = vmatpush1.bf16.msra.mxu0 %v437
      %794 = vmatprep.subr.bf16.mxu0 %v421
      %795 = vmatpush1.bf16.msra.mxu0 %v420
      %796 = vmatprep.subr.bf16.mxu0 %v404
      %797 = vmatpush1.bf16.msra.mxu0 %v403
      %798 = vmatprep.subr.bf16.mxu0 0
      %799 = vmatpush2.bf16.msra.mxu0 0
      %800 = vmatprep.subr.bf16.mxu0 0
      %801 = vmatpush2.bf16.msra.mxu0 0
      %802 = vmatprep.subr.bf16.mxu0 0
      %803 = vmatpush2.bf16.msra.mxu0 0
      %804 = vmatprep.subr.bf16.mxu0 0
      %805 = vmatpush2.bf16.msra.mxu0 0
      %806 = vmatprep.subr.bf16.mxu0 0
      %807 = vmatpush2.bf16.msra.mxu0 0
      %808 = vmatprep.subr.bf16.mxu0 0
      %809 = vmatpush2.bf16.msra.mxu0 0
      %810 = vmatprep.subr.bf16.mxu0 0
      %811 = vmatpush2.bf16.msra.mxu0 0
      %812 = vmatprep.subr.bf16.mxu0 0
      %813 = vmatpush2.bf16.msra.mxu0 0
      %814 = vmatprep.mubr.bf16.mxu0 0
      %815 = vmatmul.mubr.bf16.gmra.mxu0 %v493
      %v816 = vpop.f32.mrf.mxu0
      %v817 = vadd.f32 %v231, %v816
      %v818 = vpop.f32.mrf.mxu0
      %v819 = vadd.f32 %v231, %v818
      %v820 = vpop.f32.mrf.mxu0
      %v821 = vpop.f32.mrf.mxu0
      %822 = vdwg.mxu0
      %823 = vmatprep.subr.bf16.mxu0 0
      %824 = vmatpush1.bf16.msra.mxu0 0
      %825 = vmatprep.subr.bf16.mxu0 0
      %826 = vmatpush1.bf16.msra.mxu0 0
      %827 = vmatprep.subr.bf16.mxu0 0
      %828 = vmatpush1.bf16.msra.mxu0 0
      %829 = vmatprep.subr.bf16.mxu0 0
      %830 = vmatpush1.bf16.msra.mxu0 0
      %831 = vmatprep.subr.bf16.mxu0 0
      %832 = vmatpush1.bf16.msra.mxu0 0
      %833 = vmatprep.subr.bf16.mxu0 0
      %834 = vmatpush1.bf16.msra.mxu0 %v439
      %835 = vmatprep.subr.bf16.mxu0 0
      %836 = vmatpush1.bf16.msra.mxu0 %v422
      %837 = vmatprep.subr.bf16.mxu0 0
      %838 = vmatpush1.bf16.msra.mxu0 %v405
      %839 = vmatprep.subr.bf16.mxu0 0
      %840 = vmatpush2.bf16.msra.mxu0 0
      %841 = vmatprep.subr.bf16.mxu0 0
      %842 = vmatpush2.bf16.msra.mxu0 0
      %843 = vmatprep.subr.bf16.mxu0 0
      %844 = vmatpush2.bf16.msra.mxu0 0
      %845 = vmatprep.subr.bf16.mxu0 0
      %846 = vmatpush2.bf16.msra.mxu0 0
      %847 = vmatprep.subr.bf16.mxu0 0
      %848 = vmatpush2.bf16.msra.mxu0 0
      %849 = vmatprep.subr.bf16.mxu0 0
      %850 = vmatpush2.bf16.msra.mxu0 0
      %851 = vmatprep.subr.bf16.mxu0 0
      %852 = vmatpush2.bf16.msra.mxu0 0
      %853 = vmatprep.subr.bf16.mxu0 0
      %854 = vmatpush2.bf16.msra.mxu0 0
      %855 = vmatprep.mubr.bf16.mxu0 0
      %856 = vmatmul.mubr.bf16.gmra.mxu0 %v493
      %v857 = vpop.f32.mrf.mxu0
      %v858 = vadd.f32 %v231, %v857
      %v859 = vpop.f32.mrf.mxu0
      %v860 = vpop.f32.mrf.mxu0
      %v861 = vpop.f32.mrf.mxu0
      %862 = vdwg.mxu0
      %vm863 = vcmp.ge.f32.partialorder %v530, 0.0
      %vm864 = vcmp.ge.f32.partialorder %v532, 0.0
      %vm865 = vcmp.ge.f32.partialorder %v571, 0.0
      %vm866 = vcmp.ge.f32.partialorder %v573, 0.0
      %vm867 = vcmp.ge.f32.partialorder %v612, 0.0
      %vm868 = vcmp.ge.f32.partialorder %v614, 0.0
      %vm869 = vcmp.ge.f32.partialorder %v653, 0.0
      %vm870 = vcmp.ge.f32.partialorder %v655, 0.0
      %vm871 = vcmp.ge.f32.partialorder %v694, 0.0
      %vm872 = vcmp.ge.f32.partialorder %v696, 0.0
      %vm873 = vcmp.ge.f32.partialorder %v735, 0.0
      %vm874 = vcmp.ge.f32.partialorder %v737, 0.0
      %vm875 = vcmp.ge.f32.partialorder %v776, 0.0
      %vm876 = vcmp.ge.f32.partialorder %v778, 0.0
      %vm877 = vcmp.ge.f32.partialorder %v817, 0.0
      %vm878 = vcmp.ge.f32.partialorder %v819, 0.0
      %vm879 = vcmp.ge.f32.partialorder %v858, 0.0
      %v880 = vmul.f32 %v530, 0.2
      %v881 = vmul.f32 %v532, 0.2
      %v882 = vmul.f32 %v571, 0.2
      %v883 = vmul.f32 %v573, 0.2
      %v884 = vmul.f32 %v612, 0.2
      %v885 = vmul.f32 %v614, 0.2
      %v886 = vmul.f32 %v653, 0.2
      %v887 = vmul.f32 %v655, 0.2
      %v888 = vmul.f32 %v694, 0.2
      %v889 = vmul.f32 %v696, 0.2
      %v890 = vmul.f32 %v735, 0.2
      %v891 = vmul.f32 %v737, 0.2
      %v892 = vmul.f32 %v776, 0.2
      %v893 = vmul.f32 %v778, 0.2
      %v894 = vmul.f32 %v817, 0.2
      %v895 = vmul.f32 %v819, 0.2
      %v896 = vmul.f32 %v858, 0.2
      %v897 = vsel %vm863, %v530, %v880
      %v898 = vsel %vm864, %v532, %v881
      %v899 = vsel %vm865, %v571, %v882
      %v900 = vsel %vm866, %v573, %v883
      %v901 = vsel %vm867, %v612, %v884
      %v902 = vsel %vm868, %v614, %v885
      %v903 = vsel %vm869, %v653, %v886
      %v904 = vsel %vm870, %v655, %v887
      %v905 = vsel %vm871, %v694, %v888
      %v906 = vsel %vm872, %v696, %v889
      %v907 = vsel %vm873, %v735, %v890
      %v908 = vsel %vm874, %v737, %v891
      %v909 = vsel %vm875, %v776, %v892
      %v910 = vsel %vm876, %v778, %v893
      %v911 = vsel %vm877, %v817, %v894
      %v912 = vsel %vm878, %v819, %v895
      %v913 = vsel %vm879, %v858, %v896
      %914 = vst [vmem:[%s170] sm:$0xff] %v897
      %915 = vst [vmem:[%s170 + $0x8] sm:$0xff] %v898
      %916 = vst [vmem:[%s170 + $0x10] sm:$0xff] %v899
      %917 = vst [vmem:[%s170 + $0x18] sm:$0xff] %v900
      %918 = vst [vmem:[%s170 + $0x20] sm:$0xff] %v901
      %919 = vst [vmem:[%s170 + $0x28] sm:$0xff] %v902
      %920 = vst [vmem:[%s170 + $0x30] sm:$0xff] %v903
      %921 = vst [vmem:[%s170 + $0x38] sm:$0xff] %v904
      %922 = vst [vmem:[%s170 + $0x40] sm:$0xff] %v905
      %923 = vst [vmem:[%s170 + $0x48] sm:$0xff] %v906
      %924 = vst [vmem:[%s170 + $0x50] sm:$0xff] %v907
      %925 = vst [vmem:[%s170 + $0x58] sm:$0xff] %v908
      %926 = vst [vmem:[%s170 + $0x60] sm:$0xff] %v909
      %927 = vst [vmem:[%s170 + $0x68] sm:$0xff] %v910
      %928 = vst [vmem:[%s170 + $0x70] sm:$0xff] %v911
      %929 = vst [vmem:[%s170 + $0x78] sm:$0xff] %v912
      %vm930 = vcmask 556032
      %931 = vst.msk [vmem:[%s170 + $0x80] sm:$0xff] %vm930, %v913
      %p932 = scmp.lt.s32.totalorder %s14, 1
      %s933 = scalar_select %p932, %s14, 1
      %s934 = smul.addr %s933, 17
      %s935 = smul.addr %s934, 8
      %s936 = scalar_lea.vmem %s3, %s935
      // Predicated region
      $region33: #{discriminator_forward.4} parent=31 // pred_check
        %p937 = pneg %p100
      $region34: #{discriminator_forward.4} parent=31 // pred_check_branch
        %939 = sbr.rel (%p937) target = $region36
      $region35: #{discriminator_forward.4} parent=31 // pred_region
        _
      $region36: #{discriminator_forward.4} parent=31 // pred_fallthru
        _
    $region32: #{discriminator_forward.4} parent=5 // pred_fallthru
      _
    %p940 = scmp.le.s32.totalorder 2, %s9
    // Predicated region
    $region37: #{discriminator_forward.4} parent=5 // pred_check
      %p941 = pneg %p940
    $region38: #{discriminator_forward.4} parent=5 // pred_check_branch
      %943 = sbr.rel (%p941) target = $region40
    $region39: #{discriminator_forward.4} parent=5 // pred_region
      %s944 = ssub.s32 %s9, 2
      // Predicated region
      $region41: #{discriminator_forward.4} parent=39 // pred_check
        %p945 = pneg %p106
      $region42: #{discriminator_forward.4} parent=39 // pred_check_branch
        %947 = sbr.rel (%p945) target = $region44
      $region43: #{discriminator_forward.4} parent=39 // pred_region
        %p948 = scmp.lt.s32.totalorder %s15, 1
        %s949 = scalar_select %p948, %s15, 1
        %s950 = smul.addr %s949, 17
        %s951 = smul.addr %s950, 8
        %s952 = scalar_lea.vmem %s3, %s951
      $region44: #{discriminator_forward.4} parent=39 // pred_fallthru
        _
    $region40: #{discriminator_forward.4} parent=5 // pred_fallthru
      _
  $region6: #{discriminator_forward.4} parent=0 // loop_footer
    %s13 = sadd.s32 1, %s9
  $region7: #{discriminator_forward.4} parent=0 // loop_footer_branch
    %8 = sbr.rel target = $region3
  $region8: #{discriminator_forward.4} parent=0 // loop_exit
    _

// kernel: discriminator_forward.5
$region0: #{discriminator_forward.5}
  #allocation0 [shape = 'u32[]', space=smem, size = 0x4, offset = 0x4, fixed_abs, tag = 'smem constant byte address 0x4 - core index']
  #allocation1 [shape = 'u32[144,128]{1,0:T(1,128)}', space=vmem, size = 0x12000, scoped, tag = 'internal scratch']
  %s0 = inlined_call_operand.vmem [shape: bf16[16,128], index: 0, kind: input, shape index: {}]
  %s1 = inlined_call_operand.vmem [shape: f32[16,1], index: 1, kind: input, shape index: {}]
  %s2 = inlined_call_operand.vmem [shape: bf16[2,128,484], index: 2, kind: input, shape index: {}]
  %s3 = inlined_call_operand.vmem [shape: f32[2,16,484], index: 3, kind: output, shape index: {}]
  %s4 = sld [smem:[#allocation0]]
  $region45: #{discriminator_forward.5} parent=0
    _
  %s6 = ssub.s32 1, %s4
  %s7 = scalar_select 0, %s6, %s4
  loop: start=0, step=1, limit=4
  $region2: #{discriminator_forward.5} parent=0 // loop_pre_header
    _
  $region3: #{discriminator_forward.5} parent=0 // loop_header
    %s9 = sphi 0, %s13
    %p10 = scmp.ge.s32.totalorder %s9, 4
    %s17 = sphi 0, %s17
    %s19 = sphi 0, %s17
    %s20 = sphi 0, %s19
    %s34 = sphi 0, %s20
    %s38 = sphi 0, %s38
    %s40 = sphi 0, %s38
    %s41 = sphi 0, %s40
    %s55 = sphi 0, %s41
    %s61 = sphi 0, %s63
    %s64 = sphi 0, %s61
    %s65 = sphi 0, %s64
    %s81 = sphi 0, %s65
    %s87 = sphi 0, %s89
    %s90 = sphi 0, %s87
    %s91 = sphi 0, %s90
    %s107 = sphi 0, %s91
  $region4: #{discriminator_forward.5} parent=0 // loop_header_branch
    %12 = sbr.rel (%p10) target = $region8
  $region5: #{discriminator_forward.5} parent=0 // loop_body
    %s14 = ssub.s32 %s9, 1
    %s15 = ssub.s32 %s9, 2
    %s16 = sadd.s32 %s9, 1
    %s18 = sadd.s32 %s17, 1
    %p21 = scmp.eq.s32.totalorder %s9, 1
    %p22 = scmp.ne.s32.totalorder %s17, %s19
    %p23 = scmp.eq.s32.totalorder %s9, 0
    %p24 = por %p22, %p23
    %p25 = scmp.ne.s32.totalorder %s17, %s19
    %p26 = scmp.eq.s32.totalorder %s14, 1
    %p27 = por %p25, %p26
    %p28 = scmp.ne.s32.totalorder %s19, %s20
    %p29 = scmp.eq.s32.totalorder %s14, 0
    %p30 = por %p28, %p29
    %p31 = scmp.ne.s32.totalorder %s19, %s20
    %p32 = scmp.eq.s32.totalorder %s15, 1
    %p33 = por %p31, %p32
    %p35 = scmp.ne.s32.totalorder %s20, %s34
    %p36 = scmp.eq.s32.totalorder %s15, 0
    %p37 = por %p35, %p36
    %s39 = sadd.s32 %s38, 1
    %p42 = scmp.eq.s32.totalorder %s9, 1
    %p43 = scmp.ne.s32.totalorder %s38, %s40
    %p44 = scmp.eq.s32.totalorder %s9, 0
    %p45 = por %p43, %p44
    %p46 = scmp.ne.s32.totalorder %s38, %s40
    %p47 = scmp.eq.s32.totalorder %s14, 1
    %p48 = por %p46, %p47
    %p49 = scmp.ne.s32.totalorder %s40, %s41
    %p50 = scmp.eq.s32.totalorder %s14, 0
    %p51 = por %p49, %p50
    %p52 = scmp.ne.s32.totalorder %s40, %s41
    %p53 = scmp.eq.s32.totalorder %s15, 1
    %p54 = por %p52, %p53
    %p56 = scmp.ne.s32.totalorder %s41, %s55
    %p57 = scmp.eq.s32.totalorder %s15, 0
    %p58 = por %p56, %p57
    %s59 = ssub.s32 %s9, %s16
    %p60 = scmp.eq.s32.totalorder %s59, 0
    %s62 = sadd.s32 %s61, 1
    %s63 = scalar_select %p60, %s61, %s62
    %p66 = pneg %p60
    %p67 = scmp.eq.s32.totalorder %s9, 1
    %p68 = por %p66, %p67
    %p69 = scmp.ne.s32.totalorder %s61, %s64
    %p70 = scmp.eq.s32.totalorder %s9, 0
    %p71 = por %p69, %p70
    %p72 = scmp.ne.s32.totalorder %s61, %s64
    %p73 = scmp.eq.s32.totalorder %s14, 1
    %p74 = por %p72, %p73
    %p75 = scmp.ne.s32.totalorder %s64, %s65
    %p76 = scmp.eq.s32.totalorder %s14, 0
    %p77 = por %p75, %p76
    %p78 = scmp.ne.s32.totalorder %s64, %s65
    %p79 = scmp.eq.s32.totalorder %s15, 1
    %p80 = por %p78, %p79
    %p82 = scmp.ne.s32.totalorder %s65, %s81
    %p83 = scmp.eq.s32.totalorder %s15, 0
    %p84 = por %p82, %p83
    %s85 = ssub.s32 %s9, %s16
    %p86 = scmp.eq.s32.totalorder %s85, 0
    %s88 = sadd.s32 %s87, 1
    %s89 = scalar_select %p86, %s87, %s88
    %p92 = pneg %p86
    %p93 = scmp.eq.s32.totalorder %s9, 1
    %p94 = por %p92, %p93
    %p95 = scmp.ne.s32.totalorder %s87, %s90
    %p96 = scmp.eq.s32.totalorder %s9, 0
    %p97 = por %p95, %p96
    %p98 = scmp.ne.s32.totalorder %s87, %s90
    %p99 = scmp.eq.s32.totalorder %s14, 1
    %p100 = por %p98, %p99
    %p101 = scmp.ne.s32.totalorder %s90, %s91
    %p102 = scmp.eq.s32.totalorder %s14, 0
    %p103 = por %p101, %p102
    %p104 = scmp.ne.s32.totalorder %s90, %s91
    %p105 = scmp.eq.s32.totalorder %s15, 1
    %p106 = por %p104, %p105
    %p108 = scmp.ne.s32.totalorder %s91, %s107
    %p109 = scmp.eq.s32.totalorder %s15, 0
    %p110 = por %p108, %p109
    %p111 = scmp.le.s32.totalorder 1, %s9
    %p112 = scmp.lt.s32.totalorder %s9, 3
    %p113 = pnand %p111, %p112
    %p114 = pneg %p113
    // Predicated region
    $region9: #{discriminator_forward.5} parent=5 // pred_check
      _
    $region10: #{discriminator_forward.5} parent=5 // pred_check_branch
      %116 = sbr.rel (%p113) target = $region12
    $region11: #{discriminator_forward.5} parent=5 // pred_region
      %s117 = ssub.s32 %s9, 1
      // Predicated region
      $region13: #{discriminator_forward.5} parent=11 // pred_check
        %p118 = pneg %p30
      $region14: #{discriminator_forward.5} parent=11 // pred_check_branch
        %120 = sbr.rel (%p118) target = $region16
      $region15: #{discriminator_forward.5} parent=11 // pred_region
        _
      $region16: #{discriminator_forward.5} parent=11 // pred_fallthru
        _
      // Predicated region
      $region17: #{discriminator_forward.5} parent=11 // pred_check
        %p121 = pneg %p51
      $region18: #{discriminator_forward.5} parent=11 // pred_check_branch
        %123 = sbr.rel (%p121) target = $region20
      $region19: #{discriminator_forward.5} parent=11 // pred_region
        _
      $region20: #{discriminator_forward.5} parent=11 // pred_fallthru
        _
    $region12: #{discriminator_forward.5} parent=5 // pred_fallthru
      _
    %p124 = scmp.lt.s32.totalorder %s9, 2
    // Predicated region
    $region21: #{discriminator_forward.5} parent=5 // pred_check
      %p125 = pneg %p124
    $region22: #{discriminator_forward.5} parent=5 // pred_check_branch
      %127 = sbr.rel (%p125) target = $region24
    $region23: #{discriminator_forward.5} parent=5 // pred_region
      // Predicated region
      $region25: #{discriminator_forward.5} parent=23 // pred_check
        %p128 = pneg %p71
      $region26: #{discriminator_forward.5} parent=23 // pred_check_branch
        %130 = sbr.rel (%p128) target = $region28
      $region27: #{discriminator_forward.5} parent=23 // pred_region
        %p131 = scmp.lt.s32.totalorder %s9, 1
        %s132 = scalar_select %p131, %s9, 1
        %s133 = smul.addr %s132, 64
        %s134 = smul.addr %s133, 4
        %s135 = scalar_lea.vmem %s2, %s134
      $region28: #{discriminator_forward.5} parent=23 // pred_fallthru
        _
    $region24: #{discriminator_forward.5} parent=5 // pred_fallthru
      _
    %p136 = scmp.le.s32.totalorder 1, %s9
    %p137 = scmp.lt.s32.totalorder %s9, 3
    %p138 = pnand %p136, %p137
    %p139 = pneg %p138
    // Predicated region
    $region29: #{discriminator_forward.5} parent=5 // pred_check
      _
    $region30: #{discriminator_forward.5} parent=5 // pred_check_branch
      %141 = sbr.rel (%p138) target = $region32
    $region31: #{discriminator_forward.5} parent=5 // pred_region
      %s142 = ssub.s32 %s9, 1
      %p143 = pneg %p30
      %p144 = pneg %p27
      %p145 = pneg %p51
      %p146 = pneg %p48
      %p147 = scmp.lt.s32.totalorder %s14, 1
      %s148 = scalar_select %p147, %s14, 1
      %s149 = smul.addr %s148, 64
      %s150 = smul.addr %s149, 4
      %s151 = scalar_lea.vmem %s2, %s150
      %p152 = pneg %p77
      %p153 = pneg %p74
      %p154 = pneg %p103
      %p155 = pneg %p100
      %p156 = scmp.lt.s32.totalorder %s14, 1
      %s157 = scalar_select %p156, %s14, 1
      %s158 = smul.addr %s157, 8
      %s159 = smul.addr %s158, 8
      %s160 = scalar_lea.vmem %s3, %s159
      %p161 = scmp.lt.s32.totalorder %s14, 1
      %s162 = scalar_select %p161, %s14, 1
      %s163 = smul.addr %s162, 64
      %s164 = smul.addr %s163, 4
      %s165 = scalar_lea.vmem %s2, %s164
      %p166 = scmp.lt.s32.totalorder %s14, 1
      %s167 = scalar_select %p166, %s14, 1
      %s168 = smul.addr %s167, 8
      %s169 = smul.addr %s168, 8
      %s170 = scalar_lea.vmem %s3, %s169
      %v172 = vld [vmem:[%s0] sm:$0xf]
      %v173 = vld [vmem:[%s0 + $0x4] sm:$0xf]
      %v174 = vld [vmem:[%s165] sm:$0xff]
      %v175 = vld [vmem:[%s165 + $0x8] sm:$0xff]
      %v176 = vld [vmem:[%s165 + $0x10] sm:$0xff]
      %v177 = vld [vmem:[%s165 + $0x18] sm:$0xff]
      %v178 = vld [vmem:[%s165 + $0x20] sm:$0xff]
      %v179 = vld [vmem:[%s165 + $0x28] sm:$0xff]
      %v180 = vld [vmem:[%s165 + $0x30] sm:$0xff]
      %v181 = vld [vmem:[%s165 + $0x38] sm:$0xff]
      %v182 = vld [vmem:[%s165 + $0x40] sm:$0xff]
      %v183 = vld [vmem:[%s165 + $0x48] sm:$0xff]
      %v184 = vld [vmem:[%s165 + $0x50] sm:$0xff]
      %v185 = vld [vmem:[%s165 + $0x58] sm:$0xff]
      %v186 = vld [vmem:[%s165 + $0x60] sm:$0xff]
      %v187 = vld [vmem:[%s165 + $0x68] sm:$0xff]
      %v188 = vld [vmem:[%s165 + $0x70] sm:$0xff]
      %v189 = vld [vmem:[%s165 + $0x78] sm:$0xff]
      %v190 = vld [vmem:[%s165 + $0x80] sm:$0xff]
      %v191 = vld [vmem:[%s165 + $0x88] sm:$0xff]
      %v192 = vld [vmem:[%s165 + $0x90] sm:$0xff]
      %v193 = vld [vmem:[%s165 + $0x98] sm:$0xff]
      %v194 = vld [vmem:[%s165 + $0xa0] sm:$0xff]
      %v195 = vld [vmem:[%s165 + $0xa8] sm:$0xff]
      %v196 = vld [vmem:[%s165 + $0xb0] sm:$0xff]
      %v197 = vld [vmem:[%s165 + $0xb8] sm:$0xff]
      %v198 = vld [vmem:[%s165 + $0xc0] sm:$0xff]
      %v199 = vld [vmem:[%s165 + $0xc8] sm:$0xff]
      %v200 = vld [vmem:[%s165 + $0xd0] sm:$0xff]
      %v201 = vld [vmem:[%s165 + $0xd8] sm:$0xff]
      %v202 = vld [vmem:[%s165 + $0xe0] sm:$0xff]
      %v203 = vld [vmem:[%s165 + $0xe8] sm:$0xff]
      %v204 = vld [vmem:[%s165 + $0xf0] sm:$0xff]
      %v205 = vld [vmem:[%s165 + $0xf8] sm:$0xff]
      %v206 = vld [vmem:[%s1] sm:$0xff]
      %v207 = vld [vmem:[%s1 + $0x8] sm:$0xff]
      %209 = vset.pattern.permute.xlu0 0
      %210 = vperm.xlu0 %209, %v206
      %v211 = vpop.permute.xlu0 %210
      %214 = vset.pattern.permute.xlu0 0
      %215 = vperm.xlu0 %214, %v207
      %v216 = vpop.permute.xlu0 %215
      %v220 = vunpack.c.l.b16 %v172
      %v221 = vunpack.c.l.b16 %v173
      %v222 = vpack.c.b16 %v221, %v220
      %v256 = vunpack.c.l.b16 %v174
      %v257 = vunpack.c.h.b16 %v174
      %v258 = vunpack.c.l.b16 %v175
      %v259 = vunpack.c.h.b16 %v175
      %v260 = vunpack.c.l.b16 %v176
      %v261 = vunpack.c.h.b16 %v176
      %v262 = vunpack.c.l.b16 %v177
      %v263 = vunpack.c.h.b16 %v177
      %v264 = vunpack.c.l.b16 %v178
      %v265 = vunpack.c.h.b16 %v178
      %v266 = vunpack.c.l.b16 %v179
      %v267 = vunpack.c.h.b16 %v179
      %v268 = vunpack.c.l.b16 %v180
      %v269 = vunpack.c.h.b16 %v180
      %v270 = vunpack.c.l.b16 %v181
      %v271 = vunpack.c.h.b16 %v181
      %v272 = vunpack.c.l.b16 %v182
      %v273 = vunpack.c.h.b16 %v182
      %v274 = vunpack.c.l.b16 %v183
      %v275 = vunpack.c.h.b16 %v183
      %v276 = vunpack.c.l.b16 %v184
      %v277 = vunpack.c.h.b16 %v184
      %v278 = vunpack.c.l.b16 %v185
      %v279 = vunpack.c.h.b16 %v185
      %v280 = vunpack.c.l.b16 %v186
      %v281 = vunpack.c.h.b16 %v186
      %v282 = vunpack.c.l.b16 %v187
      %v283 = vunpack.c.h.b16 %v187
      %v284 = vunpack.c.l.b16 %v188
      %v285 = vunpack.c.h.b16 %v188
      %v286 = vunpack.c.l.b16 %v189
      %v287 = vunpack.c.h.b16 %v189
      %v288 = vunpack.c.l.b16 %v190
      %v289 = vunpack.c.h.b16 %v190
      %v290 = vunpack.c.l.b16 %v191
      %v291 = vunpack.c.h.b16 %v191
      %v292 = vunpack.c.l.b16 %v192
      %v293 = vunpack.c.h.b16 %v192
      %v294 = vunpack.c.l.b16 %v193
      %v295 = vunpack.c.h.b16 %v193
      %v296 = vunpack.c.l.b16 %v194
      %v297 = vunpack.c.h.b16 %v194
      %v298 = vunpack.c.l.b16 %v195
      %v299 = vunpack.c.h.b16 %v195
      %v300 = vunpack.c.l.b16 %v196
      %v301 = vunpack.c.h.b16 %v196
      %v302 = vunpack.c.l.b16 %v197
      %v303 = vunpack.c.h.b16 %v197
      %v304 = vunpack.c.l.b16 %v198
      %v305 = vunpack.c.h.b16 %v198
      %v306 = vunpack.c.l.b16 %v199
      %v307 = vunpack.c.h.b16 %v199
      %v308 = vunpack.c.l.b16 %v200
      %v309 = vunpack.c.h.b16 %v200
      %v310 = vunpack.c.l.b16 %v201
      %v311 = vunpack.c.h.b16 %v201
      %v312 = vunpack.c.l.b16 %v202
      %v313 = vunpack.c.h.b16 %v202
      %v314 = vunpack.c.l.b16 %v203
      %v315 = vunpack.c.h.b16 %v203
      %v316 = vunpack.c.l.b16 %v204
      %v317 = vunpack.c.h.b16 %v204
      %v318 = vunpack.c.l.b16 %v205
      %v319 = vunpack.c.h.b16 %v205
      %v320 = vpack.c.b16 %v260, %v256
      %v321 = vpack.c.b16 %v261, %v257
      %v322 = vpack.c.b16 %v262, %v258
      %v323 = vpack.c.b16 %v263, %v259
      %v324 = vpack.c.b16 %v268, %v264
      %v325 = vpack.c.b16 %v269, %v265
      %v326 = vpack.c.b16 %v270, %v266
      %v327 = vpack.c.b16 %v271, %v267
      %v328 = vpack.c.b16 %v276, %v272
      %v329 = vpack.c.b16 %v277, %v273
      %v330 = vpack.c.b16 %v278, %v274
      %v331 = vpack.c.b16 %v279, %v275
      %v332 = vpack.c.b16 %v284, %v280
      %v333 = vpack.c.b16 %v285, %v281
      %v334 = vpack.c.b16 %v286, %v282
      %v335 = vpack.c.b16 %v287, %v283
      %v336 = vpack.c.b16 %v292, %v288
      %v337 = vpack.c.b16 %v293, %v289
      %v338 = vpack.c.b16 %v294, %v290
      %v339 = vpack.c.b16 %v295, %v291
      %v340 = vpack.c.b16 %v300, %v296
      %v341 = vpack.c.b16 %v301, %v297
      %v342 = vpack.c.b16 %v302, %v298
      %v343 = vpack.c.b16 %v303, %v299
      %v344 = vpack.c.b16 %v308, %v304
      %v345 = vpack.c.b16 %v309, %v305
      %v346 = vpack.c.b16 %v310, %v306
      %v347 = vpack.c.b16 %v311, %v307
      %v348 = vpack.c.b16 %v316, %v312
      %v349 = vpack.c.b16 %v317, %v313
      %v350 = vpack.c.b16 %v318, %v314
      %v351 = vpack.c.b16 %v319, %v315
      %384 = vmatprep.subr.bf16.mxu0 %v349
      %385 = vmatpush1.bf16.msra.mxu0 %v348
      %386 = vmatprep.subr.bf16.mxu0 %v345
      %387 = vmatpush1.bf16.msra.mxu0 %v344
      %388 = vmatprep.subr.bf16.mxu0 %v341
      %389 = vmatpush1.bf16.msra.mxu0 %v340
      %390 = vmatprep.subr.bf16.mxu0 %v337
      %391 = vmatpush1.bf16.msra.mxu0 %v336
      %392 = vmatprep.subr.bf16.mxu0 %v333
      %393 = vmatpush1.bf16.msra.mxu0 %v332
      %394 = vmatprep.subr.bf16.mxu0 %v329
      %395 = vmatpush1.bf16.msra.mxu0 %v328
      %396 = vmatprep.subr.bf16.mxu0 %v325
      %397 = vmatpush1.bf16.msra.mxu0 %v324
      %398 = vmatprep.subr.bf16.mxu0 %v321
      %399 = vmatpush1.bf16.msra.mxu0 %v320
      %400 = vmatprep.subr.bf16.mxu0 0
      %401 = vmatpush2.bf16.msra.mxu0 0
      %402 = vmatprep.subr.bf16.mxu0 0
      %403 = vmatpush2.bf16.msra.mxu0 0
      %404 = vmatprep.subr.bf16.mxu0 0
      %405 = vmatpush2.bf16.msra.mxu0 0
      %406 = vmatprep.subr.bf16.mxu0 0
      %407 = vmatpush2.bf16.msra.mxu0 0
      %408 = vmatprep.subr.bf16.mxu0 0
      %409 = vmatpush2.bf16.msra.mxu0 0
      %410 = vmatprep.subr.bf16.mxu0 0
      %411 = vmatpush2.bf16.msra.mxu0 0
      %412 = vmatprep.subr.bf16.mxu0 0
      %413 = vmatpush2.bf16.msra.mxu0 0
      %414 = vmatprep.subr.bf16.mxu0 0
      %415 = vmatpush2.bf16.msra.mxu0 0
      %416 = vmatprep.mubr.bf16.mxu0 0
      %417 = vmatmul.mubr.bf16.gmra.mxu0 %v222
      %v418 = vpop.f32.mrf.mxu0
      %v419 = vadd.f32 %v211, %v418
      %v420 = vpop.f32.mrf.mxu0
      %v421 = vadd.f32 %v211, %v420
      %v422 = vpop.f32.mrf.mxu0
      %v423 = vadd.f32 %v216, %v422
      %v424 = vpop.f32.mrf.mxu0
      %v425 = vadd.f32 %v216, %v424
      %426 = vdwg.mxu0
      %427 = vmatprep.subr.bf16.mxu0 %v351
      %428 = vmatpush1.bf16.msra.mxu0 %v350
      %429 = vmatprep.subr.bf16.mxu0 %v347
      %430 = vmatpush1.bf16.msra.mxu0 %v346
      %431 = vmatprep.subr.bf16.mxu0 %v343
      %432 = vmatpush1.bf16.msra.mxu0 %v342
      %433 = vmatprep.subr.bf16.mxu0 %v339
      %434 = vmatpush1.bf16.msra.mxu0 %v338
      %435 = vmatprep.subr.bf16.mxu0 %v335
      %436 = vmatpush1.bf16.msra.mxu0 %v334
      %437 = vmatprep.subr.bf16.mxu0 %v331
      %438 = vmatpush1.bf16.msra.mxu0 %v330
      %439 = vmatprep.subr.bf16.mxu0 %v327
      %440 = vmatpush1.bf16.msra.mxu0 %v326
      %441 = vmatprep.subr.bf16.mxu0 %v323
      %442 = vmatpush1.bf16.msra.mxu0 %v322
      %443 = vmatprep.subr.bf16.mxu0 0
      %444 = vmatpush2.bf16.msra.mxu0 0
      %445 = vmatprep.subr.bf16.mxu0 0
      %446 = vmatpush2.bf16.msra.mxu0 0
      %447 = vmatprep.subr.bf16.mxu0 0
      %448 = vmatpush2.bf16.msra.mxu0 0
      %449 = vmatprep.subr.bf16.mxu0 0
      %450 = vmatpush2.bf16.msra.mxu0 0
      %451 = vmatprep.subr.bf16.mxu0 0
      %452 = vmatpush2.bf16.msra.mxu0 0
      %453 = vmatprep.subr.bf16.mxu0 0
      %454 = vmatpush2.bf16.msra.mxu0 0
      %455 = vmatprep.subr.bf16.mxu0 0
      %456 = vmatpush2.bf16.msra.mxu0 0
      %457 = vmatprep.subr.bf16.mxu0 0
      %458 = vmatpush2.bf16.msra.mxu0 0
      %459 = vmatprep.mubr.bf16.mxu0 0
      %460 = vmatmul.mubr.bf16.gmra.mxu0 %v222
      %v461 = vpop.f32.mrf.mxu0
      %v462 = vadd.f32 %v211, %v461
      %v463 = vpop.f32.mrf.mxu0
      %v464 = vadd.f32 %v211, %v463
      %v465 = vpop.f32.mrf.mxu0
      %v466 = vadd.f32 %v216, %v465
      %v467 = vpop.f32.mrf.mxu0
      %v468 = vadd.f32 %v216, %v467
      %469 = vdwg.mxu0
      %v470 = vadd.f32 %v419, %v421
      %v471 = vadd.f32 %v470, %v462
      %vm472 = vcmask 818176
      %v473 = vsel %vm472, %v464, 0.0
      %v474 = vadd.f32 %v471, %v473
      %475 = vadd.xlane.f32.xlu0 %v474
      %v476 = vpop.xlane.xlu0 %475
      %v477 = vadd.f32 %v423, %v425
      %v478 = vadd.f32 %v477, %v466
      %v479 = vsel %vm472, %v468, 0.0
      %v480 = vadd.f32 %v478, %v479
      %481 = vadd.xlane.f32.xlu0 %v480
      %v482 = vpop.xlane.xlu0 %481
      %v483 = vrcp.pop 484.0
      %v484 = vmul.f32 %v476, %v483
      %v485 = vmul.f32 %v482, %v483
      %v486 = vsub.f32 %v419, %v484
      %v487 = vsub.f32 %v421, %v484
      %v488 = vsub.f32 %v462, %v484
      %v489 = vsub.f32 %v464, %v484
      %v490 = vsub.f32 %v423, %v485
      %v491 = vsub.f32 %v425, %v485
      %v492 = vsub.f32 %v466, %v485
      %v493 = vsub.f32 %v468, %v485
      %v494 = vmul.f32 %v486, %v486
      %v495 = vmul.f32 %v487, %v487
      %v496 = vmul.f32 %v488, %v488
      %v497 = vmul.f32 %v489, %v489
      %v498 = vmul.f32 %v490, %v490
      %v499 = vmul.f32 %v491, %v491
      %v500 = vmul.f32 %v492, %v492
      %v501 = vmul.f32 %v493, %v493
      %v502 = vadd.f32 %v494, %v495
      %v503 = vadd.f32 %v502, %v496
      %v504 = vsel %vm472, %v497, 0.0
      %v505 = vadd.f32 %v503, %v504
      %506 = vadd.xlane.f32.xlu0 %v505
      %v507 = vpop.xlane.xlu0 %506
      %v508 = vadd.f32 %v498, %v499
      %v509 = vadd.f32 %v508, %v500
      %v510 = vsel %vm472, %v501, 0.0
      %v511 = vadd.f32 %v509, %v510
      %512 = vadd.xlane.f32.xlu0 %v511
      %v513 = vpop.xlane.xlu0 %512
      %v514 = vmul.f32 %v507, %v483
      %v515 = vmul.f32 %v513, %v483
      %v516 = vadd.f32 %v514, 1e-05
      %v517 = vadd.f32 %v515, 1e-05
      %v518 = vrsqrt.pop %v516
      %v519 = vrsqrt.pop %v517
      %v520 = vmul.f32 %v486, %v518
      %v521 = vmul.f32 %v487, %v518
      %v522 = vmul.f32 %v488, %v518
      %v523 = vmul.f32 %v489, %v518
      %v524 = vmul.f32 %v490, %v519
      %v525 = vmul.f32 %v491, %v519
      %v526 = vmul.f32 %v492, %v519
      %v527 = vmul.f32 %v493, %v519
      %vm528 = vcmp.ge.f32.partialorder %v520, 0.0
      %vm529 = vcmp.ge.f32.partialorder %v521, 0.0
      %vm530 = vcmp.ge.f32.partialorder %v522, 0.0
      %vm531 = vcmp.ge.f32.partialorder %v523, 0.0
      %vm532 = vcmp.ge.f32.partialorder %v524, 0.0
      %vm533 = vcmp.ge.f32.partialorder %v525, 0.0
      %vm534 = vcmp.ge.f32.partialorder %v526, 0.0
      %vm535 = vcmp.ge.f32.partialorder %v527, 0.0
      %v536 = vmul.f32 %v520, 0.2
      %v537 = vmul.f32 %v521, 0.2
      %v538 = vmul.f32 %v522, 0.2
      %v539 = vmul.f32 %v523, 0.2
      %v540 = vmul.f32 %v524, 0.2
      %v541 = vmul.f32 %v525, 0.2
      %v542 = vmul.f32 %v526, 0.2
      %v543 = vmul.f32 %v527, 0.2
      %v544 = vsel %vm528, %v520, %v536
      %v545 = vsel %vm529, %v521, %v537
      %v546 = vsel %vm530, %v522, %v538
      %v547 = vsel %vm531, %v523, %v539
      %v548 = vsel %vm532, %v524, %v540
      %v549 = vsel %vm533, %v525, %v541
      %v550 = vsel %vm534, %v526, %v542
      %v551 = vsel %vm535, %v527, %v543
      %552 = vst [vmem:[%s170] sm:$0xff] %v544
      %553 = vst [vmem:[%s170 + $0x8] sm:$0xff] %v545
      %554 = vst [vmem:[%s170 + $0x10] sm:$0xff] %v546
      %555 = vst.msk [vmem:[%s170 + $0x18] sm:$0xff] %vm472, %v547
      %556 = vst [vmem:[%s170 + $0x20] sm:$0xff] %v548
      %557 = vst [vmem:[%s170 + $0x28] sm:$0xff] %v549
      %558 = vst [vmem:[%s170 + $0x30] sm:$0xff] %v550
      %559 = vst.msk [vmem:[%s170 + $0x38] sm:$0xff] %vm472, %v551
      %p560 = scmp.lt.s32.totalorder %s14, 1
      %s561 = scalar_select %p560, %s14, 1
      %s562 = smul.addr %s561, 8
      %s563 = smul.addr %s562, 8
      %s564 = scalar_lea.vmem %s3, %s563
      // Predicated region
      $region33: #{discriminator_forward.5} parent=31 // pred_check
        %p565 = pneg %p100
      $region34: #{discriminator_forward.5} parent=31 // pred_check_branch
        %567 = sbr.rel (%p565) target = $region36
      $region35: #{discriminator_forward.5} parent=31 // pred_region
        _
      $region36: #{discriminator_forward.5} parent=31 // pred_fallthru
        _
    $region32: #{discriminator_forward.5} parent=5 // pred_fallthru
      _
    %p568 = scmp.le.s32.totalorder 2, %s9
    // Predicated region
    $region37: #{discriminator_forward.5} parent=5 // pred_check
      %p569 = pneg %p568
    $region38: #{discriminator_forward.5} parent=5 // pred_check_branch
      %571 = sbr.rel (%p569) target = $region40
    $region39: #{discriminator_forward.5} parent=5 // pred_region
      %s572 = ssub.s32 %s9, 2
      // Predicated region
      $region41: #{discriminator_forward.5} parent=39 // pred_check
        %p573 = pneg %p106
      $region42: #{discriminator_forward.5} parent=39 // pred_check_branch
        %575 = sbr.rel (%p573) target = $region44
      $region43: #{discriminator_forward.5} parent=39 // pred_region
        %p576 = scmp.lt.s32.totalorder %s15, 1
        %s577 = scalar_select %p576, %s15, 1
        %s578 = smul.addr %s577, 8
        %s579 = smul.addr %s578, 8
        %s580 = scalar_lea.vmem %s3, %s579
      $region44: #{discriminator_forward.5} parent=39 // pred_fallthru
        _
    $region40: #{discriminator_forward.5} parent=5 // pred_fallthru
      _
  $region6: #{discriminator_forward.5} parent=0 // loop_footer
    %s13 = sadd.s32 1, %s9
  $region7: #{discriminator_forward.5} parent=0 // loop_footer_branch
    %8 = sbr.rel target = $region3
  $region8: #{discriminator_forward.5} parent=0 // loop_exit
    _

// kernel: discriminator_forward.6
$region0: #{discriminator_forward.6}
  #allocation0 [shape = 'u32[]', space=smem, size = 0x4, offset = 0x4, fixed_abs, tag = 'smem constant byte address 0x4 - core index']
  #allocation1 [shape = 'u32[144,128]{1,0:T(1,128)}', space=vmem, size = 0x12000, scoped, tag = 'internal scratch']
  %s0 = inlined_call_operand.vmem [shape: bf16[32,256], index: 0, kind: input, shape index: {}]
  %s1 = inlined_call_operand.vmem [shape: f32[32,1], index: 1, kind: input, shape index: {}]
  %s2 = inlined_call_operand.vmem [shape: bf16[2,256,100], index: 2, kind: input, shape index: {}]
  %s3 = inlined_call_operand.vmem [shape: f32[2,32,100], index: 3, kind: output, shape index: {}]
  %s4 = sld [smem:[#allocation0]]
  $region45: #{discriminator_forward.6} parent=0
    _
  %s6 = ssub.s32 1, %s4
  %s7 = scalar_select 0, %s6, %s4
  loop: start=0, step=1, limit=4
  $region2: #{discriminator_forward.6} parent=0 // loop_pre_header
    _
  $region3: #{discriminator_forward.6} parent=0 // loop_header
    %s9 = sphi 0, %s13
    %p10 = scmp.ge.s32.totalorder %s9, 4
    %s17 = sphi 0, %s17
    %s19 = sphi 0, %s17
    %s20 = sphi 0, %s19
    %s34 = sphi 0, %s20
    %s38 = sphi 0, %s38
    %s40 = sphi 0, %s38
    %s41 = sphi 0, %s40
    %s55 = sphi 0, %s41
    %s61 = sphi 0, %s63
    %s64 = sphi 0, %s61
    %s65 = sphi 0, %s64
    %s81 = sphi 0, %s65
    %s87 = sphi 0, %s89
    %s90 = sphi 0, %s87
    %s91 = sphi 0, %s90
    %s107 = sphi 0, %s91
  $region4: #{discriminator_forward.6} parent=0 // loop_header_branch
    %12 = sbr.rel (%p10) target = $region8
  $region5: #{discriminator_forward.6} parent=0 // loop_body
    %s14 = ssub.s32 %s9, 1
    %s15 = ssub.s32 %s9, 2
    %s16 = sadd.s32 %s9, 1
    %s18 = sadd.s32 %s17, 1
    %p21 = scmp.eq.s32.totalorder %s9, 1
    %p22 = scmp.ne.s32.totalorder %s17, %s19
    %p23 = scmp.eq.s32.totalorder %s9, 0
    %p24 = por %p22, %p23
    %p25 = scmp.ne.s32.totalorder %s17, %s19
    %p26 = scmp.eq.s32.totalorder %s14, 1
    %p27 = por %p25, %p26
    %p28 = scmp.ne.s32.totalorder %s19, %s20
    %p29 = scmp.eq.s32.totalorder %s14, 0
    %p30 = por %p28, %p29
    %p31 = scmp.ne.s32.totalorder %s19, %s20
    %p32 = scmp.eq.s32.totalorder %s15, 1
    %p33 = por %p31, %p32
    %p35 = scmp.ne.s32.totalorder %s20, %s34
    %p36 = scmp.eq.s32.totalorder %s15, 0
    %p37 = por %p35, %p36
    %s39 = sadd.s32 %s38, 1
    %p42 = scmp.eq.s32.totalorder %s9, 1
    %p43 = scmp.ne.s32.totalorder %s38, %s40
    %p44 = scmp.eq.s32.totalorder %s9, 0
    %p45 = por %p43, %p44
    %p46 = scmp.ne.s32.totalorder %s38, %s40
    %p47 = scmp.eq.s32.totalorder %s14, 1
    %p48 = por %p46, %p47
    %p49 = scmp.ne.s32.totalorder %s40, %s41
    %p50 = scmp.eq.s32.totalorder %s14, 0
    %p51 = por %p49, %p50
    %p52 = scmp.ne.s32.totalorder %s40, %s41
    %p53 = scmp.eq.s32.totalorder %s15, 1
    %p54 = por %p52, %p53
    %p56 = scmp.ne.s32.totalorder %s41, %s55
    %p57 = scmp.eq.s32.totalorder %s15, 0
    %p58 = por %p56, %p57
    %s59 = ssub.s32 %s9, %s16
    %p60 = scmp.eq.s32.totalorder %s59, 0
    %s62 = sadd.s32 %s61, 1
    %s63 = scalar_select %p60, %s61, %s62
    %p66 = pneg %p60
    %p67 = scmp.eq.s32.totalorder %s9, 1
    %p68 = por %p66, %p67
    %p69 = scmp.ne.s32.totalorder %s61, %s64
    %p70 = scmp.eq.s32.totalorder %s9, 0
    %p71 = por %p69, %p70
    %p72 = scmp.ne.s32.totalorder %s61, %s64
    %p73 = scmp.eq.s32.totalorder %s14, 1
    %p74 = por %p72, %p73
    %p75 = scmp.ne.s32.totalorder %s64, %s65
    %p76 = scmp.eq.s32.totalorder %s14, 0
    %p77 = por %p75, %p76
    %p78 = scmp.ne.s32.totalorder %s64, %s65
    %p79 = scmp.eq.s32.totalorder %s15, 1
    %p80 = por %p78, %p79
    %p82 = scmp.ne.s32.totalorder %s65, %s81
    %p83 = scmp.eq.s32.totalorder %s15, 0
    %p84 = por %p82, %p83
    %s85 = ssub.s32 %s9, %s16
    %p86 = scmp.eq.s32.totalorder %s85, 0
    %s88 = sadd.s32 %s87, 1
    %s89 = scalar_select %p86, %s87, %s88
    %p92 = pneg %p86
    %p93 = scmp.eq.s32.totalorder %s9, 1
    %p94 = por %p92, %p93
    %p95 = scmp.ne.s32.totalorder %s87, %s90
    %p96 = scmp.eq.s32.totalorder %s9, 0
    %p97 = por %p95, %p96
    %p98 = scmp.ne.s32.totalorder %s87, %s90
    %p99 = scmp.eq.s32.totalorder %s14, 1
    %p100 = por %p98, %p99
    %p101 = scmp.ne.s32.totalorder %s90, %s91
    %p102 = scmp.eq.s32.totalorder %s14, 0
    %p103 = por %p101, %p102
    %p104 = scmp.ne.s32.totalorder %s90, %s91
    %p105 = scmp.eq.s32.totalorder %s15, 1
    %p106 = por %p104, %p105
    %p108 = scmp.ne.s32.totalorder %s91, %s107
    %p109 = scmp.eq.s32.totalorder %s15, 0
    %p110 = por %p108, %p109
    %p111 = scmp.le.s32.totalorder 1, %s9
    %p112 = scmp.lt.s32.totalorder %s9, 3
    %p113 = pnand %p111, %p112
    %p114 = pneg %p113
    // Predicated region
    $region9: #{discriminator_forward.6} parent=5 // pred_check
      _
    $region10: #{discriminator_forward.6} parent=5 // pred_check_branch
      %116 = sbr.rel (%p113) target = $region12
    $region11: #{discriminator_forward.6} parent=5 // pred_region
      %s117 = ssub.s32 %s9, 1
      // Predicated region
      $region13: #{discriminator_forward.6} parent=11 // pred_check
        %p118 = pneg %p30
      $region14: #{discriminator_forward.6} parent=11 // pred_check_branch
        %120 = sbr.rel (%p118) target = $region16
      $region15: #{discriminator_forward.6} parent=11 // pred_region
        _
      $region16: #{discriminator_forward.6} parent=11 // pred_fallthru
        _
      // Predicated region
      $region17: #{discriminator_forward.6} parent=11 // pred_check
        %p121 = pneg %p51
      $region18: #{discriminator_forward.6} parent=11 // pred_check_branch
        %123 = sbr.rel (%p121) target = $region20
      $region19: #{discriminator_forward.6} parent=11 // pred_region
        _
      $region20: #{discriminator_forward.6} parent=11 // pred_fallthru
        _
    $region12: #{discriminator_forward.6} parent=5 // pred_fallthru
      _
    %p124 = scmp.lt.s32.totalorder %s9, 2
    // Predicated region
    $region21: #{discriminator_forward.6} parent=5 // pred_check
      %p125 = pneg %p124
    $region22: #{discriminator_forward.6} parent=5 // pred_check_branch
      %127 = sbr.rel (%p125) target = $region24
    $region23: #{discriminator_forward.6} parent=5 // pred_region
      // Predicated region
      $region25: #{discriminator_forward.6} parent=23 // pred_check
        %p128 = pneg %p71
      $region26: #{discriminator_forward.6} parent=23 // pred_check_branch
        %130 = sbr.rel (%p128) target = $region28
      $region27: #{discriminator_forward.6} parent=23 // pred_region
        %p131 = scmp.lt.s32.totalorder %s9, 1
        %s132 = scalar_select %p131, %s9, 1
        %s133 = smul.addr %s132, 32
        %s134 = smul.addr %s133, 4
        %s135 = scalar_lea.vmem %s2, %s134
      $region28: #{discriminator_forward.6} parent=23 // pred_fallthru
        _
    $region24: #{discriminator_forward.6} parent=5 // pred_fallthru
      _
    %p136 = scmp.le.s32.totalorder 1, %s9
    %p137 = scmp.lt.s32.totalorder %s9, 3
    %p138 = pnand %p136, %p137
    %p139 = pneg %p138
    // Predicated region
    $region29: #{discriminator_forward.6} parent=5 // pred_check
      _
    $region30: #{discriminator_forward.6} parent=5 // pred_check_branch
      %141 = sbr.rel (%p138) target = $region32
    $region31: #{discriminator_forward.6} parent=5 // pred_region
      %s142 = ssub.s32 %s9, 1
      %p143 = pneg %p30
      %p144 = pneg %p27
      %p145 = pneg %p51
      %p146 = pneg %p48
      %p147 = scmp.lt.s32.totalorder %s14, 1
      %s148 = scalar_select %p147, %s14, 1
      %s149 = smul.addr %s148, 32
      %s150 = smul.addr %s149, 4
      %s151 = scalar_lea.vmem %s2, %s150
      %p152 = pneg %p77
      %p153 = pneg %p74
      %p154 = pneg %p103
      %p155 = pneg %p100
      %p156 = scmp.lt.s32.totalorder %s14, 1
      %s157 = scalar_select %p156, %s14, 1
      %s158 = smul.addr %s157, 4
      %s159 = smul.addr %s158, 8
      %s160 = scalar_lea.vmem %s3, %s159
      %p161 = scmp.lt.s32.totalorder %s14, 1
      %s162 = scalar_select %p161, %s14, 1
      %s163 = smul.addr %s162, 32
      %s164 = smul.addr %s163, 4
      %s165 = scalar_lea.vmem %s2, %s164
      %p166 = scmp.lt.s32.totalorder %s14, 1
      %s167 = scalar_select %p166, %s14, 1
      %s168 = smul.addr %s167, 4
      %s169 = smul.addr %s168, 8
      %s170 = scalar_lea.vmem %s3, %s169
      %v172 = vld [vmem:[%s0] sm:$0xff]
      %v173 = vld [vmem:[%s0 + $0x8] sm:$0xff]
      %v174 = vld [vmem:[%s0 + $0x10] sm:$0xff]
      %v175 = vld [vmem:[%s0 + $0x18] sm:$0xff]
      %v176 = vld [vmem:[%s165] sm:$0xf]
      %v177 = vld [vmem:[%s165 + $0x4] sm:$0xf]
      %v178 = vld [vmem:[%s165 + $0x8] sm:$0xf]
      %v179 = vld [vmem:[%s165 + $0xc] sm:$0xf]
      %v180 = vld [vmem:[%s165 + $0x10] sm:$0xf]
      %v181 = vld [vmem:[%s165 + $0x14] sm:$0xf]
      %v182 = vld [vmem:[%s165 + $0x18] sm:$0xf]
      %v183 = vld [vmem:[%s165 + $0x1c] sm:$0xf]
      %v184 = vld [vmem:[%s165 + $0x20] sm:$0xf]
      %v185 = vld [vmem:[%s165 + $0x24] sm:$0xf]
      %v186 = vld [vmem:[%s165 + $0x28] sm:$0xf]
      %v187 = vld [vmem:[%s165 + $0x2c] sm:$0xf]
      %v188 = vld [vmem:[%s165 + $0x30] sm:$0xf]
      %v189 = vld [vmem:[%s165 + $0x34] sm:$0xf]
      %v190 = vld [vmem:[%s165 + $0x38] sm:$0xf]
      %v191 = vld [vmem:[%s165 + $0x3c] sm:$0xf]
      %v192 = vld [vmem:[%s165 + $0x40] sm:$0xf]
      %v193 = vld [vmem:[%s165 + $0x44] sm:$0xf]
      %v194 = vld [vmem:[%s165 + $0x48] sm:$0xf]
      %v195 = vld [vmem:[%s165 + $0x4c] sm:$0xf]
      %v196 = vld [vmem:[%s165 + $0x50] sm:$0xf]
      %v197 = vld [vmem:[%s165 + $0x54] sm:$0xf]
      %v198 = vld [vmem:[%s165 + $0x58] sm:$0xf]
      %v199 = vld [vmem:[%s165 + $0x5c] sm:$0xf]
      %v200 = vld [vmem:[%s165 + $0x60] sm:$0xf]
      %v201 = vld [vmem:[%s165 + $0x64] sm:$0xf]
      %v202 = vld [vmem:[%s165 + $0x68] sm:$0xf]
      %v203 = vld [vmem:[%s165 + $0x6c] sm:$0xf]
      %v204 = vld [vmem:[%s165 + $0x70] sm:$0xf]
      %v205 = vld [vmem:[%s165 + $0x74] sm:$0xf]
      %v206 = vld [vmem:[%s165 + $0x78] sm:$0xf]
      %v207 = vld [vmem:[%s165 + $0x7c] sm:$0xf]
      %v208 = vld [vmem:[%s1] sm:$0xff]
      %v209 = vld [vmem:[%s1 + $0x8] sm:$0xff]
      %v210 = vld [vmem:[%s1 + $0x10] sm:$0xff]
      %v211 = vld [vmem:[%s1 + $0x18] sm:$0xff]
      %213 = vset.pattern.permute.xlu0 0
      %214 = vperm.xlu0 %213, %v208
      %v215 = vpop.permute.xlu0 %214
      %218 = vset.pattern.permute.xlu0 0
      %219 = vperm.xlu0 %218, %v209
      %v220 = vpop.permute.xlu0 %219
      %223 = vset.pattern.permute.xlu0 0
      %224 = vperm.xlu0 %223, %v210
      %v225 = vpop.permute.xlu0 %224
      %228 = vset.pattern.permute.xlu0 0
      %229 = vperm.xlu0 %228, %v211
      %v230 = vpop.permute.xlu0 %229
      %v236 = vunpack.c.l.b16 %v172
      %v237 = vunpack.c.h.b16 %v172
      %v238 = vunpack.c.l.b16 %v173
      %v239 = vunpack.c.h.b16 %v173
      %v240 = vunpack.c.l.b16 %v174
      %v241 = vunpack.c.h.b16 %v174
      %v242 = vunpack.c.l.b16 %v175
      %v243 = vunpack.c.h.b16 %v175
      %v244 = vpack.c.b16 %v238, %v236
      %v245 = vpack.c.b16 %v239, %v237
      %v246 = vpack.c.b16 %v242, %v240
      %v247 = vpack.c.b16 %v243, %v241
      %v284 = vunpack.c.l.b16 %v176
      %v285 = vunpack.c.l.b16 %v177
      %v286 = vunpack.c.l.b16 %v178
      %v287 = vunpack.c.l.b16 %v179
      %v288 = vunpack.c.l.b16 %v180
      %v289 = vunpack.c.l.b16 %v181
      %v290 = vunpack.c.l.b16 %v182
      %v291 = vunpack.c.l.b16 %v183
      %v292 = vunpack.c.l.b16 %v184
      %v293 = vunpack.c.l.b16 %v185
      %v294 = vunpack.c.l.b16 %v186
      %v295 = vunpack.c.l.b16 %v187
      %v296 = vunpack.c.l.b16 %v188
      %v297 = vunpack.c.l.b16 %v189
      %v298 = vunpack.c.l.b16 %v190
      %v299 = vunpack.c.l.b16 %v191
      %v300 = vunpack.c.l.b16 %v192
      %v301 = vunpack.c.l.b16 %v193
      %v302 = vunpack.c.l.b16 %v194
      %v303 = vunpack.c.l.b16 %v195
      %v304 = vunpack.c.l.b16 %v196
      %v305 = vunpack.c.l.b16 %v197
      %v306 = vunpack.c.l.b16 %v198
      %v307 = vunpack.c.l.b16 %v199
      %v308 = vunpack.c.l.b16 %v200
      %v309 = vunpack.c.l.b16 %v201
      %v310 = vunpack.c.l.b16 %v202
      %v311 = vunpack.c.l.b16 %v203
      %v312 = vunpack.c.l.b16 %v204
      %v313 = vunpack.c.l.b16 %v205
      %v314 = vunpack.c.l.b16 %v206
      %v315 = vunpack.c.l.b16 %v207
      %v316 = vpack.c.b16 %v285, %v284
      %v317 = vpack.c.b16 %v287, %v286
      %v318 = vpack.c.b16 %v289, %v288
      %v319 = vpack.c.b16 %v291, %v290
      %v320 = vpack.c.b16 %v293, %v292
      %v321 = vpack.c.b16 %v295, %v294
      %v322 = vpack.c.b16 %v297, %v296
      %v323 = vpack.c.b16 %v299, %v298
      %v324 = vpack.c.b16 %v301, %v300
      %v325 = vpack.c.b16 %v303, %v302
      %v326 = vpack.c.b16 %v305, %v304
      %v327 = vpack.c.b16 %v307, %v306
      %v328 = vpack.c.b16 %v309, %v308
      %v329 = vpack.c.b16 %v311, %v310
      %v330 = vpack.c.b16 %v313, %v312
      %v331 = vpack.c.b16 %v315, %v314
      %348 = vmatprep.subr.bf16.mxu0 0
      %349 = vmatpush1.bf16.msra.mxu0 %v323
      %350 = vmatprep.subr.bf16.mxu0 0
      %351 = vmatpush1.bf16.msra.mxu0 %v322
      %352 = vmatprep.subr.bf16.mxu0 0
      %353 = vmatpush1.bf16.msra.mxu0 %v321
      %354 = vmatprep.subr.bf16.mxu0 0
      %355 = vmatpush1.bf16.msra.mxu0 %v320
      %356 = vmatprep.subr.bf16.mxu0 0
      %357 = vmatpush1.bf16.msra.mxu0 %v319
      %358 = vmatprep.subr.bf16.mxu0 0
      %359 = vmatpush1.bf16.msra.mxu0 %v318
      %360 = vmatprep.subr.bf16.mxu0 0
      %361 = vmatpush1.bf16.msra.mxu0 %v317
      %362 = vmatprep.subr.bf16.mxu0 0
      %363 = vmatpush1.bf16.msra.mxu0 %v316
      %364 = vmatprep.subr.bf16.mxu0 0
      %365 = vmatpush2.bf16.msra.mxu0 %v331
      %366 = vmatprep.subr.bf16.mxu0 0
      %367 = vmatpush2.bf16.msra.mxu0 %v330
      %368 = vmatprep.subr.bf16.mxu0 0
      %369 = vmatpush2.bf16.msra.mxu0 %v329
      %370 = vmatprep.subr.bf16.mxu0 0
      %371 = vmatpush2.bf16.msra.mxu0 %v328
      %372 = vmatprep.subr.bf16.mxu0 0
      %373 = vmatpush2.bf16.msra.mxu0 %v327
      %374 = vmatprep.subr.bf16.mxu0 0
      %375 = vmatpush2.bf16.msra.mxu0 %v326
      %376 = vmatprep.subr.bf16.mxu0 0
      %377 = vmatpush2.bf16.msra.mxu0 %v325
      %378 = vmatprep.subr.bf16.mxu0 0
      %379 = vmatpush2.bf16.msra.mxu0 %v324
      %380 = vmatprep.mubr.bf16.mxu0 %v245
      %381 = vmatmul.mubr.bf16.gmra.mxu0 %v244
      %v382 = vpop.f32.mrf.mxu0
      %v383 = vadd.f32 %v215, %v382
      %v384 = vpop.f32.mrf.mxu0
      %v385 = vpop.f32.mrf.mxu0
      %v386 = vadd.f32 %v220, %v385
      %v387 = vpop.f32.mrf.mxu0
      %388 = vmatprep.mubr.bf16.mxu0 %v247
      %389 = vmatmul.mubr.bf16.gmra.mxu0 %v246
      %v390 = vpop.f32.mrf.mxu0
      %v391 = vadd.f32 %v225, %v390
      %v392 = vpop.f32.mrf.mxu0
      %v393 = vpop.f32.mrf.mxu0
      %v394 = vadd.f32 %v230, %v393
      %v395 = vpop.f32.mrf.mxu0
      %396 = vdwg.mxu0
      %vm397 = vcmask 818176
      %v398 = vsel %vm397, %v383, 0.0
      %399 = vadd.xlane.f32.xlu0 %v398
      %v400 = vpop.xlane.xlu0 %399
      %v401 = vsel %vm397, %v386, 0.0
      %402 = vadd.xlane.f32.xlu0 %v401
      %v403 = vpop.xlane.xlu0 %402
      %v404 = vsel %vm397, %v391, 0.0
      %405 = vadd.xlane.f32.xlu0 %v404
      %v406 = vpop.xlane.xlu0 %405
      %v407 = vsel %vm397, %v394, 0.0
      %408 = vadd.xlane.f32.xlu0 %v407
      %v409 = vpop.xlane.xlu0 %408
      %v410 = vrcp.pop 100.0
      %v411 = vmul.f32 %v400, %v410
      %v412 = vmul.f32 %v403, %v410
      %v413 = vmul.f32 %v406, %v410
      %v414 = vmul.f32 %v409, %v410
      %v415 = vsub.f32 %v383, %v411
      %v416 = vsub.f32 %v386, %v412
      %v417 = vsub.f32 %v391, %v413
      %v418 = vsub.f32 %v394, %v414
      %v419 = vmul.f32 %v415, %v415
      %v420 = vmul.f32 %v416, %v416
      %v421 = vmul.f32 %v417, %v417
      %v422 = vmul.f32 %v418, %v418
      %v423 = vsel %vm397, %v419, 0.0
      %424 = vadd.xlane.f32.xlu0 %v423
      %v425 = vpop.xlane.xlu0 %424
      %v426 = vsel %vm397, %v420, 0.0
      %427 = vadd.xlane.f32.xlu0 %v426
      %v428 = vpop.xlane.xlu0 %427
      %v429 = vsel %vm397, %v421, 0.0
      %430 = vadd.xlane.f32.xlu0 %v429
      %v431 = vpop.xlane.xlu0 %430
      %v432 = vsel %vm397, %v422, 0.0
      %433 = vadd.xlane.f32.xlu0 %v432
      %v434 = vpop.xlane.xlu0 %433
      %v435 = vmul.f32 %v425, %v410
      %v436 = vmul.f32 %v428, %v410
      %v437 = vmul.f32 %v431, %v410
      %v438 = vmul.f32 %v434, %v410
      %v439 = vadd.f32 %v435, 1e-05
      %v440 = vadd.f32 %v436, 1e-05
      %v441 = vadd.f32 %v437, 1e-05
      %v442 = vadd.f32 %v438, 1e-05
      %v443 = vrsqrt.pop %v439
      %v444 = vrsqrt.pop %v440
      %v445 = vrsqrt.pop %v441
      %v446 = vrsqrt.pop %v442
      %v447 = vmul.f32 %v415, %v443
      %v448 = vmul.f32 %v416, %v444
      %v449 = vmul.f32 %v417, %v445
      %v450 = vmul.f32 %v418, %v446
      %vm451 = vcmp.ge.f32.partialorder %v447, 0.0
      %vm452 = vcmp.ge.f32.partialorder %v448, 0.0
      %vm453 = vcmp.ge.f32.partialorder %v449, 0.0
      %vm454 = vcmp.ge.f32.partialorder %v450, 0.0
      %v455 = vmul.f32 %v447, 0.2
      %v456 = vmul.f32 %v448, 0.2
      %v457 = vmul.f32 %v449, 0.2
      %v458 = vmul.f32 %v450, 0.2
      %v459 = vsel %vm451, %v447, %v455
      %v460 = vsel %vm452, %v448, %v456
      %v461 = vsel %vm453, %v449, %v457
      %v462 = vsel %vm454, %v450, %v458
      %463 = vst.msk [vmem:[%s170] sm:$0xff] %vm397, %v459
      %464 = vst.msk [vmem:[%s170 + $0x8] sm:$0xff] %vm397, %v460
      %465 = vst.msk [vmem:[%s170 + $0x10] sm:$0xff] %vm397, %v461
      %466 = vst.msk [vmem:[%s170 + $0x18] sm:$0xff] %vm397, %v462
      %p467 = scmp.lt.s32.totalorder %s14, 1
      %s468 = scalar_select %p467, %s14, 1
      %s469 = smul.addr %s468, 4
      %s470 = smul.addr %s469, 8
      %s471 = scalar_lea.vmem %s3, %s470
      // Predicated region
      $region33: #{discriminator_forward.6} parent=31 // pred_check
        %p472 = pneg %p100
      $region34: #{discriminator_forward.6} parent=31 // pred_check_branch
        %474 = sbr.rel (%p472) target = $region36
      $region35: #{discriminator_forward.6} parent=31 // pred_region
        _
      $region36: #{discriminator_forward.6} parent=31 // pred_fallthru
        _
    $region32: #{discriminator_forward.6} parent=5 // pred_fallthru
      _
    %p475 = scmp.le.s32.totalorder 2, %s9
    // Predicated region
    $region37: #{discriminator_forward.6} parent=5 // pred_check
      %p476 = pneg %p475
    $region38: #{discriminator_forward.6} parent=5 // pred_check_branch
      %478 = sbr.rel (%p476) target = $region40
    $region39: #{discriminator_forward.6} parent=5 // pred_region
      %s479 = ssub.s32 %s9, 2
      // Predicated region
      $region41: #{discriminator_forward.6} parent=39 // pred_check
        %p480 = pneg %p106
      $region42: #{discriminator_forward.6} parent=39 // pred_check_branch
        %482 = sbr.rel (%p480) target = $region44
      $region43: #{discriminator_forward.6} parent=39 // pred_region
        %p483 = scmp.lt.s32.totalorder %s15, 1
        %s484 = scalar_select %p483, %s15, 1
        %s485 = smul.addr %s484, 4
        %s486 = smul.addr %s485, 8
        %s487 = scalar_lea.vmem %s3, %s486
      $region44: #{discriminator_forward.6} parent=39 // pred_fallthru
        _
    $region40: #{discriminator_forward.6} parent=5 // pred_fallthru
      _
  $region6: #{discriminator_forward.6} parent=0 // loop_footer
    %s13 = sadd.s32 1, %s9
  $region7: #{discriminator_forward.6} parent=0 // loop_footer_branch
    %8 = sbr.rel target = $region3
  $region8: #{discriminator_forward.6} parent=0 // loop_exit
    _

// kernel: discriminator_forward.7
$region0: #{discriminator_forward.7}
  #allocation0 [shape = 'u32[]', space=smem, size = 0x4, offset = 0x4, fixed_abs, tag = 'smem constant byte address 0x4 - core index']
  #allocation1 [shape = 'u32[144,128]{1,0:T(1,128)}', space=vmem, size = 0x12000, scoped, tag = 'internal scratch']
  #allocation2 [shape = 'f32[1,1]{1,0:T(1,128)S(1)}', space=vmem, size = 0x200, scoped, tag = 'scoped memory for discriminator_forward.7']
  %s0 = inlined_call_operand.vmem [shape: bf16[64,512], index: 0, kind: input, shape index: {}]
  %s1 = inlined_call_operand.vmem [shape: f32[64,1], index: 1, kind: input, shape index: {}]
  %s2 = inlined_call_operand.vmem [shape: f32[64,16], index: 2, kind: input, shape index: {}]
  %s3 = inlined_call_operand.<no memory space> [shape: f32[1,1], index: 3, kind: input, shape index: {}]
  %s4 = inlined_call_operand.vmem [shape: bf16[2,512,16], index: 4, kind: input, shape index: {}]
  %s5 = inlined_call_operand.vmem [shape: f32[2,64,16], index: 5, kind: output, shape index: {0}]
  %s6 = inlined_call_operand.vmem [shape: f32[2,1,1], index: 6, kind: output, shape index: {1}]
  %7 = xla_tuple %s5, %s6
  %s8 = sld [smem:[#allocation0]]
  $region61: #{discriminator_forward.7} parent=0
    _
  %s10 = ssub.s32 1, %s8
  %s11 = scalar_select 0, %s10, %s8
  %v12 = vstv %s3
  %13 = vst [vmem:[#allocation2] sm:$0x1] %v12
  loop: start=0, step=1, limit=4
  $region2: #{discriminator_forward.7} parent=0 // loop_pre_header
    _
  $region3: #{discriminator_forward.7} parent=0 // loop_header
    %s15 = sphi 0, %s19
    %p16 = scmp.ge.s32.totalorder %s15, 4
    %s23 = sphi 0, %s23
    %s25 = sphi 0, %s23
    %s26 = sphi 0, %s25
    %s40 = sphi 0, %s26
    %s44 = sphi 0, %s44
    %s46 = sphi 0, %s44
    %s47 = sphi 0, %s46
    %s61 = sphi 0, %s47
    %s65 = sphi 0, %s65
    %s67 = sphi 0, %s65
    %s68 = sphi 0, %s67
    %s82 = sphi 0, %s68
    %s86 = sphi 0, %s86
    %s88 = sphi 0, %s86
    %s89 = sphi 0, %s88
    %s103 = sphi 0, %s89
    %s109 = sphi 0, %s111
    %s112 = sphi 0, %s109
    %s113 = sphi 0, %s112
    %s129 = sphi 0, %s113
    %s135 = sphi 0, %s137
    %s138 = sphi 0, %s135
    %s139 = sphi 0, %s138
    %s155 = sphi 0, %s139
    %s161 = sphi 0, %s163
    %s164 = sphi 0, %s161
    %s165 = sphi 0, %s164
    %s181 = sphi 0, %s165
  $region4: #{discriminator_forward.7} parent=0 // loop_header_branch
    %18 = sbr.rel (%p16) target = $region8
  $region5: #{discriminator_forward.7} parent=0 // loop_body
    %s20 = ssub.s32 %s15, 1
    %s21 = ssub.s32 %s15, 2
    %s22 = sadd.s32 %s15, 1
    %s24 = sadd.s32 %s23, 1
    %p27 = scmp.eq.s32.totalorder %s15, 1
    %p28 = scmp.ne.s32.totalorder %s23, %s25
    %p29 = scmp.eq.s32.totalorder %s15, 0
    %p30 = por %p28, %p29
    %p31 = scmp.ne.s32.totalorder %s23, %s25
    %p32 = scmp.eq.s32.totalorder %s20, 1
    %p33 = por %p31, %p32
    %p34 = scmp.ne.s32.totalorder %s25, %s26
    %p35 = scmp.eq.s32.totalorder %s20, 0
    %p36 = por %p34, %p35
    %p37 = scmp.ne.s32.totalorder %s25, %s26
    %p38 = scmp.eq.s32.totalorder %s21, 1
    %p39 = por %p37, %p38
    %p41 = scmp.ne.s32.totalorder %s26, %s40
    %p42 = scmp.eq.s32.totalorder %s21, 0
    %p43 = por %p41, %p42
    %s45 = sadd.s32 %s44, 1
    %p48 = scmp.eq.s32.totalorder %s15, 1
    %p49 = scmp.ne.s32.totalorder %s44, %s46
    %p50 = scmp.eq.s32.totalorder %s15, 0
    %p51 = por %p49, %p50
    %p52 = scmp.ne.s32.totalorder %s44, %s46
    %p53 = scmp.eq.s32.totalorder %s20, 1
    %p54 = por %p52, %p53
    %p55 = scmp.ne.s32.totalorder %s46, %s47
    %p56 = scmp.eq.s32.totalorder %s20, 0
    %p57 = por %p55, %p56
    %p58 = scmp.ne.s32.totalorder %s46, %s47
    %p59 = scmp.eq.s32.totalorder %s21, 1
    %p60 = por %p58, %p59
    %p62 = scmp.ne.s32.totalorder %s47, %s61
    %p63 = scmp.eq.s32.totalorder %s21, 0
    %p64 = por %p62, %p63
    %s66 = sadd.s32 %s65, 1
    %p69 = scmp.eq.s32.totalorder %s15, 1
    %p70 = scmp.ne.s32.totalorder %s65, %s67
    %p71 = scmp.eq.s32.totalorder %s15, 0
    %p72 = por %p70, %p71
    %p73 = scmp.ne.s32.totalorder %s65, %s67
    %p74 = scmp.eq.s32.totalorder %s20, 1
    %p75 = por %p73, %p74
    %p76 = scmp.ne.s32.totalorder %s67, %s68
    %p77 = scmp.eq.s32.totalorder %s20, 0
    %p78 = por %p76, %p77
    %p79 = scmp.ne.s32.totalorder %s67, %s68
    %p80 = scmp.eq.s32.totalorder %s21, 1
    %p81 = por %p79, %p80
    %p83 = scmp.ne.s32.totalorder %s68, %s82
    %p84 = scmp.eq.s32.totalorder %s21, 0
    %p85 = por %p83, %p84
    %s87 = sadd.s32 %s86, 1
    %p90 = scmp.eq.s32.totalorder %s15, 1
    %p91 = scmp.ne.s32.totalorder %s86, %s88
    %p92 = scmp.eq.s32.totalorder %s15, 0
    %p93 = por %p91, %p92
    %p94 = scmp.ne.s32.totalorder %s86, %s88
    %p95 = scmp.eq.s32.totalorder %s20, 1
    %p96 = por %p94, %p95
    %p97 = scmp.ne.s32.totalorder %s88, %s89
    %p98 = scmp.eq.s32.totalorder %s20, 0
    %p99 = por %p97, %p98
    %p100 = scmp.ne.s32.totalorder %s88, %s89
    %p101 = scmp.eq.s32.totalorder %s21, 1
    %p102 = por %p100, %p101
    %p104 = scmp.ne.s32.totalorder %s89, %s103
    %p105 = scmp.eq.s32.totalorder %s21, 0
    %p106 = por %p104, %p105
    %s107 = ssub.s32 %s15, %s22
    %p108 = scmp.eq.s32.totalorder %s107, 0
    %s110 = sadd.s32 %s109, 1
    %s111 = scalar_select %p108, %s109, %s110
    %p114 = pneg %p108
    %p115 = scmp.eq.s32.totalorder %s15, 1
    %p116 = por %p114, %p115
    %p117 = scmp.ne.s32.totalorder %s109, %s112
    %p118 = scmp.eq.s32.totalorder %s15, 0
    %p119 = por %p117, %p118
    %p120 = scmp.ne.s32.totalorder %s109, %s112
    %p121 = scmp.eq.s32.totalorder %s20, 1
    %p122 = por %p120, %p121
    %p123 = scmp.ne.s32.totalorder %s112, %s113
    %p124 = scmp.eq.s32.totalorder %s20, 0
    %p125 = por %p123, %p124
    %p126 = scmp.ne.s32.totalorder %s112, %s113
    %p127 = scmp.eq.s32.totalorder %s21, 1
    %p128 = por %p126, %p127
    %p130 = scmp.ne.s32.totalorder %s113, %s129
    %p131 = scmp.eq.s32.totalorder %s21, 0
    %p132 = por %p130, %p131
    %s133 = ssub.s32 %s15, %s22
    %p134 = scmp.eq.s32.totalorder %s133, 0
    %s136 = sadd.s32 %s135, 1
    %s137 = scalar_select %p134, %s135, %s136
    %p140 = pneg %p134
    %p141 = scmp.eq.s32.totalorder %s15, 1
    %p142 = por %p140, %p141
    %p143 = scmp.ne.s32.totalorder %s135, %s138
    %p144 = scmp.eq.s32.totalorder %s15, 0
    %p145 = por %p143, %p144
    %p146 = scmp.ne.s32.totalorder %s135, %s138
    %p147 = scmp.eq.s32.totalorder %s20, 1
    %p148 = por %p146, %p147
    %p149 = scmp.ne.s32.totalorder %s138, %s139
    %p150 = scmp.eq.s32.totalorder %s20, 0
    %p151 = por %p149, %p150
    %p152 = scmp.ne.s32.totalorder %s138, %s139
    %p153 = scmp.eq.s32.totalorder %s21, 1
    %p154 = por %p152, %p153
    %p156 = scmp.ne.s32.totalorder %s139, %s155
    %p157 = scmp.eq.s32.totalorder %s21, 0
    %p158 = por %p156, %p157
    %s159 = ssub.s32 %s15, %s22
    %p160 = scmp.eq.s32.totalorder %s159, 0
    %s162 = sadd.s32 %s161, 1
    %s163 = scalar_select %p160, %s161, %s162
    %p166 = pneg %p160
    %p167 = scmp.eq.s32.totalorder %s15, 1
    %p168 = por %p166, %p167
    %p169 = scmp.ne.s32.totalorder %s161, %s164
    %p170 = scmp.eq.s32.totalorder %s15, 0
    %p171 = por %p169, %p170
    %p172 = scmp.ne.s32.totalorder %s161, %s164
    %p173 = scmp.eq.s32.totalorder %s20, 1
    %p174 = por %p172, %p173
    %p175 = scmp.ne.s32.totalorder %s164, %s165
    %p176 = scmp.eq.s32.totalorder %s20, 0
    %p177 = por %p175, %p176
    %p178 = scmp.ne.s32.totalorder %s164, %s165
    %p179 = scmp.eq.s32.totalorder %s21, 1
    %p180 = por %p178, %p179
    %p182 = scmp.ne.s32.totalorder %s165, %s181
    %p183 = scmp.eq.s32.totalorder %s21, 0
    %p184 = por %p182, %p183
    %p185 = scmp.le.s32.totalorder 1, %s15
    %p186 = scmp.lt.s32.totalorder %s15, 3
    %p187 = pnand %p185, %p186
    %p188 = pneg %p187
    // Predicated region
    $region9: #{discriminator_forward.7} parent=5 // pred_check
      _
    $region10: #{discriminator_forward.7} parent=5 // pred_check_branch
      %190 = sbr.rel (%p187) target = $region12
    $region11: #{discriminator_forward.7} parent=5 // pred_region
      %s191 = ssub.s32 %s15, 1
      // Predicated region
      $region13: #{discriminator_forward.7} parent=11 // pred_check
        %p192 = pneg %p36
      $region14: #{discriminator_forward.7} parent=11 // pred_check_branch
        %194 = sbr.rel (%p192) target = $region16
      $region15: #{discriminator_forward.7} parent=11 // pred_region
        _
      $region16: #{discriminator_forward.7} parent=11 // pred_fallthru
        _
      // Predicated region
      $region17: #{discriminator_forward.7} parent=11 // pred_check
        %p195 = pneg %p57
      $region18: #{discriminator_forward.7} parent=11 // pred_check_branch
        %197 = sbr.rel (%p195) target = $region20
      $region19: #{discriminator_forward.7} parent=11 // pred_region
        _
      $region20: #{discriminator_forward.7} parent=11 // pred_fallthru
        _
      // Predicated region
      $region21: #{discriminator_forward.7} parent=11 // pred_check
        %p198 = pneg %p78
      $region22: #{discriminator_forward.7} parent=11 // pred_check_branch
        %200 = sbr.rel (%p198) target = $region24
      $region23: #{discriminator_forward.7} parent=11 // pred_region
        _
      $region24: #{discriminator_forward.7} parent=11 // pred_fallthru
        _
      // Predicated region
      $region25: #{discriminator_forward.7} parent=11 // pred_check
        %p201 = pneg %p99
      $region26: #{discriminator_forward.7} parent=11 // pred_check_branch
        %203 = sbr.rel (%p201) target = $region28
      $region27: #{discriminator_forward.7} parent=11 // pred_region
        _
      $region28: #{discriminator_forward.7} parent=11 // pred_fallthru
        _
    $region12: #{discriminator_forward.7} parent=5 // pred_fallthru
      _
    %p204 = scmp.lt.s32.totalorder %s15, 2
    // Predicated region
    $region29: #{discriminator_forward.7} parent=5 // pred_check
      %p205 = pneg %p204
    $region30: #{discriminator_forward.7} parent=5 // pred_check_branch
      %207 = sbr.rel (%p205) target = $region32
    $region31: #{discriminator_forward.7} parent=5 // pred_region
      // Predicated region
      $region33: #{discriminator_forward.7} parent=31 // pred_check
        %p208 = pneg %p119
      $region34: #{discriminator_forward.7} parent=31 // pred_check_branch
        %210 = sbr.rel (%p208) target = $region36
      $region35: #{discriminator_forward.7} parent=31 // pred_region
        %p211 = scmp.lt.s32.totalorder %s15, 1
        %s212 = scalar_select %p211, %s15, 1
        %s213 = smul.addr %s212, 64
        %s214 = smul.addr %s213, 4
        %s215 = scalar_lea.vmem %s4, %s214
      $region36: #{discriminator_forward.7} parent=31 // pred_fallthru
        _
    $region32: #{discriminator_forward.7} parent=5 // pred_fallthru
      _
    %p216 = scmp.le.s32.totalorder 1, %s15
    %p217 = scmp.lt.s32.totalorder %s15, 3
    %p218 = pnand %p216, %p217
    %p219 = pneg %p218
    // Predicated region
    $region37: #{discriminator_forward.7} parent=5 // pred_check
      _
    $region38: #{discriminator_forward.7} parent=5 // pred_check_branch
      %221 = sbr.rel (%p218) target = $region40
    $region39: #{discriminator_forward.7} parent=5 // pred_region
      %s222 = ssub.s32 %s15, 1
      %p223 = pneg %p36
      %p224 = pneg %p33
      %p225 = pneg %p57
      %p226 = pneg %p54
      %p227 = pneg %p78
      %p228 = pneg %p75
      %p229 = pneg %p99
      %p230 = pneg %p96
      %p231 = scmp.lt.s32.totalorder %s20, 1
      %s232 = scalar_select %p231, %s20, 1
      %s233 = smul.addr %s232, 64
      %s234 = smul.addr %s233, 4
      %s235 = scalar_lea.vmem %s4, %s234
      %p236 = pneg %p125
      %p237 = pneg %p122
      %p238 = pneg %p151
      %p239 = pneg %p148
      %p240 = scmp.lt.s32.totalorder %s20, 1
      %s241 = scalar_select %p240, %s20, 1
      %s242 = smul.addr %s241, 8
      %s243 = smul.addr %s242, 8
      %s244 = scalar_lea.vmem %s5, %s243
      %p245 = pneg %p177
      %p246 = pneg %p174
      %p247 = scmp.lt.s32.totalorder %s20, 1
      %s248 = scalar_select %p247, %s20, 1
      %s249 = scalar_lea.vmem %s6, %s248
      %p250 = scmp.lt.s32.totalorder %s20, 1
      %s251 = scalar_select %p250, %s20, 1
      %s252 = smul.addr %s251, 64
      %s253 = smul.addr %s252, 4
      %s254 = scalar_lea.vmem %s4, %s253
      %p255 = scmp.lt.s32.totalorder %s20, 1
      %s256 = scalar_select %p255, %s20, 1
      %s257 = smul.addr %s256, 8
      %s258 = smul.addr %s257, 8
      %s259 = scalar_lea.vmem %s5, %s258
      %p260 = scmp.lt.s32.totalorder %s20, 1
      %s261 = scalar_select %p260, %s20, 1
      %s262 = scalar_lea.vmem %s6, %s261
      %v264 = vld [vmem:[%s0] sm:$0xff]
      %v265 = vld [vmem:[%s0 + $0x8] sm:$0xff]
      %v266 = vld [vmem:[%s0 + $0x10] sm:$0xff]
      %v267 = vld [vmem:[%s0 + $0x18] sm:$0xff]
      %v268 = vld [vmem:[%s0 + $0x20] sm:$0xff]
      %v269 = vld [vmem:[%s0 + $0x28] sm:$0xff]
      %v270 = vld [vmem:[%s0 + $0x30] sm:$0xff]
      %v271 = vld [vmem:[%s0 + $0x38] sm:$0xff]
      %v272 = vld [vmem:[%s0 + $0x40] sm:$0xff]
      %v273 = vld [vmem:[%s0 + $0x48] sm:$0xff]
      %v274 = vld [vmem:[%s0 + $0x50] sm:$0xff]
      %v275 = vld [vmem:[%s0 + $0x58] sm:$0xff]
      %v276 = vld [vmem:[%s0 + $0x60] sm:$0xff]
      %v277 = vld [vmem:[%s0 + $0x68] sm:$0xff]
      %v278 = vld [vmem:[%s0 + $0x70] sm:$0xff]
      %v279 = vld [vmem:[%s0 + $0x78] sm:$0xff]
      %v280 = vld [vmem:[%s254] sm:$0xf]
      %v281 = vld [vmem:[%s254 + $0x4] sm:$0xf]
      %v282 = vld [vmem:[%s254 + $0x8] sm:$0xf]
      %v283 = vld [vmem:[%s254 + $0xc] sm:$0xf]
      %v284 = vld [vmem:[%s254 + $0x10] sm:$0xf]
      %v285 = vld [vmem:[%s254 + $0x14] sm:$0xf]
      %v286 = vld [vmem:[%s254 + $0x18] sm:$0xf]
      %v287 = vld [vmem:[%s254 + $0x1c] sm:$0xf]
      %v288 = vld [vmem:[%s254 + $0x20] sm:$0xf]
      %v289 = vld [vmem:[%s254 + $0x24] sm:$0xf]
      %v290 = vld [vmem:[%s254 + $0x28] sm:$0xf]
      %v291 = vld [vmem:[%s254 + $0x2c] sm:$0xf]
      %v292 = vld [vmem:[%s254 + $0x30] sm:$0xf]
      %v293 = vld [vmem:[%s254 + $0x34] sm:$0xf]
      %v294 = vld [vmem:[%s254 + $0x38] sm:$0xf]
      %v295 = vld [vmem:[%s254 + $0x3c] sm:$0xf]
      %v296 = vld [vmem:[%s254 + $0x40] sm:$0xf]
      %v297 = vld [vmem:[%s254 + $0x44] sm:$0xf]
      %v298 = vld [vmem:[%s254 + $0x48] sm:$0xf]
      %v299 = vld [vmem:[%s254 + $0x4c] sm:$0xf]
      %v300 = vld [vmem:[%s254 + $0x50] sm:$0xf]
      %v301 = vld [vmem:[%s254 + $0x54] sm:$0xf]
      %v302 = vld [vmem:[%s254 + $0x58] sm:$0xf]
      %v303 = vld [vmem:[%s254 + $0x5c] sm:$0xf]
      %v304 = vld [vmem:[%s254 + $0x60] sm:$0xf]
      %v305 = vld [vmem:[%s254 + $0x64] sm:$0xf]
      %v306 = vld [vmem:[%s254 + $0x68] sm:$0xf]
      %v307 = vld [vmem:[%s254 + $0x6c] sm:$0xf]
      %v308 = vld [vmem:[%s254 + $0x70] sm:$0xf]
      %v309 = vld [vmem:[%s254 + $0x74] sm:$0xf]
      %v310 = vld [vmem:[%s254 + $0x78] sm:$0xf]
      %v311 = vld [vmem:[%s254 + $0x7c] sm:$0xf]
      %v312 = vld [vmem:[%s254 + $0x80] sm:$0xf]
      %v313 = vld [vmem:[%s254 + $0x84] sm:$0xf]
      %v314 = vld [vmem:[%s254 + $0x88] sm:$0xf]
      %v315 = vld [vmem:[%s254 + $0x8c] sm:$0xf]
      %v316 = vld [vmem:[%s254 + $0x90] sm:$0xf]
      %v317 = vld [vmem:[%s254 + $0x94] sm:$0xf]
      %v318 = vld [vmem:[%s254 + $0x98] sm:$0xf]
      %v319 = vld [vmem:[%s254 + $0x9c] sm:$0xf]
      %v320 = vld [vmem:[%s254 + $0xa0] sm:$0xf]
      %v321 = vld [vmem:[%s254 + $0xa4] sm:$0xf]
      %v322 = vld [vmem:[%s254 + $0xa8] sm:$0xf]
      %v323 = vld [vmem:[%s254 + $0xac] sm:$0xf]
      %v324 = vld [vmem:[%s254 + $0xb0] sm:$0xf]
      %v325 = vld [vmem:[%s254 + $0xb4] sm:$0xf]
      %v326 = vld [vmem:[%s254 + $0xb8] sm:$0xf]
      %v327 = vld [vmem:[%s254 + $0xbc] sm:$0xf]
      %v328 = vld [vmem:[%s254 + $0xc0] sm:$0xf]
      %v329 = vld [vmem:[%s254 + $0xc4] sm:$0xf]
      %v330 = vld [vmem:[%s254 + $0xc8] sm:$0xf]
      %v331 = vld [vmem:[%s254 + $0xcc] sm:$0xf]
      %v332 = vld [vmem:[%s254 + $0xd0] sm:$0xf]
      %v333 = vld [vmem:[%s254 + $0xd4] sm:$0xf]
      %v334 = vld [vmem:[%s254 + $0xd8] sm:$0xf]
      %v335 = vld [vmem:[%s254 + $0xdc] sm:$0xf]
      %v336 = vld [vmem:[%s254 + $0xe0] sm:$0xf]
      %v337 = vld [vmem:[%s254 + $0xe4] sm:$0xf]
      %v338 = vld [vmem:[%s254 + $0xe8] sm:$0xf]
      %v339 = vld [vmem:[%s254 + $0xec] sm:$0xf]
      %v340 = vld [vmem:[%s254 + $0xf0] sm:$0xf]
      %v341 = vld [vmem:[%s254 + $0xf4] sm:$0xf]
      %v342 = vld [vmem:[%s254 + $0xf8] sm:$0xf]
      %v343 = vld [vmem:[%s254 + $0xfc] sm:$0xf]
      %v344 = vld [vmem:[%s1] sm:$0xff]
      %v345 = vld [vmem:[%s1 + $0x8] sm:$0xff]
      %v346 = vld [vmem:[%s1 + $0x10] sm:$0xff]
      %v347 = vld [vmem:[%s1 + $0x18] sm:$0xff]
      %v348 = vld [vmem:[%s1 + $0x20] sm:$0xff]
      %v349 = vld [vmem:[%s1 + $0x28] sm:$0xff]
      %v350 = vld [vmem:[%s1 + $0x30] sm:$0xff]
      %v351 = vld [vmem:[%s1 + $0x38] sm:$0xff]
      %353 = vset.pattern.permute.xlu0 0
      %354 = vperm.xlu0 %353, %v344
      %v355 = vpop.permute.xlu0 %354
      %358 = vset.pattern.permute.xlu0 0
      %359 = vperm.xlu0 %358, %v345
      %v360 = vpop.permute.xlu0 %359
      %363 = vset.pattern.permute.xlu0 0
      %364 = vperm.xlu0 %363, %v346
      %v365 = vpop.permute.xlu0 %364
      %368 = vset.pattern.permute.xlu0 0
      %369 = vperm.xlu0 %368, %v347
      %v370 = vpop.permute.xlu0 %369
      %373 = vset.pattern.permute.xlu0 0
      %374 = vperm.xlu0 %373, %v348
      %v375 = vpop.permute.xlu0 %374
      %378 = vset.pattern.permute.xlu0 0
      %379 = vperm.xlu0 %378, %v349
      %v380 = vpop.permute.xlu0 %379
      %383 = vset.pattern.permute.xlu0 0
      %384 = vperm.xlu0 %383, %v350
      %v385 = vpop.permute.xlu0 %384
      %388 = vset.pattern.permute.xlu0 0
      %389 = vperm.xlu0 %388, %v351
      %v390 = vpop.permute.xlu0 %389
      %v408 = vunpack.c.l.b16 %v264
      %v409 = vunpack.c.h.b16 %v264
      %v410 = vunpack.c.l.b16 %v265
      %v411 = vunpack.c.h.b16 %v265
      %v412 = vunpack.c.l.b16 %v266
      %v413 = vunpack.c.h.b16 %v266
      %v414 = vunpack.c.l.b16 %v267
      %v415 = vunpack.c.h.b16 %v267
      %v416 = vunpack.c.l.b16 %v268
      %v417 = vunpack.c.h.b16 %v268
      %v418 = vunpack.c.l.b16 %v269
      %v419 = vunpack.c.h.b16 %v269
      %v420 = vunpack.c.l.b16 %v270
      %v421 = vunpack.c.h.b16 %v270
      %v422 = vunpack.c.l.b16 %v271
      %v423 = vunpack.c.h.b16 %v271
      %v424 = vunpack.c.l.b16 %v272
      %v425 = vunpack.c.h.b16 %v272
      %v426 = vunpack.c.l.b16 %v273
      %v427 = vunpack.c.h.b16 %v273
      %v428 = vunpack.c.l.b16 %v274
      %v429 = vunpack.c.h.b16 %v274
      %v430 = vunpack.c.l.b16 %v275
      %v431 = vunpack.c.h.b16 %v275
      %v432 = vunpack.c.l.b16 %v276
      %v433 = vunpack.c.h.b16 %v276
      %v434 = vunpack.c.l.b16 %v277
      %v435 = vunpack.c.h.b16 %v277
      %v436 = vunpack.c.l.b16 %v278
      %v437 = vunpack.c.h.b16 %v278
      %v438 = vunpack.c.l.b16 %v279
      %v439 = vunpack.c.h.b16 %v279
      %v440 = vpack.c.b16 %v412, %v408
      %v441 = vpack.c.b16 %v413, %v409
      %v442 = vpack.c.b16 %v414, %v410
      %v443 = vpack.c.b16 %v415, %v411
      %v444 = vpack.c.b16 %v420, %v416
      %v445 = vpack.c.b16 %v421, %v417
      %v446 = vpack.c.b16 %v422, %v418
      %v447 = vpack.c.b16 %v423, %v419
      %v448 = vpack.c.b16 %v428, %v424
      %v449 = vpack.c.b16 %v429, %v425
      %v450 = vpack.c.b16 %v430, %v426
      %v451 = vpack.c.b16 %v431, %v427
      %v452 = vpack.c.b16 %v436, %v432
      %v453 = vpack.c.b16 %v437, %v433
      %v454 = vpack.c.b16 %v438, %v434
      %v455 = vpack.c.b16 %v439, %v435
      %v536 = vunpack.c.l.b16 %v280
      %v537 = vunpack.c.l.b16 %v281
      %v538 = vunpack.c.l.b16 %v282
      %v539 = vunpack.c.l.b16 %v283
      %v540 = vunpack.c.l.b16 %v284
      %v541 = vunpack.c.l.b16 %v285
      %v542 = vunpack.c.l.b16 %v286
      %v543 = vunpack.c.l.b16 %v287
      %v544 = vunpack.c.l.b16 %v288
      %v545 = vunpack.c.l.b16 %v289
      %v546 = vunpack.c.l.b16 %v290
      %v547 = vunpack.c.l.b16 %v291
      %v548 = vunpack.c.l.b16 %v292
      %v549 = vunpack.c.l.b16 %v293
      %v550 = vunpack.c.l.b16 %v294
      %v551 = vunpack.c.l.b16 %v295
      %v552 = vunpack.c.l.b16 %v296
      %v553 = vunpack.c.l.b16 %v297
      %v554 = vunpack.c.l.b16 %v298
      %v555 = vunpack.c.l.b16 %v299
      %v556 = vunpack.c.l.b16 %v300
      %v557 = vunpack.c.l.b16 %v301
      %v558 = vunpack.c.l.b16 %v302
      %v559 = vunpack.c.l.b16 %v303
      %v560 = vunpack.c.l.b16 %v304
      %v561 = vunpack.c.l.b16 %v305
      %v562 = vunpack.c.l.b16 %v306
      %v563 = vunpack.c.l.b16 %v307
      %v564 = vunpack.c.l.b16 %v308
      %v565 = vunpack.c.l.b16 %v309
      %v566 = vunpack.c.l.b16 %v310
      %v567 = vunpack.c.l.b16 %v311
      %v568 = vunpack.c.l.b16 %v312
      %v569 = vunpack.c.l.b16 %v313
      %v570 = vunpack.c.l.b16 %v314
      %v571 = vunpack.c.l.b16 %v315
      %v572 = vunpack.c.l.b16 %v316
      %v573 = vunpack.c.l.b16 %v317
      %v574 = vunpack.c.l.b16 %v318
      %v575 = vunpack.c.l.b16 %v319
      %v576 = vunpack.c.l.b16 %v320
      %v577 = vunpack.c.l.b16 %v321
      %v578 = vunpack.c.l.b16 %v322
      %v579 = vunpack.c.l.b16 %v323
      %v580 = vunpack.c.l.b16 %v324
      %v581 = vunpack.c.l.b16 %v325
      %v582 = vunpack.c.l.b16 %v326
      %v583 = vunpack.c.l.b16 %v327
      %v584 = vunpack.c.l.b16 %v328
      %v585 = vunpack.c.l.b16 %v329
      %v586 = vunpack.c.l.b16 %v330
      %v587 = vunpack.c.l.b16 %v331
      %v588 = vunpack.c.l.b16 %v332
      %v589 = vunpack.c.l.b16 %v333
      %v590 = vunpack.c.l.b16 %v334
      %v591 = vunpack.c.l.b16 %v335
      %v592 = vunpack.c.l.b16 %v336
      %v593 = vunpack.c.l.b16 %v337
      %v594 = vunpack.c.l.b16 %v338
      %v595 = vunpack.c.l.b16 %v339
      %v596 = vunpack.c.l.b16 %v340
      %v597 = vunpack.c.l.b16 %v341
      %v598 = vunpack.c.l.b16 %v342
      %v599 = vunpack.c.l.b16 %v343
      %v600 = vpack.c.b16 %v537, %v536
      %v601 = vpack.c.b16 %v539, %v538
      %v602 = vpack.c.b16 %v541, %v540
      %v603 = vpack.c.b16 %v543, %v542
      %v604 = vpack.c.b16 %v545, %v544
      %v605 = vpack.c.b16 %v547, %v546
      %v606 = vpack.c.b16 %v549, %v548
      %v607 = vpack.c.b16 %v551, %v550
      %v608 = vpack.c.b16 %v553, %v552
      %v609 = vpack.c.b16 %v555, %v554
      %v610 = vpack.c.b16 %v557, %v556
      %v611 = vpack.c.b16 %v559, %v558
      %v612 = vpack.c.b16 %v561, %v560
      %v613 = vpack.c.b16 %v563, %v562
      %v614 = vpack.c.b16 %v565, %v564
      %v615 = vpack.c.b16 %v567, %v566
      %v616 = vpack.c.b16 %v569, %v568
      %v617 = vpack.c.b16 %v571, %v570
      %v618 = vpack.c.b16 %v573, %v572
      %v619 = vpack.c.b16 %v575, %v574
      %v620 = vpack.c.b16 %v577, %v576
      %v621 = vpack.c.b16 %v579, %v578
      %v622 = vpack.c.b16 %v581, %v580
      %v623 = vpack.c.b16 %v583, %v582
      %v624 = vpack.c.b16 %v585, %v584
      %v625 = vpack.c.b16 %v587, %v586
      %v626 = vpack.c.b16 %v589, %v588
      %v627 = vpack.c.b16 %v591, %v590
      %v628 = vpack.c.b16 %v593, %v592
      %v629 = vpack.c.b16 %v595, %v594
      %v630 = vpack.c.b16 %v597, %v596
      %v631 = vpack.c.b16 %v599, %v598
      %664 = vmatprep.subr.bf16.mxu0 0
      %665 = vmatpush1.bf16.msra.mxu0 %v607
      %666 = vmatprep.subr.bf16.mxu0 0
      %667 = vmatpush1.bf16.msra.mxu0 %v606
      %668 = vmatprep.subr.bf16.mxu0 0
      %669 = vmatpush1.bf16.msra.mxu0 %v605
      %670 = vmatprep.subr.bf16.mxu0 0
      %671 = vmatpush1.bf16.msra.mxu0 %v604
      %672 = vmatprep.subr.bf16.mxu0 0
      %673 = vmatpush1.bf16.msra.mxu0 %v603
      %674 = vmatprep.subr.bf16.mxu0 0
      %675 = vmatpush1.bf16.msra.mxu0 %v602
      %676 = vmatprep.subr.bf16.mxu0 0
      %677 = vmatpush1.bf16.msra.mxu0 %v601
      %678 = vmatprep.subr.bf16.mxu0 0
      %679 = vmatpush1.bf16.msra.mxu0 %v600
      %680 = vmatprep.subr.bf16.mxu0 0
      %681 = vmatpush2.bf16.msra.mxu0 %v615
      %682 = vmatprep.subr.bf16.mxu0 0
      %683 = vmatpush2.bf16.msra.mxu0 %v614
      %684 = vmatprep.subr.bf16.mxu0 0
      %685 = vmatpush2.bf16.msra.mxu0 %v613
      %686 = vmatprep.subr.bf16.mxu0 0
      %687 = vmatpush2.bf16.msra.mxu0 %v612
      %688 = vmatprep.subr.bf16.mxu0 0
      %689 = vmatpush2.bf16.msra.mxu0 %v611
      %690 = vmatprep.subr.bf16.mxu0 0
      %691 = vmatpush2.bf16.msra.mxu0 %v610
      %692 = vmatprep.subr.bf16.mxu0 0
      %693 = vmatpush2.bf16.msra.mxu0 %v609
      %694 = vmatprep.subr.bf16.mxu0 0
      %695 = vmatpush2.bf16.msra.mxu0 %v608
      %696 = vmatprep.mubr.bf16.mxu0 %v441
      %697 = vmatmul.mubr.bf16.gmra.mxu0 %v440
      %v698 = vpop.f32.mrf.mxu0
      %v699 = vadd.f32 %v355, %v698
      %v700 = vpop.f32.mrf.mxu0
      %v701 = vpop.f32.mrf.mxu0
      %v702 = vadd.f32 %v360, %v701
      %v703 = vpop.f32.mrf.mxu0
      %704 = vmatprep.mubr.bf16.mxu0 %v445
      %705 = vmatmul.mubr.bf16.gmra.mxu0 %v444
      %v706 = vpop.f32.mrf.mxu0
      %v707 = vadd.f32 %v365, %v706
      %v708 = vpop.f32.mrf.mxu0
      %v709 = vpop.f32.mrf.mxu0
      %v710 = vadd.f32 %v370, %v709
      %v711 = vpop.f32.mrf.mxu0
      %712 = vmatprep.mubr.bf16.mxu0 %v449
      %713 = vmatmul.mubr.bf16.gmra.mxu0 %v448
      %v714 = vpop.f32.mrf.mxu0
      %v715 = vadd.f32 %v375, %v714
      %v716 = vpop.f32.mrf.mxu0
      %v717 = vpop.f32.mrf.mxu0
      %v718 = vadd.f32 %v380, %v717
      %v719 = vpop.f32.mrf.mxu0
      %720 = vmatprep.mubr.bf16.mxu0 %v453
      %721 = vmatmul.mubr.bf16.gmra.mxu0 %v452
      %v722 = vpop.f32.mrf.mxu0
      %v723 = vadd.f32 %v385, %v722
      %v724 = vpop.f32.mrf.mxu0
      %v725 = vpop.f32.mrf.mxu0
      %v726 = vadd.f32 %v390, %v725
      %v727 = vpop.f32.mrf.mxu0
      %728 = vdwg.mxu0
      %729 = vmatprep.subr.bf16.mxu0 0
      %730 = vmatpush1.bf16.msra.mxu0 %v623
      %731 = vmatprep.subr.bf16.mxu0 0
      %732 = vmatpush1.bf16.msra.mxu0 %v622
      %733 = vmatprep.subr.bf16.mxu0 0
      %734 = vmatpush1.bf16.msra.mxu0 %v621
      %735 = vmatprep.subr.bf16.mxu0 0
      %736 = vmatpush1.bf16.msra.mxu0 %v620
      %737 = vmatprep.subr.bf16.mxu0 0
      %738 = vmatpush1.bf16.msra.mxu0 %v619
      %739 = vmatprep.subr.bf16.mxu0 0
      %740 = vmatpush1.bf16.msra.mxu0 %v618
      %741 = vmatprep.subr.bf16.mxu0 0
      %742 = vmatpush1.bf16.msra.mxu0 %v617
      %743 = vmatprep.subr.bf16.mxu0 0
      %744 = vmatpush1.bf16.msra.mxu0 %v616
      %745 = vmatprep.subr.bf16.mxu0 0
      %746 = vmatpush2.bf16.msra.mxu0 %v631
      %747 = vmatprep.subr.bf16.mxu0 0
      %748 = vmatpush2.bf16.msra.mxu0 %v630
      %749 = vmatprep.subr.bf16.mxu0 0
      %750 = vmatpush2.bf16.msra.mxu0 %v629
      %751 = vmatprep.subr.bf16.mxu0 0
      %752 = vmatpush2.bf16.msra.mxu0 %v628
      %753 = vmatprep.subr.bf16.mxu0 0
      %754 = vmatpush2.bf16.msra.mxu0 %v627
      %755 = vmatprep.subr.bf16.mxu0 0
      %756 = vmatpush2.bf16.msra.mxu0 %v626
      %757 = vmatprep.subr.bf16.mxu0 0
      %758 = vmatpush2.bf16.msra.mxu0 %v625
      %759 = vmatprep.subr.bf16.mxu0 0
      %760 = vmatpush2.bf16.msra.mxu0 %v624
      %761 = vmatprep.mubr.bf16.mxu0 %v443
      %762 = vmatmul.mubr.bf16.gmra.mxu0 %v442
      %v763 = vpop.f32.mrf.mxu0
      %v764 = vadd.f32 %v699, %v763
      %v765 = vpop.f32.mrf.mxu0
      %v766 = vpop.f32.mrf.mxu0
      %v767 = vadd.f32 %v702, %v766
      %v768 = vpop.f32.mrf.mxu0
      %769 = vmatprep.mubr.bf16.mxu0 %v447
      %770 = vmatmul.mubr.bf16.gmra.mxu0 %v446
      %v771 = vpop.f32.mrf.mxu0
      %v772 = vadd.f32 %v707, %v771
      %v773 = vpop.f32.mrf.mxu0
      %v774 = vpop.f32.mrf.mxu0
      %v775 = vadd.f32 %v710, %v774
      %v776 = vpop.f32.mrf.mxu0
      %777 = vmatprep.mubr.bf16.mxu0 %v451
      %778 = vmatmul.mubr.bf16.gmra.mxu0 %v450
      %v779 = vpop.f32.mrf.mxu0
      %v780 = vadd.f32 %v715, %v779
      %v781 = vpop.f32.mrf.mxu0
      %v782 = vpop.f32.mrf.mxu0
      %v783 = vadd.f32 %v718, %v782
      %v784 = vpop.f32.mrf.mxu0
      %785 = vmatprep.mubr.bf16.mxu0 %v455
      %786 = vmatmul.mubr.bf16.gmra.mxu0 %v454
      %v787 = vpop.f32.mrf.mxu0
      %v788 = vadd.f32 %v723, %v787
      %v789 = vpop.f32.mrf.mxu0
      %v790 = vpop.f32.mrf.mxu0
      %v791 = vadd.f32 %v726, %v790
      %v792 = vpop.f32.mrf.mxu0
      %793 = vdwg.mxu0
      %vm794 = vcmask 130048
      %v795 = vsel %vm794, %v764, 0.0
      %796 = vadd.xlane.f32.xlu0 %v795
      %v797 = vpop.xlane.xlu0 %796
      %v798 = vsel %vm794, %v767, 0.0
      %799 = vadd.xlane.f32.xlu0 %v798
      %v800 = vpop.xlane.xlu0 %799
      %v801 = vsel %vm794, %v772, 0.0
      %802 = vadd.xlane.f32.xlu0 %v801
      %v803 = vpop.xlane.xlu0 %802
      %v804 = vsel %vm794, %v775, 0.0
      %805 = vadd.xlane.f32.xlu0 %v804
      %v806 = vpop.xlane.xlu0 %805
      %v807 = vsel %vm794, %v780, 0.0
      %808 = vadd.xlane.f32.xlu0 %v807
      %v809 = vpop.xlane.xlu0 %808
      %v810 = vsel %vm794, %v783, 0.0
      %811 = vadd.xlane.f32.xlu0 %v810
      %v812 = vpop.xlane.xlu0 %811
      %v813 = vsel %vm794, %v788, 0.0
      %814 = vadd.xlane.f32.xlu0 %v813
      %v815 = vpop.xlane.xlu0 %814
      %v816 = vsel %vm794, %v791, 0.0
      %817 = vadd.xlane.f32.xlu0 %v816
      %v818 = vpop.xlane.xlu0 %817
      %v819 = vrcp.pop 16.0
      %v820 = vmul.f32 %v797, %v819
      %v821 = vmul.f32 %v800, %v819
      %v822 = vmul.f32 %v803, %v819
      %v823 = vmul.f32 %v806, %v819
      %v824 = vmul.f32 %v809, %v819
      %v825 = vmul.f32 %v812, %v819
      %v826 = vmul.f32 %v815, %v819
      %v827 = vmul.f32 %v818, %v819
      %v828 = vsub.f32 %v764, %v820
      %v829 = vsub.f32 %v767, %v821
      %v830 = vsub.f32 %v772, %v822
      %v831 = vsub.f32 %v775, %v823
      %v832 = vsub.f32 %v780, %v824
      %v833 = vsub.f32 %v783, %v825
      %v834 = vsub.f32 %v788, %v826
      %v835 = vsub.f32 %v791, %v827
      %v836 = vmul.f32 %v828, %v828
      %v837 = vmul.f32 %v829, %v829
      %v838 = vmul.f32 %v830, %v830
      %v839 = vmul.f32 %v831, %v831
      %v840 = vmul.f32 %v832, %v832
      %v841 = vmul.f32 %v833, %v833
      %v842 = vmul.f32 %v834, %v834
      %v843 = vmul.f32 %v835, %v835
      %v844 = vsel %vm794, %v836, 0.0
      %845 = vadd.xlane.f32.xlu0 %v844
      %v846 = vpop.xlane.xlu0 %845
      %v847 = vsel %vm794, %v837, 0.0
      %848 = vadd.xlane.f32.xlu0 %v847
      %v849 = vpop.xlane.xlu0 %848
      %v850 = vsel %vm794, %v838, 0.0
      %851 = vadd.xlane.f32.xlu0 %v850
      %v852 = vpop.xlane.xlu0 %851
      %v853 = vsel %vm794, %v839, 0.0
      %854 = vadd.xlane.f32.xlu0 %v853
      %v855 = vpop.xlane.xlu0 %854
      %v856 = vsel %vm794, %v840, 0.0
      %857 = vadd.xlane.f32.xlu0 %v856
      %v858 = vpop.xlane.xlu0 %857
      %v859 = vsel %vm794, %v841, 0.0
      %860 = vadd.xlane.f32.xlu0 %v859
      %v861 = vpop.xlane.xlu0 %860
      %v862 = vsel %vm794, %v842, 0.0
      %863 = vadd.xlane.f32.xlu0 %v862
      %v864 = vpop.xlane.xlu0 %863
      %v865 = vsel %vm794, %v843, 0.0
      %866 = vadd.xlane.f32.xlu0 %v865
      %v867 = vpop.xlane.xlu0 %866
      %v868 = vmul.f32 %v846, %v819
      %v869 = vmul.f32 %v849, %v819
      %v870 = vmul.f32 %v852, %v819
      %v871 = vmul.f32 %v855, %v819
      %v872 = vmul.f32 %v858, %v819
      %v873 = vmul.f32 %v861, %v819
      %v874 = vmul.f32 %v864, %v819
      %v875 = vmul.f32 %v867, %v819
      %v876 = vadd.f32 %v868, 1e-05
      %v877 = vadd.f32 %v869, 1e-05
      %v878 = vadd.f32 %v870, 1e-05
      %v879 = vadd.f32 %v871, 1e-05
      %v880 = vadd.f32 %v872, 1e-05
      %v881 = vadd.f32 %v873, 1e-05
      %v882 = vadd.f32 %v874, 1e-05
      %v883 = vadd.f32 %v875, 1e-05
      %v884 = vrsqrt.pop %v876
      %v885 = vrsqrt.pop %v877
      %v886 = vrsqrt.pop %v878
      %v887 = vrsqrt.pop %v879
      %v888 = vrsqrt.pop %v880
      %v889 = vrsqrt.pop %v881
      %v890 = vrsqrt.pop %v882
      %v891 = vrsqrt.pop %v883
      %v892 = vmul.f32 %v828, %v884
      %v893 = vmul.f32 %v829, %v885
      %v894 = vmul.f32 %v830, %v886
      %v895 = vmul.f32 %v831, %v887
      %v896 = vmul.f32 %v832, %v888
      %v897 = vmul.f32 %v833, %v889
      %v898 = vmul.f32 %v834, %v890
      %v899 = vmul.f32 %v835, %v891
      %vm900 = vcmp.ge.f32.partialorder %v892, 0.0
      %vm901 = vcmp.ge.f32.partialorder %v893, 0.0
      %vm902 = vcmp.ge.f32.partialorder %v894, 0.0
      %vm903 = vcmp.ge.f32.partialorder %v895, 0.0
      %vm904 = vcmp.ge.f32.partialorder %v896, 0.0
      %vm905 = vcmp.ge.f32.partialorder %v897, 0.0
      %vm906 = vcmp.ge.f32.partialorder %v898, 0.0
      %vm907 = vcmp.ge.f32.partialorder %v899, 0.0
      %v908 = vmul.f32 %v892, 0.2
      %v909 = vmul.f32 %v893, 0.2
      %v910 = vmul.f32 %v894, 0.2
      %v911 = vmul.f32 %v895, 0.2
      %v912 = vmul.f32 %v896, 0.2
      %v913 = vmul.f32 %v897, 0.2
      %v914 = vmul.f32 %v898, 0.2
      %v915 = vmul.f32 %v899, 0.2
      %v916 = vsel %vm900, %v892, %v908
      %v917 = vsel %vm901, %v893, %v909
      %v918 = vsel %vm902, %v894, %v910
      %v919 = vsel %vm903, %v895, %v911
      %v920 = vsel %vm904, %v896, %v912
      %v921 = vsel %vm905, %v897, %v913
      %v922 = vsel %vm906, %v898, %v914
      %v923 = vsel %vm907, %v899, %v915
      %924 = vst.msk [vmem:[%s259] sm:$0xff] %vm794, %v916
      %925 = vst.msk [vmem:[%s259 + $0x8] sm:$0xff] %vm794, %v917
      %926 = vst.msk [vmem:[%s259 + $0x10] sm:$0xff] %vm794, %v918
      %927 = vst.msk [vmem:[%s259 + $0x18] sm:$0xff] %vm794, %v919
      %928 = vst.msk [vmem:[%s259 + $0x20] sm:$0xff] %vm794, %v920
      %929 = vst.msk [vmem:[%s259 + $0x28] sm:$0xff] %vm794, %v921
      %930 = vst.msk [vmem:[%s259 + $0x30] sm:$0xff] %vm794, %v922
      %931 = vst.msk [vmem:[%s259 + $0x38] sm:$0xff] %vm794, %v923
      %v932 = vld [vmem:[%s2] sm:$0xff]
      %v933 = vld [vmem:[%s2 + $0x8] sm:$0xff]
      %v934 = vld [vmem:[%s2 + $0x10] sm:$0xff]
      %v935 = vld [vmem:[%s2 + $0x18] sm:$0xff]
      %v936 = vld [vmem:[%s2 + $0x20] sm:$0xff]
      %v937 = vld [vmem:[%s2 + $0x28] sm:$0xff]
      %v938 = vld [vmem:[%s2 + $0x30] sm:$0xff]
      %v939 = vld [vmem:[%s2 + $0x38] sm:$0xff]
      %v940 = vmul.f32 %v916, %v932
      %v941 = vmul.f32 %v917, %v933
      %v942 = vmul.f32 %v918, %v934
      %v943 = vmul.f32 %v919, %v935
      %v944 = vmul.f32 %v920, %v936
      %v945 = vmul.f32 %v921, %v937
      %v946 = vmul.f32 %v922, %v938
      %v947 = vmul.f32 %v923, %v939
      %v948 = vsel %vm794, %v940, 0.0
      %949 = vadd.xlane.f32.xlu0 %v948
      %v950 = vpop.xlane.xlu0 %949
      %v951 = vsel %vm794, %v941, 0.0
      %952 = vadd.xlane.f32.xlu0 %v951
      %v953 = vpop.xlane.xlu0 %952
      %v954 = vsel %vm794, %v942, 0.0
      %955 = vadd.xlane.f32.xlu0 %v954
      %v956 = vpop.xlane.xlu0 %955
      %v957 = vsel %vm794, %v943, 0.0
      %958 = vadd.xlane.f32.xlu0 %v957
      %v959 = vpop.xlane.xlu0 %958
      %v960 = vsel %vm794, %v944, 0.0
      %961 = vadd.xlane.f32.xlu0 %v960
      %v962 = vpop.xlane.xlu0 %961
      %v963 = vsel %vm794, %v945, 0.0
      %964 = vadd.xlane.f32.xlu0 %v963
      %v965 = vpop.xlane.xlu0 %964
      %v966 = vsel %vm794, %v946, 0.0
      %967 = vadd.xlane.f32.xlu0 %v966
      %v968 = vpop.xlane.xlu0 %967
      %v969 = vsel %vm794, %v947, 0.0
      %970 = vadd.xlane.f32.xlu0 %v969
      %v971 = vpop.xlane.xlu0 %970
      %v972 = vadd.f32 %v950, %v953
      %v973 = vadd.f32 %v972, %v956
      %v974 = vadd.f32 %v973, %v959
      %v975 = vadd.f32 %v974, %v962
      %v976 = vadd.f32 %v975, %v965
      %v977 = vadd.f32 %v976, %v968
      %v978 = vadd.f32 %v977, %v971
      %v979 = vrot.slane %v978, 4
      %v980 = vadd.f32 %v978, %v979
      %v981 = vrot.slane %v980, 2
      %v982 = vadd.f32 %v980, %v981
      %v983 = vrot.slane %v982, 1
      %v984 = vadd.f32 %v982, %v983
      %v985 = vld [vmem:[#allocation2] sm:$0x1]
      %v986 = vadd.f32 %v984, %v985
      %vm987 = vcmask 0
      %988 = vst.msk [vmem:[%s262] sm:$0x1] %vm987, %v986
      %p989 = scmp.lt.s32.totalorder %s20, 1
      %s990 = scalar_select %p989, %s20, 1
      %s991 = smul.addr %s990, 8
      %s992 = smul.addr %s991, 8
      %s993 = scalar_lea.vmem %s5, %s992
      %p994 = scmp.lt.s32.totalorder %s20, 1
      %s995 = scalar_select %p994, %s20, 1
      %s996 = scalar_lea.vmem %s6, %s995
      // Predicated region
      $region41: #{discriminator_forward.7} parent=39 // pred_check
        %p997 = pneg %p148
      $region42: #{discriminator_forward.7} parent=39 // pred_check_branch
        %999 = sbr.rel (%p997) target = $region44
      $region43: #{discriminator_forward.7} parent=39 // pred_region
        _
      $region44: #{discriminator_forward.7} parent=39 // pred_fallthru
        _
      // Predicated region
      $region45: #{discriminator_forward.7} parent=39 // pred_check
        %p1000 = pneg %p174
      $region46: #{discriminator_forward.7} parent=39 // pred_check_branch
        %1002 = sbr.rel (%p1000) target = $region48
      $region47: #{discriminator_forward.7} parent=39 // pred_region
        _
      $region48: #{discriminator_forward.7} parent=39 // pred_fallthru
        _
    $region40: #{discriminator_forward.7} parent=5 // pred_fallthru
      _
    %p1003 = scmp.le.s32.totalorder 2, %s15
    // Predicated region
    $region49: #{discriminator_forward.7} parent=5 // pred_check
      %p1004 = pneg %p1003
    $region50: #{discriminator_forward.7} parent=5 // pred_check_branch
      %1006 = sbr.rel (%p1004) target = $region52
    $region51: #{discriminator_forward.7} parent=5 // pred_region
      %s1007 = ssub.s32 %s15, 2
      // Predicated region
      $region53: #{discriminator_forward.7} parent=51 // pred_check
        %p1008 = pneg %p154
      $region54: #{discriminator_forward.7} parent=51 // pred_check_branch
        %1010 = sbr.rel (%p1008) target = $region56
      $region55: #{discriminator_forward.7} parent=51 // pred_region
        %p1011 = scmp.lt.s32.totalorder %s21, 1
        %s1012 = scalar_select %p1011, %s21, 1
        %s1013 = smul.addr %s1012, 8
        %s1014 = smul.addr %s1013, 8
        %s1015 = scalar_lea.vmem %s5, %s1014
      $region56: #{discriminator_forward.7} parent=51 // pred_fallthru
        _
      // Predicated region
      $region57: #{discriminator_forward.7} parent=51 // pred_check
        %p1016 = pneg %p180
      $region58: #{discriminator_forward.7} parent=51 // pred_check_branch
        %1018 = sbr.rel (%p1016) target = $region60
      $region59: #{discriminator_forward.7} parent=51 // pred_region
        %p1019 = scmp.lt.s32.totalorder %s21, 1
        %s1020 = scalar_select %p1019, %s21, 1
        %s1021 = scalar_lea.vmem %s6, %s1020
      $region60: #{discriminator_forward.7} parent=51 // pred_fallthru
        _
    $region52: #{discriminator_forward.7} parent=5 // pred_fallthru
      _
  $region6: #{discriminator_forward.7} parent=0 // loop_footer
    %s19 = sadd.s32 1, %s15
  $region7: #{discriminator_forward.7} parent=0 // loop_footer_branch
    %14 = sbr.rel target = $region3
  $region8: #{discriminator_forward.7} parent=0 // loop_exit
    _

</llo_original>
